<compile_context>
chip_gen: v5e
topology: v5e:2x2
jax: 0.10.0
libtpu: 0.0.40
codegen_flags: <defaults>
</compile_context>

<pallas_src>
import functools

import jax
import jax.numpy as jnp
from jax.experimental import pallas as pl
from jax.experimental.pallas import tpu as pltpu

_MIB = 1024 * 1024


def _budgets():
    """(vmem_limit_bytes, per-call tile budget) chosen per TPU generation."""
    try:
        kind = jax.devices()[0].device_kind.lower()
    except Exception:
        kind = ""
    if any(g in kind for g in ("v3", "v4", "v5", "v6")):
        return 96 * _MIB, 40 * _MIB        # 128 MiB physical VMEM parts
    return 48 * _MIB, 16 * _MIB            # v7x (64 MiB / TC) or unknown: safe


VMEM_LIMIT, TILE_BUDGET = _budgets()


def _cparams(semantics):
    return pltpu.CompilerParams(dimension_semantics=semantics,
                                vmem_limit_bytes=VMEM_LIMIT)


def _round_up(x, m):
    return (x + m - 1) // m * m


def _pick_row_tile(n, bytes_per_row, align=16):
    """Row tile (multiple of `align`); caller pads n up to a tile multiple,
    so the tile never silently exceeds the budget."""
    target = max(align, TILE_BUDGET // max(bytes_per_row, 1))
    if n <= target:
        return _round_up(n, align)
    return (target // align) * align


# ----------------------------- Pallas kernels -----------------------------

def matmul_stats_kernel(x_ref, w_ref, y_ref, s_ref):
    # x: (B, L) bf16, w: (L, tn) bf16 -> y: (B, tn) bf16, s: (2, tn) f32
    acc = jnp.dot(x_ref[...], w_ref[...], preferred_element_type=jnp.float32)
    yb = acc.astype(y_ref.dtype)
    yf = yb.astype(jnp.float32)              # stats on the stored values
    s_ref[...] = jnp.concatenate(
        [jnp.sum(yf, axis=0, keepdims=True),
         jnp.sum(yf * yf, axis=0, keepdims=True)], axis=0)
    y_ref[...] = yb


def scale_shift_relu_kernel(x_ref, sc_ref, sh_ref, o_ref):
    y = x_ref[...].astype(jnp.float32) * sc_ref[...] + sh_ref[...]
    o_ref[...] = jnp.maximum(y, 0.0).astype(o_ref.dtype)


def _make_convT_kernel(tb, H, W, Cin, last):
    """ConvTranspose2d(4,2,1) sub-pixel kernel: one batch tile per grid step,
    all 4 output parities computed in-kernel from the VMEM-resident padded
    input block (static tap slices -> no HBM tap materialization)."""
    M = tb * H * W

    def kernel(x_ref, w_ref, y_ref, *rest):
        # x: (tb, H+2, W+2, Cin) bf16   w: (4, 4*Cin, CP) bf16
        # y: (4, M, CP)                 rest: ((1, 2, CP) f32 stats,) if not last
        stats = None
        for par in range(4):
            rh, rw = par // 2, par % 2
            win = jnp.concatenate(
                [x_ref[:, pl.ds(rh + 1 - a, H), pl.ds(rw + 1 - b, W), :]
                 for a in range(2) for b in range(2)],
                axis=-1)                                   # (tb, H, W, 4*Cin)
            lhs = win.reshape(M, 4 * Cin)
            acc = jnp.dot(lhs, w_ref[par],
                          preferred_element_type=jnp.float32)   # (M, CP) f32
            if last:
                y_ref[par] = jnp.tanh(acc).astype(y_ref.dtype)
            else:
                yb = acc.astype(y_ref.dtype)
                y_ref[par] = yb
                yf = yb.astype(jnp.float32)
                part = jnp.concatenate(
                    [jnp.sum(yf, axis=0, keepdims=True),
                     jnp.sum(yf * yf, axis=0, keepdims=True)], axis=0)
                stats = part if stats is None else stats + part
        if not last:
            rest[0][0] = stats

    return kernel


# ------------------------------ op wrappers ------------------------------

def linear_with_stats(z, w):
    """z:(B,L) @ w:(L,N) -> bf16 (B, NP) with NP = round_up(N, 128) lane-dense
    columns (zero-padded), plus per-column [sum, sumsq] over the batch rows."""
    B, L = z.shape
    L2, N = w.shape
    assert L == L2
    NP = _round_up(N, 128)
    if NP != N:
        w = jnp.pad(w, ((0, 0), (0, NP - N)))
    bytes_per_col = 2 * (2 * L + 2 * B + 4 * 2)   # dbl-buffered w + y + stats
    target = max(128, TILE_BUDGET // max(bytes_per_col, 1))
    tn = 128
    for t in range(128, min(target, NP) + 1, 128):
        if NP % t == 0:
            tn = t
    y, stats = pl.pallas_call(
        matmul_stats_kernel,
        out_shape=(jax.ShapeDtypeStruct((B, NP), jnp.bfloat16),
                   jax.ShapeDtypeStruct((2, NP), jnp.float32)),
        grid=(NP // tn,),
        in_specs=[pl.BlockSpec((B, L), lambda j: (0, 0)),
                  pl.BlockSpec((L, tn), lambda j: (0, j))],
        out_specs=(pl.BlockSpec((B, tn), lambda j: (0, j)),
                   pl.BlockSpec((2, tn), lambda j: (0, j))),
        compiler_params=_cparams(("parallel",)),
    )(z.astype(jnp.bfloat16), w.astype(jnp.bfloat16))
    return y, stats


def scale_shift_relu(x2d, scale_row, shift_row):
    """bf16 (R, C) * scale + shift -> ReLU -> bf16; scale/shift: f32 (1, C)."""
    R, C = x2d.shape
    tr = _pick_row_tile(R, 2 * (2 * C + 2 * C), align=16)
    RP = _round_up(R, tr)
    if RP != R:
        x2d = jnp.pad(x2d, ((0, RP - R), (0, 0)))
    out = pl.pallas_call(
        scale_shift_relu_kernel,
        out_shape=jax.ShapeDtypeStruct((RP, C), jnp.bfloat16),
        grid=(RP // tr,),
        in_specs=[pl.BlockSpec((tr, C), lambda i: (i, 0)),
                  pl.BlockSpec((1, C), lambda i: (0, 0)),
                  pl.BlockSpec((1, C), lambda i: (0, 0))],
        out_specs=pl.BlockSpec((tr, C), lambda i: (i, 0)),
        compiler_params=_cparams(("parallel",)),
    )(x2d, scale_row.astype(jnp.float32), shift_row.astype(jnp.float32))
    return out[:R]


def _pick_batch_tile(B, H, W, Cin, CP, last):
    HW = H * W
    ybytes = 4 if last else 2

    def blk_bytes(tb):
        M = tb * HW
        return (2 * (tb * (H + 2) * (W + 2) * Cin * 2    # x (double-buffered)
                     + 4 * M * CP * ybytes                # y
                     + 4 * 4 * Cin * CP * 2)              # folded weights
                + M * (4 * Cin * 4 + CP * 4))             # in-kernel lhs + acc

    shape_ok = [tb for tb in range(1, B + 1)
                if B % tb == 0 and (tb == B or (tb * HW) % 8 == 0)]
    fits = [tb for tb in shape_ok if blk_bytes(tb) <= TILE_BUDGET]
    if not fits:
        # TODO(synk): also tile the spatial dims for very large single images.
        return min(shape_ok)
    smaller = [tb for tb in fits if tb < B]   # prefer >=2 steps (v7x dual-TC)
    return max(smaller) if (B > 1 and smaller) else max(fits)


def conv_transpose_4x4_s2_p1(x_nhwc, weight, *, last):
    """ConvTranspose2d(Cin, Cout, 4, stride=2, padding=1, bias=False) via the
    sub-pixel parity decomposition. Returns parity-major output (4, B*H*W, CP)
    and, for non-last layers, the global per-channel [sum, sumsq]. CP is Cout
    padded to 128 lanes for the last (tanh) layer."""
    B, H, W, Cin = x_nhwc.shape
    Cin2, Cout, KH, KW = weight.shape
    assert (KH, KW) == (4, 4) and Cin == Cin2
    CP = _round_up(Cout, 128) if last else Cout
    N = B * H * W

    xp = jnp.pad(x_nhwc.astype(jnp.bfloat16), ((0, 0), (1, 1), (1, 1), (0, 0)))

    # Fold the 4 kernel taps of each output parity into a (4*Cin, CP) weight.
    wts = []
    for rh in range(2):
        for rw in range(2):
            slabs = []
            for a in range(2):
                for b in range(2):
                    kh, kw = 2 * a + 1 - rh, 2 * b + 1 - rw
                    slabs.append(weight[:, :, kh, kw])      # (Cin, Cout)
            wp = jnp.concatenate(slabs, axis=0)              # (4*Cin, Cout)
            if CP != Cout:
                wp = jnp.pad(wp, ((0, 0), (0, CP - Cout)))   # lane-dense out
            wts.append(wp)
    wt = jnp.stack(wts).astype(jnp.bfloat16)                 # (4, 4*Cin, CP)

    tb = _pick_batch_tile(B, H, W, Cin, CP, last)
    M = tb * H * W
    n_tiles = B // tb
    kernel = _make_convT_kernel(tb, H, W, Cin, last)

    in_specs = [pl.BlockSpec((tb, H + 2, W + 2, Cin), lambda i: (i, 0, 0, 0)),
                pl.BlockSpec((4, 4 * Cin, CP), lambda i: (0, 0, 0))]

    if last:
        y = pl.pallas_call(
            kernel,
            out_shape=jax.ShapeDtypeStruct((4, N, CP), jnp.float32),
            grid=(n_tiles,),
            in_specs=in_specs,
            out_specs=pl.BlockSpec((4, M, CP), lambda i: (0, i, 0)),
            compiler_params=_cparams(("parallel",)),
        )(xp, wt)
        return y, None

    y, stats = pl.pallas_call(
        kernel,
        out_shape=(jax.ShapeDtypeStruct((4, N, CP), jnp.bfloat16),
                   jax.ShapeDtypeStruct((n_tiles, 2, CP), jnp.float32)),
        grid=(n_tiles,),
        in_specs=in_specs,
        out_specs=(pl.BlockSpec((4, M, CP), lambda i: (0, i, 0)),
                   pl.BlockSpec((1, 2, CP), lambda i: (i, 0, 0))),
        compiler_params=_cparams(("parallel",)),
    )(xp, wt)
    return y, jnp.sum(stats, axis=0)                          # (2, Cout)


def _bn_scale_shift(sums, count, gamma, beta, eps=1e-5):
    mean = sums[0] / count
    var = jnp.maximum(sums[1] / count - mean * mean, 0.0)
    scale = gamma * jax.lax.rsqrt(var + eps)
    shift = beta - mean * scale
    return scale, shift


def _bn_relu_parity(y, sums, gamma, beta):
    """Training-mode BatchNorm2d (global biased batch stats) + ReLU on the
    parity-major conv output, using a lane-dense 128-wide view when C | 128."""
    P, N, C = y.shape
    scale, shift = _bn_scale_shift(sums, P * N, gamma, beta)
    total = P * N * C
    if C < 128 and 128 % C == 0 and total % 128 == 0:
        reps = 128 // C                      # lane-dense view, zero extra bytes
        out = scale_shift_relu(y.reshape(total // 128, 128),
                               jnp.tile(scale, reps).reshape(1, 128),
                               jnp.tile(shift, reps).reshape(1, 128))
        return out.reshape(P, N, C)
    out = scale_shift_relu(y.reshape(P * N, C),
                           scale.reshape(1, C), shift.reshape(1, C))
    return out.reshape(P, N, C)


def _pixel_shuffle(y_parity, B, H, W):
    """(4, B*H*W, C) parity-major -> (B, 2H, 2W, C)."""
    C = y_parity.shape[-1]
    out = y_parity.reshape(2, 2, B, H, W, C)
    out = jnp.transpose(out, (2, 3, 0, 4, 1, 5))
    return out.reshape(B, 2 * H, 2 * W, C)


# ------------------------- parameters / forward pass -------------------------

def make_generator_params(key, latent_dim_size, img_size, img_channels,
                          generator_num_features, n_layers):
    assert img_size % (2 ** n_layers) == 0
    first_height = img_size // 2 ** n_layers
    first_size = generator_num_features * first_height * first_height

    params = {}
    key, k_fc = jax.random.split(key)
    sf_fc = 1.0 / (latent_dim_size ** 0.5)
    # stored pre-transposed as (in, out): no transpose in the forward pass
    params["fc_w"] = sf_fc * (2.0 * jax.random.uniform(
        k_fc, (latent_dim_size, first_size), jnp.float32) - 1.0)
    params["bn0_gamma"] = jnp.ones((generator_num_features,), jnp.float32)
    params["bn0_beta"] = jnp.zeros((generator_num_features,), jnp.float32)

    in_channels = [int(generator_num_features / 2 ** i) for i in range(n_layers)]
    out_channels = in_channels[1:] + [img_channels]
    convs = []
    for ci, co in zip(in_channels, out_channels):
        key, kw = jax.random.split(key)
        sf = 1.0 / ((co * 4 * 4) ** 0.5)
        w = sf * (2.0 * jax.random.uniform(kw, (ci, co, 4, 4), jnp.float32) - 1.0)
        convs.append((w, jnp.ones((co,), jnp.float32),
                      jnp.zeros((co,), jnp.float32)))
    params["convs"] = convs
    return params, first_height


def generator_forward(params, z, *, first_height, generator_num_features,
                      n_layers):
    B = z.shape[0]
    C0 = generator_num_features
    H0 = W0 = first_height
    hw = H0 * W0
    first_size = C0 * hw

    # project_and_reshape: Linear(bias=False) -> rearrange -> BN -> ReLU
    y, stats = linear_with_stats(z, params["fc_w"])           # (B, NP) bf16
    NP = y.shape[1]
    sums = stats[:, :first_size].reshape(2, C0, hw).sum(-1)   # (2, C0)
    scale, shift = _bn_scale_shift(sums, B * hw,
                                   params["bn0_gamma"], params["bn0_beta"])
    sc = jnp.pad(jnp.repeat(scale, hw), (0, NP - first_size))
    sh = jnp.pad(jnp.repeat(shift, hw), (0, NP - first_size))
    h = scale_shift_relu(y, sc.reshape(1, NP), sh.reshape(1, NP))[:, :first_size]
    h = h.reshape(B, C0, H0, W0)                              # 'b (ic h w)'
    h = jnp.transpose(h, (0, 2, 3, 1))                        # NHWC, bf16

    # stack of ConvTranspose2d(ci, co, 4, 2, 1) [+ BN + ReLU | Tanh]
    for i, (w, gamma, beta) in enumerate(params["convs"]):
        last = (i == n_layers - 1)
        Bc, Hc, Wc, _ = h.shape
        y, sums = conv_transpose_4x4_s2_p1(h, w, last=last)
        if last:
            y = y[..., :w.shape[1]]                           # drop lane padding
        else:
            y = _bn_relu_parity(y, sums, gamma, beta)
        # TODO(synk): consume the parity-major layout directly in the next
        # layer's tap assembly to skip this (bf16) pixel-shuffle transpose.
        h = _pixel_shuffle(y, Bc, Hc, Wc)

    return jnp.transpose(h, (0, 3, 1, 2)).astype(jnp.float32)  # PyTorch NCHW


# ----------------------------------- main -----------------------------------

if __name__ == "__main__":
    # Small config consistent with the module (img_size % 2**n_layers == 0).
    latent_dim_size = 32
    img_size = 16
    img_channels = 3
    generator_num_features = 64
    n_layers = 2
    batch = 2

    key = jax.random.PRNGKey(0)
    key, kz, kp = jax.random.split(key, 3)
    params, first_height = make_generator_params(
        kp, latent_dim_size, img_size, img_channels,
        generator_num_features, n_layers)
    z = jax.random.normal(kz, (batch, latent_dim_size), jnp.float32)

    fwd = jax.jit(functools.partial(
        generator_forward,
        first_height=first_height,
        generator_num_features=generator_num_features,
        n_layers=n_layers))

    out = fwd(params, z)
    jax.block_until_ready(out)

    assert out.shape == (batch, img_channels, img_size, img_size), out.shape
    assert bool(jnp.all(jnp.isfinite(out)))
    print("KERNEL_OK")
</pallas_src>

<mosaic_0001>
module attributes {stable_mosaic.version = 11 : i64} {
  func.func @matmul_stats_kernel(%arg0: i32, %arg1: memref<2x32xbf16, #tpu.memory_space<vmem>>, %arg2: memref<32x1024xbf16, #tpu.memory_space<vmem>>, %arg3: memref<2x1024xbf16, #tpu.memory_space<vmem>>, %arg4: memref<2x1024xf32, #tpu.memory_space<vmem>>) attributes {dimension_semantics = [#tpu.dimension_semantics<parallel>], iteration_bounds = array<i64: 1>, scalar_prefetch = 0 : i64, scratch_operands = 0 : i64, tpu.core_type = #tpu.core_type<tc>, window_params = [{pipeline_mode = #tpu.pipeline_mode<synchronous>, transform_indices = @transform_0, window_bounds = array<i64: 2, 32>}, {transform_indices = @transform_1, window_bounds = array<i64: 32, 1024>}, {transform_indices = @transform_2, window_bounds = array<i64: 2, 1024>}, {transform_indices = @transform_3, window_bounds = array<i64: 2, 1024>}]} {
    %c0 = arith.constant 0 : index
    %c0_0 = arith.constant 0 : index
    %0 = vector.load %arg1[%c0, %c0_0] : memref<2x32xbf16, #tpu.memory_space<vmem>>, vector<2x32xbf16>
    %c0_1 = arith.constant 0 : index
    %c0_2 = arith.constant 0 : index
    %1 = vector.load %arg2[%c0_1, %c0_2] : memref<32x1024xbf16, #tpu.memory_space<vmem>>, vector<32x1024xbf16>
    %cst = arith.constant dense<0.000000e+00> : vector<2x1024xf32>
    %2 = tpu.matmul %0, %1, %cst {dimension_numbers = #tpu.dot_dimension_numbers<[1], [0], [0], [1], [0, 0, 1, 1], [], []>} : vector<2x32xbf16>, vector<32x1024xbf16>, vector<2x1024xf32> -> vector<2x1024xf32>
    %3 = arith.truncf %2 : vector<2x1024xf32> to vector<2x1024xbf16>
    %4 = arith.extf %3 : vector<2x1024xbf16> to vector<2x1024xf32>
    %cst_3 = arith.constant dense<0.000000e+00> : vector<1024xf32>
    %5 = vector.multi_reduction <add>, %4, %cst_3 [0] : vector<2x1024xf32> to vector<1024xf32>
    %6 = vector.shape_cast %5 : vector<1024xf32> to vector<1x1024xf32>
    %7 = arith.mulf %4, %4 : vector<2x1024xf32>
    %cst_4 = arith.constant dense<0.000000e+00> : vector<1024xf32>
    %8 = vector.multi_reduction <add>, %7, %cst_4 [0] : vector<2x1024xf32> to vector<1024xf32>
    %9 = vector.shape_cast %8 : vector<1024xf32> to vector<1x1024xf32>
    %10 = tpu.concatenate %6, %9 in 0 : vector<1x1024xf32>, vector<1x1024xf32> -> vector<2x1024xf32>
    %c0_5 = arith.constant 0 : index
    %c0_6 = arith.constant 0 : index
    %11 = vector.load %arg4[%c0_5, %c0_6] : memref<2x1024xf32, #tpu.memory_space<vmem>>, vector<2x1024xf32>
    tpu.vector_store %arg4[%c0_5, %c0_6], %10 {strides = array<i32>} : memref<2x1024xf32, #tpu.memory_space<vmem>>, vector<2x1024xf32>,
    %c0_7 = arith.constant 0 : index
    %c0_8 = arith.constant 0 : index
    %12 = vector.load %arg3[%c0_7, %c0_8] : memref<2x1024xbf16, #tpu.memory_space<vmem>>, vector<2x1024xbf16>
    tpu.vector_store %arg3[%c0_7, %c0_8], %3 {strides = array<i32>} : memref<2x1024xbf16, #tpu.memory_space<vmem>>, vector<2x1024xbf16>,
    return
  }
  func.func @transform_0(%arg0: i32) -> (i32, i32) {
    %c0_i32 = arith.constant 0 : i32
    %c0_i32_0 = arith.constant 0 : i32
    %c0_i32_1 = arith.constant 0 : i32
    return %c0_i32, %c0_i32_0 : i32, i32
  }
  func.func @transform_1(%arg0: i32) -> (i32, i32) {
    %c0_i32 = arith.constant 0 : i32
    %c0_i32_0 = arith.constant 0 : i32
    return %c0_i32, %arg0 : i32, i32
  }
  func.func @transform_2(%arg0: i32) -> (i32, i32) {
    %c0_i32 = arith.constant 0 : i32
    %c0_i32_0 = arith.constant 0 : i32
    return %c0_i32, %arg0 : i32, i32
  }
  func.func @transform_3(%arg0: i32) -> (i32, i32) {
    %c0_i32 = arith.constant 0 : i32
    %c0_i32_0 = arith.constant 0 : i32
    return %c0_i32, %arg0 : i32, i32
  }
}

module attributes {stable_mosaic.version = 11 : i64} {
  func.func @scale_shift_relu_kernel(%arg0: i32, %arg1: memref<16x1024xbf16, #tpu.memory_space<vmem>>, %arg2: memref<1x1024xf32, #tpu.memory_space<vmem>>, %arg3: memref<1x1024xf32, #tpu.memory_space<vmem>>, %arg4: memref<16x1024xbf16, #tpu.memory_space<vmem>>) attributes {dimension_semantics = [#tpu.dimension_semantics<parallel>], iteration_bounds = array<i64: 1>, scalar_prefetch = 0 : i64, scratch_operands = 0 : i64, tpu.core_type = #tpu.core_type<tc>, window_params = [{transform_indices = @transform_0, window_bounds = array<i64: 16, 1024>}, {pipeline_mode = #tpu.pipeline_mode<synchronous>, transform_indices = @transform_1, window_bounds = array<i64: 1, 1024>}, {pipeline_mode = #tpu.pipeline_mode<synchronous>, transform_indices = @transform_2, window_bounds = array<i64: 1, 1024>}, {transform_indices = @transform_3, window_bounds = array<i64: 16, 1024>}]} {
    %c0 = arith.constant 0 : index
    %c0_0 = arith.constant 0 : index
    %0 = vector.load %arg1[%c0, %c0_0] : memref<16x1024xbf16, #tpu.memory_space<vmem>>, vector<16x1024xbf16>
    %1 = arith.extf %0 : vector<16x1024xbf16> to vector<16x1024xf32>
    %c0_1 = arith.constant 0 : index
    %c0_2 = arith.constant 0 : index
    %2 = vector.load %arg2[%c0_1, %c0_2] : memref<1x1024xf32, #tpu.memory_space<vmem>>, vector<1x1024xf32>
    %3 = vector.broadcast %2 : vector<1x1024xf32> to vector<16x1024xf32>
    %4 = arith.mulf %1, %3 : vector<16x1024xf32>
    %c0_3 = arith.constant 0 : index
    %c0_4 = arith.constant 0 : index
    %5 = vector.load %arg3[%c0_3, %c0_4] : memref<1x1024xf32, #tpu.memory_space<vmem>>, vector<1x1024xf32>
    %6 = vector.broadcast %5 : vector<1x1024xf32> to vector<16x1024xf32>
    %7 = arith.addf %4, %6 : vector<16x1024xf32>
    %cst = arith.constant 0.000000e+00 : f32
    %8 = vector.broadcast %cst : f32 to vector<16x1024xf32>
    %9 = arith.maximumf %7, %8 : vector<16x1024xf32>
    %10 = arith.truncf %9 : vector<16x1024xf32> to vector<16x1024xbf16>
    %c0_5 = arith.constant 0 : index
    %c0_6 = arith.constant 0 : index
    %11 = vector.load %arg4[%c0_5, %c0_6] : memref<16x1024xbf16, #tpu.memory_space<vmem>>, vector<16x1024xbf16>
    tpu.vector_store %arg4[%c0_5, %c0_6], %10 {strides = array<i32>} : memref<16x1024xbf16, #tpu.memory_space<vmem>>, vector<16x1024xbf16>,
    return
  }
  func.func @transform_0(%arg0: i32) -> (i32, i32) {
    %c0_i32 = arith.constant 0 : i32
    %c0_i32_0 = arith.constant 0 : i32
    return %arg0, %c0_i32 : i32, i32
  }
  func.func @transform_1(%arg0: i32) -> (i32, i32) {
    %c0_i32 = arith.constant 0 : i32
    %c0_i32_0 = arith.constant 0 : i32
    %c0_i32_1 = arith.constant 0 : i32
    return %c0_i32, %c0_i32_0 : i32, i32
  }
  func.func @transform_2(%arg0: i32) -> (i32, i32) {
    %c0_i32 = arith.constant 0 : i32
    %c0_i32_0 = arith.constant 0 : i32
    %c0_i32_1 = arith.constant 0 : i32
    return %c0_i32, %c0_i32_0 : i32, i32
  }
  func.func @transform_3(%arg0: i32) -> (i32, i32) {
    %c0_i32 = arith.constant 0 : i32
    %c0_i32_0 = arith.constant 0 : i32
    return %arg0, %c0_i32 : i32, i32
  }
}

module attributes {stable_mosaic.version = 11 : i64} {
  func.func @kernel(%arg0: i32, %arg1: memref<1x6x6x64xbf16, #tpu.memory_space<vmem>>, %arg2: memref<4x256x32xbf16, #tpu.memory_space<vmem>>, %arg3: memref<4x16x32xbf16, #tpu.memory_space<vmem>>, %arg4: memref<1x2x32xf32, #tpu.memory_space<vmem>>) attributes {dimension_semantics = [#tpu.dimension_semantics<parallel>], iteration_bounds = array<i64: 2>, scalar_prefetch = 0 : i64, scratch_operands = 0 : i64, tpu.core_type = #tpu.core_type<tc>, window_params = [{transform_indices = @transform_0, window_bounds = array<i64: 1, 6, 6, 64>}, {pipeline_mode = #tpu.pipeline_mode<synchronous>, transform_indices = @transform_1, window_bounds = array<i64: 4, 256, 32>}, {transform_indices = @transform_2, window_bounds = array<i64: 4, 16, 32>}, {transform_indices = @transform_3, window_bounds = array<i64: 1, 2, 32>}]} {
    %c0 = arith.constant 0 : index
    %c1 = arith.constant 1 : index
    %c1_0 = arith.constant 1 : index
    %c0_1 = arith.constant 0 : index
    %0 = vector.load %arg1[%c0, %c1, %c1_0, %c0_1] : memref<1x6x6x64xbf16, #tpu.memory_space<vmem>>, vector<1x4x4x64xbf16>
    %c0_2 = arith.constant 0 : index
    %c1_3 = arith.constant 1 : index
    %c0_4 = arith.constant 0 : index
    %c0_5 = arith.constant 0 : index
    %1 = vector.load %arg1[%c0_2, %c1_3, %c0_4, %c0_5] : memref<1x6x6x64xbf16, #tpu.memory_space<vmem>>, vector<1x4x4x64xbf16>
    %c0_6 = arith.constant 0 : index
    %c0_7 = arith.constant 0 : index
    %c1_8 = arith.constant 1 : index
    %c0_9 = arith.constant 0 : index
    %2 = vector.load %arg1[%c0_6, %c0_7, %c1_8, %c0_9] : memref<1x6x6x64xbf16, #tpu.memory_space<vmem>>, vector<1x4x4x64xbf16>
    %c0_10 = arith.constant 0 : index
    %c0_11 = arith.constant 0 : index
    %c0_12 = arith.constant 0 : index
    %c0_13 = arith.constant 0 : index
    %3 = vector.load %arg1[%c0_10, %c0_11, %c0_12, %c0_13] : memref<1x6x6x64xbf16, #tpu.memory_space<vmem>>, vector<1x4x4x64xbf16>
    %4 = tpu.concatenate %0, %1, %2, %3 in 3 : vector<1x4x4x64xbf16>, vector<1x4x4x64xbf16>, vector<1x4x4x64xbf16>, vector<1x4x4x64xbf16> -> vector<1x4x4x256xbf16>
    %5 = vector.shape_cast %4 : vector<1x4x4x256xbf16> to vector<16x256xbf16>
    %c0_14 = arith.constant 0 : index
    %c0_15 = arith.constant 0 : index
    %c0_16 = arith.constant 0 : index
    %6 = vector.load %arg2[%c0_14, %c0_15, %c0_16] : memref<4x256x32xbf16, #tpu.memory_space<vmem>>, vector<1x256x32xbf16>
    %7 = vector.shape_cast %6 : vector<1x256x32xbf16> to vector<256x32xbf16>
    %cst = arith.constant dense<0.000000e+00> : vector<16x32xf32>
    %8 = tpu.matmul %5, %7, %cst {dimension_numbers = #tpu.dot_dimension_numbers<[1], [0], [0], [1], [0, 0, 1, 1], [], []>} : vector<16x256xbf16>, vector<256x32xbf16>, vector<16x32xf32> -> vector<16x32xf32>
    %9 = arith.truncf %8 : vector<16x32xf32> to vector<16x32xbf16>
    %c0_17 = arith.constant 0 : index
    %c0_18 = arith.constant 0 : index
    %c0_19 = arith.constant 0 : index
    %10 = vector.load %arg3[%c0_17, %c0_18, %c0_19] : memref<4x16x32xbf16, #tpu.memory_space<vmem>>, vector<1x16x32xbf16>
    %11 = vector.shape_cast %10 : vector<1x16x32xbf16> to vector<16x32xbf16>
    %12 = vector.shape_cast %9 : vector<16x32xbf16> to vector<1x16x32xbf16>
    tpu.vector_store %arg3[%c0_17, %c0_18, %c0_19], %12 {strides = array<i32>} : memref<4x16x32xbf16, #tpu.memory_space<vmem>>, vector<1x16x32xbf16>,
    %13 = arith.extf %9 : vector<16x32xbf16> to vector<16x32xf32>
    %cst_20 = arith.constant dense<0.000000e+00> : vector<32xf32>
    %14 = vector.multi_reduction <add>, %13, %cst_20 [0] : vector<16x32xf32> to vector<32xf32>
    %15 = vector.shape_cast %14 : vector<32xf32> to vector<1x32xf32>
    %16 = arith.mulf %13, %13 : vector<16x32xf32>
    %cst_21 = arith.constant dense<0.000000e+00> : vector<32xf32>
    %17 = vector.multi_reduction <add>, %16, %cst_21 [0] : vector<16x32xf32> to vector<32xf32>
    %18 = vector.shape_cast %17 : vector<32xf32> to vector<1x32xf32>
    %19 = tpu.concatenate %15, %18 in 0 : vector<1x32xf32>, vector<1x32xf32> -> vector<2x32xf32>
    %c0_22 = arith.constant 0 : index
    %c1_23 = arith.constant 1 : index
    %c2 = arith.constant 2 : index
    %c0_24 = arith.constant 0 : index
    %20 = vector.load %arg1[%c0_22, %c1_23, %c2, %c0_24] : memref<1x6x6x64xbf16, #tpu.memory_space<vmem>>, vector<1x4x4x64xbf16>
    %c0_25 = arith.constant 0 : index
    %c1_26 = arith.constant 1 : index
    %c1_27 = arith.constant 1 : index
    %c0_28 = arith.constant 0 : index
    %21 = vector.load %arg1[%c0_25, %c1_26, %c1_27, %c0_28] : memref<1x6x6x64xbf16, #tpu.memory_space<vmem>>, vector<1x4x4x64xbf16>
    %c0_29 = arith.constant 0 : index
    %c0_30 = arith.constant 0 : index
    %c2_31 = arith.constant 2 : index
    %c0_32 = arith.constant 0 : index
    %22 = vector.load %arg1[%c0_29, %c0_30, %c2_31, %c0_32] : memref<1x6x6x64xbf16, #tpu.memory_space<vmem>>, vector<1x4x4x64xbf16>
    %c0_33 = arith.constant 0 : index
    %c0_34 = arith.constant 0 : index
    %c1_35 = arith.constant 1 : index
    %c0_36 = arith.constant 0 : index
    %23 = vector.load %arg1[%c0_33, %c0_34, %c1_35, %c0_36] : memref<1x6x6x64xbf16, #tpu.memory_space<vmem>>, vector<1x4x4x64xbf16>
    %24 = tpu.concatenate %20, %21, %22, %23 in 3 : vector<1x4x4x64xbf16>, vector<1x4x4x64xbf16>, vector<1x4x4x64xbf16>, vector<1x4x4x64xbf16> -> vector<1x4x4x256xbf16>
    %25 = vector.shape_cast %24 : vector<1x4x4x256xbf16> to vector<16x256xbf16>
    %c1_37 = arith.constant 1 : index
    %c0_38 = arith.constant 0 : index
    %c0_39 = arith.constant 0 : index
    %26 = vector.load %arg2[%c1_37, %c0_38, %c0_39] : memref<4x256x32xbf16, #tpu.memory_space<vmem>>, vector<1x256x32xbf16>
    %27 = vector.shape_cast %26 : vector<1x256x32xbf16> to vector<256x32xbf16>
    %cst_40 = arith.constant dense<0.000000e+00> : vector<16x32xf32>
    %28 = tpu.matmul %25, %27, %cst_40 {dimension_numbers = #tpu.dot_dimension_numbers<[1], [0], [0], [1], [0, 0, 1, 1], [], []>} : vector<16x256xbf16>, vector<256x32xbf16>, vector<16x32xf32> -> vector<16x32xf32>
    %29 = arith.truncf %28 : vector<16x32xf32> to vector<16x32xbf16>
    %c1_41 = arith.constant 1 : index
    %c0_42 = arith.constant 0 : index
    %c0_43 = arith.constant 0 : index
    %30 = vector.load %arg3[%c1_41, %c0_42, %c0_43] : memref<4x16x32xbf16, #tpu.memory_space<vmem>>, vector<1x16x32xbf16>
    %31 = vector.shape_cast %30 : vector<1x16x32xbf16> to vector<16x32xbf16>
    %32 = vector.shape_cast %29 : vector<16x32xbf16> to vector<1x16x32xbf16>
    tpu.vector_store %arg3[%c1_41, %c0_42, %c0_43], %32 {strides = array<i32>} : memref<4x16x32xbf16, #tpu.memory_space<vmem>>, vector<1x16x32xbf16>,
    %33 = arith.extf %29 : vector<16x32xbf16> to vector<16x32xf32>
    %cst_44 = arith.constant dense<0.000000e+00> : vector<32xf32>
    %34 = vector.multi_reduction <add>, %33, %cst_44 [0] : vector<16x32xf32> to vector<32xf32>
    %35 = vector.shape_cast %34 : vector<32xf32> to vector<1x32xf32>
    %36 = arith.mulf %33, %33 : vector<16x32xf32>
    %cst_45 = arith.constant dense<0.000000e+00> : vector<32xf32>
    %37 = vector.multi_reduction <add>, %36, %cst_45 [0] : vector<16x32xf32> to vector<32xf32>
    %38 = vector.shape_cast %37 : vector<32xf32> to vector<1x32xf32>
    %39 = tpu.concatenate %35, %38 in 0 : vector<1x32xf32>, vector<1x32xf32> -> vector<2x32xf32>
    %40 = arith.addf %19, %39 : vector<2x32xf32>
    %c0_46 = arith.constant 0 : index
    %c2_47 = arith.constant 2 : index
    %c1_48 = arith.constant 1 : index
    %c0_49 = arith.constant 0 : index
    %41 = vector.load %arg1[%c0_46, %c2_47, %c1_48, %c0_49] : memref<1x6x6x64xbf16, #tpu.memory_space<vmem>>, vector<1x4x4x64xbf16>
    %c0_50 = arith.constant 0 : index
    %c2_51 = arith.constant 2 : index
    %c0_52 = arith.constant 0 : index
    %c0_53 = arith.constant 0 : index
    %42 = vector.load %arg1[%c0_50, %c2_51, %c0_52, %c0_53] : memref<1x6x6x64xbf16, #tpu.memory_space<vmem>>, vector<1x4x4x64xbf16>
    %c0_54 = arith.constant 0 : index
    %c1_55 = arith.constant 1 : index
    %c1_56 = arith.constant 1 : index
    %c0_57 = arith.constant 0 : index
    %43 = vector.load %arg1[%c0_54, %c1_55, %c1_56, %c0_57] : memref<1x6x6x64xbf16, #tpu.memory_space<vmem>>, vector<1x4x4x64xbf16>
    %c0_58 = arith.constant 0 : index
    %c1_59 = arith.constant 1 : index
    %c0_60 = arith.constant 0 : index
    %c0_61 = arith.constant 0 : index
    %44 = vector.load %arg1[%c0_58, %c1_59, %c0_60, %c0_61] : memref<1x6x6x64xbf16, #tpu.memory_space<vmem>>, vector<1x4x4x64xbf16>
    %45 = tpu.concatenate %41, %42, %43, %44 in 3 : vector<1x4x4x64xbf16>, vector<1x4x4x64xbf16>, vector<1x4x4x64xbf16>, vector<1x4x4x64xbf16> -> vector<1x4x4x256xbf16>
    %46 = vector.shape_cast %45 : vector<1x4x4x256xbf16> to vector<16x256xbf16>
    %c2_62 = arith.constant 2 : index
    %c0_63 = arith.constant 0 : index
    %c0_64 = arith.constant 0 : index
    %47 = vector.load %arg2[%c2_62, %c0_63, %c0_64] : memref<4x256x32xbf16, #tpu.memory_space<vmem>>, vector<1x256x32xbf16>
    %48 = vector.shape_cast %47 : vector<1x256x32xbf16> to vector<256x32xbf16>
    %cst_65 = arith.constant dense<0.000000e+00> : vector<16x32xf32>
    %49 = tpu.matmul %46, %48, %cst_65 {dimension_numbers = #tpu.dot_dimension_numbers<[1], [0], [0], [1], [0, 0, 1, 1], [], []>} : vector<16x256xbf16>, vector<256x32xbf16>, vector<16x32xf32> -> vector<16x32xf32>
    %50 = arith.truncf %49 : vector<16x32xf32> to vector<16x32xbf16>
    %c2_66 = arith.constant 2 : index
    %c0_67 = arith.constant 0 : index
    %c0_68 = arith.constant 0 : index
    %51 = vector.load %arg3[%c2_66, %c0_67, %c0_68] : memref<4x16x32xbf16, #tpu.memory_space<vmem>>, vector<1x16x32xbf16>
    %52 = vector.shape_cast %51 : vector<1x16x32xbf16> to vector<16x32xbf16>
    %53 = vector.shape_cast %50 : vector<16x32xbf16> to vector<1x16x32xbf16>
    tpu.vector_store %arg3[%c2_66, %c0_67, %c0_68], %53 {strides = array<i32>} : memref<4x16x32xbf16, #tpu.memory_space<vmem>>, vector<1x16x32xbf16>,
    %54 = arith.extf %50 : vector<16x32xbf16> to vector<16x32xf32>
    %cst_69 = arith.constant dense<0.000000e+00> : vector<32xf32>
    %55 = vector.multi_reduction <add>, %54, %cst_69 [0] : vector<16x32xf32> to vector<32xf32>
    %56 = vector.shape_cast %55 : vector<32xf32> to vector<1x32xf32>
    %57 = arith.mulf %54, %54 : vector<16x32xf32>
    %cst_70 = arith.constant dense<0.000000e+00> : vector<32xf32>
    %58 = vector.multi_reduction <add>, %57, %cst_70 [0] : vector<16x32xf32> to vector<32xf32>
    %59 = vector.shape_cast %58 : vector<32xf32> to vector<1x32xf32>
    %60 = tpu.concatenate %56, %59 in 0 : vector<1x32xf32>, vector<1x32xf32> -> vector<2x32xf32>
    %61 = arith.addf %40, %60 : vector<2x32xf32>
    %c0_71 = arith.constant 0 : index
    %c2_72 = arith.constant 2 : index
    %c2_73 = arith.constant 2 : index
    %c0_74 = arith.constant 0 : index
    %62 = vector.load %arg1[%c0_71, %c2_72, %c2_73, %c0_74] : memref<1x6x6x64xbf16, #tpu.memory_space<vmem>>, vector<1x4x4x64xbf16>
    %c0_75 = arith.constant 0 : index
    %c2_76 = arith.constant 2 : index
    %c1_77 = arith.constant 1 : index
    %c0_78 = arith.constant 0 : index
    %63 = vector.load %arg1[%c0_75, %c2_76, %c1_77, %c0_78] : memref<1x6x6x64xbf16, #tpu.memory_space<vmem>>, vector<1x4x4x64xbf16>
    %c0_79 = arith.constant 0 : index
    %c1_80 = arith.constant 1 : index
    %c2_81 = arith.constant 2 : index
    %c0_82 = arith.constant 0 : index
    %64 = vector.load %arg1[%c0_79, %c1_80, %c2_81, %c0_82] : memref<1x6x6x64xbf16, #tpu.memory_space<vmem>>, vector<1x4x4x64xbf16>
    %c0_83 = arith.constant 0 : index
    %c1_84 = arith.constant 1 : index
    %c1_85 = arith.constant 1 : index
    %c0_86 = arith.constant 0 : index
    %65 = vector.load %arg1[%c0_83, %c1_84, %c1_85, %c0_86] : memref<1x6x6x64xbf16, #tpu.memory_space<vmem>>, vector<1x4x4x64xbf16>
    %66 = tpu.concatenate %62, %63, %64, %65 in 3 : vector<1x4x4x64xbf16>, vector<1x4x4x64xbf16>, vector<1x4x4x64xbf16>, vector<1x4x4x64xbf16> -> vector<1x4x4x256xbf16>
    %67 = vector.shape_cast %66 : vector<1x4x4x256xbf16> to vector<16x256xbf16>
    %c3 = arith.constant 3 : index
    %c0_87 = arith.constant 0 : index
    %c0_88 = arith.constant 0 : index
    %68 = vector.load %arg2[%c3, %c0_87, %c0_88] : memref<4x256x32xbf16, #tpu.memory_space<vmem>>, vector<1x256x32xbf16>
    %69 = vector.shape_cast %68 : vector<1x256x32xbf16> to vector<256x32xbf16>
    %cst_89 = arith.constant dense<0.000000e+00> : vector<16x32xf32>
    %70 = tpu.matmul %67, %69, %cst_89 {dimension_numbers = #tpu.dot_dimension_numbers<[1], [0], [0], [1], [0, 0, 1, 1], [], []>} : vector<16x256xbf16>, vector<256x32xbf16>, vector<16x32xf32> -> vector<16x32xf32>
    %71 = arith.truncf %70 : vector<16x32xf32> to vector<16x32xbf16>
    %c3_90 = arith.constant 3 : index
    %c0_91 = arith.constant 0 : index
    %c0_92 = arith.constant 0 : index
    %72 = vector.load %arg3[%c3_90, %c0_91, %c0_92] : memref<4x16x32xbf16, #tpu.memory_space<vmem>>, vector<1x16x32xbf16>
    %73 = vector.shape_cast %72 : vector<1x16x32xbf16> to vector<16x32xbf16>
    %74 = vector.shape_cast %71 : vector<16x32xbf16> to vector<1x16x32xbf16>
    tpu.vector_store %arg3[%c3_90, %c0_91, %c0_92], %74 {strides = array<i32>} : memref<4x16x32xbf16, #tpu.memory_space<vmem>>, vector<1x16x32xbf16>,
    %75 = arith.extf %71 : vector<16x32xbf16> to vector<16x32xf32>
    %cst_93 = arith.constant dense<0.000000e+00> : vector<32xf32>
    %76 = vector.multi_reduction <add>, %75, %cst_93 [0] : vector<16x32xf32> to vector<32xf32>
    %77 = vector.shape_cast %76 : vector<32xf32> to vector<1x32xf32>
    %78 = arith.mulf %75, %75 : vector<16x32xf32>
    %cst_94 = arith.constant dense<0.000000e+00> : vector<32xf32>
    %79 = vector.multi_reduction <add>, %78, %cst_94 [0] : vector<16x32xf32> to vector<32xf32>
    %80 = vector.shape_cast %79 : vector<32xf32> to vector<1x32xf32>
    %81 = tpu.concatenate %77, %80 in 0 : vector<1x32xf32>, vector<1x32xf32> -> vector<2x32xf32>
    %82 = arith.addf %61, %81 : vector<2x32xf32>
    %c0_95 = arith.constant 0 : index
    %c0_96 = arith.constant 0 : index
    %c0_97 = arith.constant 0 : index
    %83 = vector.load %arg4[%c0_95, %c0_96, %c0_97] : memref<1x2x32xf32, #tpu.memory_space<vmem>>, vector<1x2x32xf32>
    %84 = vector.shape_cast %83 : vector<1x2x32xf32> to vector<2x32xf32>
    %85 = vector.shape_cast %82 : vector<2x32xf32> to vector<1x2x32xf32>
    tpu.vector_store %arg4[%c0_95, %c0_96, %c0_97], %85 {strides = array<i32>} : memref<1x2x32xf32, #tpu.memory_space<vmem>>, vector<1x2x32xf32>,
    return
  }
  func.func @transform_0(%arg0: i32) -> (i32, i32, i32, i32) {
    %c0_i32 = arith.constant 0 : i32
    %c0_i32_0 = arith.constant 0 : i32
    %c0_i32_1 = arith.constant 0 : i32
    %c0_i32_2 = arith.constant 0 : i32
    return %arg0, %c0_i32, %c0_i32_0, %c0_i32_1 : i32, i32, i32, i32
  }
  func.func @transform_1(%arg0: i32) -> (i32, i32, i32) {
    %c0_i32 = arith.constant 0 : i32
    %c0_i32_0 = arith.constant 0 : i32
    %c0_i32_1 = arith.constant 0 : i32
    %c0_i32_2 = arith.constant 0 : i32
    return %c0_i32, %c0_i32_0, %c0_i32_1 : i32, i32, i32
  }
  func.func @transform_2(%arg0: i32) -> (i32, i32, i32) {
    %c0_i32 = arith.constant 0 : i32
    %c0_i32_0 = arith.constant 0 : i32
    %c0_i32_1 = arith.constant 0 : i32
    return %c0_i32, %arg0, %c0_i32_0 : i32, i32, i32
  }
  func.func @transform_3(%arg0: i32) -> (i32, i32, i32) {
    %c0_i32 = arith.constant 0 : i32
    %c0_i32_0 = arith.constant 0 : i32
    %c0_i32_1 = arith.constant 0 : i32
    return %arg0, %c0_i32, %c0_i32_0 : i32, i32, i32
  }
}

module attributes {stable_mosaic.version = 11 : i64} {
  func.func @scale_shift_relu_kernel(%arg0: i32, %arg1: memref<32x128xbf16, #tpu.memory_space<vmem>>, %arg2: memref<1x128xf32, #tpu.memory_space<vmem>>, %arg3: memref<1x128xf32, #tpu.memory_space<vmem>>, %arg4: memref<32x128xbf16, #tpu.memory_space<vmem>>) attributes {dimension_semantics = [#tpu.dimension_semantics<parallel>], iteration_bounds = array<i64: 1>, scalar_prefetch = 0 : i64, scratch_operands = 0 : i64, tpu.core_type = #tpu.core_type<tc>, window_params = [{transform_indices = @transform_0, window_bounds = array<i64: 32, 128>}, {pipeline_mode = #tpu.pipeline_mode<synchronous>, transform_indices = @transform_1, window_bounds = array<i64: 1, 128>}, {pipeline_mode = #tpu.pipeline_mode<synchronous>, transform_indices = @transform_2, window_bounds = array<i64: 1, 128>}, {transform_indices = @transform_3, window_bounds = array<i64: 32, 128>}]} {
    %c0 = arith.constant 0 : index
    %c0_0 = arith.constant 0 : index
    %0 = vector.load %arg1[%c0, %c0_0] : memref<32x128xbf16, #tpu.memory_space<vmem>>, vector<32x128xbf16>
    %1 = arith.extf %0 : vector<32x128xbf16> to vector<32x128xf32>
    %c0_1 = arith.constant 0 : index
    %c0_2 = arith.constant 0 : index
    %2 = vector.load %arg2[%c0_1, %c0_2] : memref<1x128xf32, #tpu.memory_space<vmem>>, vector<1x128xf32>
    %3 = vector.broadcast %2 : vector<1x128xf32> to vector<32x128xf32>
    %4 = arith.mulf %1, %3 : vector<32x128xf32>
    %c0_3 = arith.constant 0 : index
    %c0_4 = arith.constant 0 : index
    %5 = vector.load %arg3[%c0_3, %c0_4] : memref<1x128xf32, #tpu.memory_space<vmem>>, vector<1x128xf32>
    %6 = vector.broadcast %5 : vector<1x128xf32> to vector<32x128xf32>
    %7 = arith.addf %4, %6 : vector<32x128xf32>
    %cst = arith.constant 0.000000e+00 : f32
    %8 = vector.broadcast %cst : f32 to vector<32x128xf32>
    %9 = arith.maximumf %7, %8 : vector<32x128xf32>
    %10 = arith.truncf %9 : vector<32x128xf32> to vector<32x128xbf16>
    %c0_5 = arith.constant 0 : index
    %c0_6 = arith.constant 0 : index
    %11 = vector.load %arg4[%c0_5, %c0_6] : memref<32x128xbf16, #tpu.memory_space<vmem>>, vector<32x128xbf16>
    tpu.vector_store %arg4[%c0_5, %c0_6], %10 {strides = array<i32>} : memref<32x128xbf16, #tpu.memory_space<vmem>>, vector<32x128xbf16>,
    return
  }
  func.func @transform_0(%arg0: i32) -> (i32, i32) {
    %c0_i32 = arith.constant 0 : i32
    %c0_i32_0 = arith.constant 0 : i32
    return %arg0, %c0_i32 : i32, i32
  }
  func.func @transform_1(%arg0: i32) -> (i32, i32) {
    %c0_i32 = arith.constant 0 : i32
    %c0_i32_0 = arith.constant 0 : i32
    %c0_i32_1 = arith.constant 0 : i32
    return %c0_i32, %c0_i32_0 : i32, i32
  }
  func.func @transform_2(%arg0: i32) -> (i32, i32) {
    %c0_i32 = arith.constant 0 : i32
    %c0_i32_0 = arith.constant 0 : i32
    %c0_i32_1 = arith.constant 0 : i32
    return %c0_i32, %c0_i32_0 : i32, i32
  }
  func.func @transform_3(%arg0: i32) -> (i32, i32) {
    %c0_i32 = arith.constant 0 : i32
    %c0_i32_0 = arith.constant 0 : i32
    return %arg0, %c0_i32 : i32, i32
  }
}

module attributes {stable_mosaic.version = 11 : i64} {
  func.func @kernel(%arg0: i32, %arg1: memref<1x10x10x32xbf16, #tpu.memory_space<vmem>>, %arg2: memref<4x128x128xbf16, #tpu.memory_space<vmem>>, %arg3: memref<4x64x128xf32, #tpu.memory_space<vmem>>) attributes {dimension_semantics = [#tpu.dimension_semantics<parallel>], iteration_bounds = array<i64: 2>, scalar_prefetch = 0 : i64, scratch_operands = 0 : i64, tpu.core_type = #tpu.core_type<tc>, window_params = [{transform_indices = @transform_0, window_bounds = array<i64: 1, 10, 10, 32>}, {pipeline_mode = #tpu.pipeline_mode<synchronous>, transform_indices = @transform_1, window_bounds = array<i64: 4, 128, 128>}, {transform_indices = @transform_2, window_bounds = array<i64: 4, 64, 128>}]} {
    %c0 = arith.constant 0 : index
    %c1 = arith.constant 1 : index
    %c1_0 = arith.constant 1 : index
    %c0_1 = arith.constant 0 : index
    %0 = vector.load %arg1[%c0, %c1, %c1_0, %c0_1] : memref<1x10x10x32xbf16, #tpu.memory_space<vmem>>, vector<1x8x8x32xbf16>
    %c0_2 = arith.constant 0 : index
    %c1_3 = arith.constant 1 : index
    %c0_4 = arith.constant 0 : index
    %c0_5 = arith.constant 0 : index
    %1 = vector.load %arg1[%c0_2, %c1_3, %c0_4, %c0_5] : memref<1x10x10x32xbf16, #tpu.memory_space<vmem>>, vector<1x8x8x32xbf16>
    %c0_6 = arith.constant 0 : index
    %c0_7 = arith.constant 0 : index
    %c1_8 = arith.constant 1 : index
    %c0_9 = arith.constant 0 : index
    %2 = vector.load %arg1[%c0_6, %c0_7, %c1_8, %c0_9] : memref<1x10x10x32xbf16, #tpu.memory_space<vmem>>, vector<1x8x8x32xbf16>
    %c0_10 = arith.constant 0 : index
    %c0_11 = arith.constant 0 : index
    %c0_12 = arith.constant 0 : index
    %c0_13 = arith.constant 0 : index
    %3 = vector.load %arg1[%c0_10, %c0_11, %c0_12, %c0_13] : memref<1x10x10x32xbf16, #tpu.memory_space<vmem>>, vector<1x8x8x32xbf16>
    %4 = tpu.concatenate %0, %1, %2, %3 in 3 : vector<1x8x8x32xbf16>, vector<1x8x8x32xbf16>, vector<1x8x8x32xbf16>, vector<1x8x8x32xbf16> -> vector<1x8x8x128xbf16>
    %5 = vector.shape_cast %4 : vector<1x8x8x128xbf16> to vector<64x128xbf16>
    %c0_14 = arith.constant 0 : index
    %c0_15 = arith.constant 0 : index
    %c0_16 = arith.constant 0 : index
    %6 = vector.load %arg2[%c0_14, %c0_15, %c0_16] : memref<4x128x128xbf16, #tpu.memory_space<vmem>>, vector<1x128x128xbf16>
    %7 = vector.shape_cast %6 : vector<1x128x128xbf16> to vector<128x128xbf16>
    %cst = arith.constant dense<0.000000e+00> : vector<64x128xf32>
    %8 = tpu.matmul %5, %7, %cst {dimension_numbers = #tpu.dot_dimension_numbers<[1], [0], [0], [1], [0, 0, 1, 1], [], []>} : vector<64x128xbf16>, vector<128x128xbf16>, vector<64x128xf32> -> vector<64x128xf32>
    %9 = math.tanh %8 : vector<64x128xf32>
    %c0_17 = arith.constant 0 : index
    %c0_18 = arith.constant 0 : index
    %c0_19 = arith.constant 0 : index
    %10 = vector.load %arg3[%c0_17, %c0_18, %c0_19] : memref<4x64x128xf32, #tpu.memory_space<vmem>>, vector<1x64x128xf32>
    %11 = vector.shape_cast %10 : vector<1x64x128xf32> to vector<64x128xf32>
    %12 = vector.shape_cast %9 : vector<64x128xf32> to vector<1x64x128xf32>
    tpu.vector_store %arg3[%c0_17, %c0_18, %c0_19], %12 {strides = array<i32>} : memref<4x64x128xf32, #tpu.memory_space<vmem>>, vector<1x64x128xf32>,
    %c0_20 = arith.constant 0 : index
    %c1_21 = arith.constant 1 : index
    %c2 = arith.constant 2 : index
    %c0_22 = arith.constant 0 : index
    %13 = vector.load %arg1[%c0_20, %c1_21, %c2, %c0_22] : memref<1x10x10x32xbf16, #tpu.memory_space<vmem>>, vector<1x8x8x32xbf16>
    %c0_23 = arith.constant 0 : index
    %c1_24 = arith.constant 1 : index
    %c1_25 = arith.constant 1 : index
    %c0_26 = arith.constant 0 : index
    %14 = vector.load %arg1[%c0_23, %c1_24, %c1_25, %c0_26] : memref<1x10x10x32xbf16, #tpu.memory_space<vmem>>, vector<1x8x8x32xbf16>
    %c0_27 = arith.constant 0 : index
    %c0_28 = arith.constant 0 : index
    %c2_29 = arith.constant 2 : index
    %c0_30 = arith.constant 0 : index
    %15 = vector.load %arg1[%c0_27, %c0_28, %c2_29, %c0_30] : memref<1x10x10x32xbf16, #tpu.memory_space<vmem>>, vector<1x8x8x32xbf16>
    %c0_31 = arith.constant 0 : index
    %c0_32 = arith.constant 0 : index
    %c1_33 = arith.constant 1 : index
    %c0_34 = arith.constant 0 : index
    %16 = vector.load %arg1[%c0_31, %c0_32, %c1_33, %c0_34] : memref<1x10x10x32xbf16, #tpu.memory_space<vmem>>, vector<1x8x8x32xbf16>
    %17 = tpu.concatenate %13, %14, %15, %16 in 3 : vector<1x8x8x32xbf16>, vector<1x8x8x32xbf16>, vector<1x8x8x32xbf16>, vector<1x8x8x32xbf16> -> vector<1x8x8x128xbf16>
    %18 = vector.shape_cast %17 : vector<1x8x8x128xbf16> to vector<64x128xbf16>
    %c1_35 = arith.constant 1 : index
    %c0_36 = arith.constant 0 : index
    %c0_37 = arith.constant 0 : index
    %19 = vector.load %arg2[%c1_35, %c0_36, %c0_37] : memref<4x128x128xbf16, #tpu.memory_space<vmem>>, vector<1x128x128xbf16>
    %20 = vector.shape_cast %19 : vector<1x128x128xbf16> to vector<128x128xbf16>
    %cst_38 = arith.constant dense<0.000000e+00> : vector<64x128xf32>
    %21 = tpu.matmul %18, %20, %cst_38 {dimension_numbers = #tpu.dot_dimension_numbers<[1], [0], [0], [1], [0, 0, 1, 1], [], []>} : vector<64x128xbf16>, vector<128x128xbf16>, vector<64x128xf32> -> vector<64x128xf32>
    %22 = math.tanh %21 : vector<64x128xf32>
    %c1_39 = arith.constant 1 : index
    %c0_40 = arith.constant 0 : index
    %c0_41 = arith.constant 0 : index
    %23 = vector.load %arg3[%c1_39, %c0_40, %c0_41] : memref<4x64x128xf32, #tpu.memory_space<vmem>>, vector<1x64x128xf32>
    %24 = vector.shape_cast %23 : vector<1x64x128xf32> to vector<64x128xf32>
    %25 = vector.shape_cast %22 : vector<64x128xf32> to vector<1x64x128xf32>
    tpu.vector_store %arg3[%c1_39, %c0_40, %c0_41], %25 {strides = array<i32>} : memref<4x64x128xf32, #tpu.memory_space<vmem>>, vector<1x64x128xf32>,
    %c0_42 = arith.constant 0 : index
    %c2_43 = arith.constant 2 : index
    %c1_44 = arith.constant 1 : index
    %c0_45 = arith.constant 0 : index
    %26 = vector.load %arg1[%c0_42, %c2_43, %c1_44, %c0_45] : memref<1x10x10x32xbf16, #tpu.memory_space<vmem>>, vector<1x8x8x32xbf16>
    %c0_46 = arith.constant 0 : index
    %c2_47 = arith.constant 2 : index
    %c0_48 = arith.constant 0 : index
    %c0_49 = arith.constant 0 : index
    %27 = vector.load %arg1[%c0_46, %c2_47, %c0_48, %c0_49] : memref<1x10x10x32xbf16, #tpu.memory_space<vmem>>, vector<1x8x8x32xbf16>
    %c0_50 = arith.constant 0 : index
    %c1_51 = arith.constant 1 : index
    %c1_52 = arith.constant 1 : index
    %c0_53 = arith.constant 0 : index
    %28 = vector.load %arg1[%c0_50, %c1_51, %c1_52, %c0_53] : memref<1x10x10x32xbf16, #tpu.memory_space<vmem>>, vector<1x8x8x32xbf16>
    %c0_54 = arith.constant 0 : index
    %c1_55 = arith.constant 1 : index
    %c0_56 = arith.constant 0 : index
    %c0_57 = arith.constant 0 : index
    %29 = vector.load %arg1[%c0_54, %c1_55, %c0_56, %c0_57] : memref<1x10x10x32xbf16, #tpu.memory_space<vmem>>, vector<1x8x8x32xbf16>
    %30 = tpu.concatenate %26, %27, %28, %29 in 3 : vector<1x8x8x32xbf16>, vector<1x8x8x32xbf16>, vector<1x8x8x32xbf16>, vector<1x8x8x32xbf16> -> vector<1x8x8x128xbf16>
    %31 = vector.shape_cast %30 : vector<1x8x8x128xbf16> to vector<64x128xbf16>
    %c2_58 = arith.constant 2 : index
    %c0_59 = arith.constant 0 : index
    %c0_60 = arith.constant 0 : index
    %32 = vector.load %arg2[%c2_58, %c0_59, %c0_60] : memref<4x128x128xbf16, #tpu.memory_space<vmem>>, vector<1x128x128xbf16>
    %33 = vector.shape_cast %32 : vector<1x128x128xbf16> to vector<128x128xbf16>
    %cst_61 = arith.constant dense<0.000000e+00> : vector<64x128xf32>
    %34 = tpu.matmul %31, %33, %cst_61 {dimension_numbers = #tpu.dot_dimension_numbers<[1], [0], [0], [1], [0, 0, 1, 1], [], []>} : vector<64x128xbf16>, vector<128x128xbf16>, vector<64x128xf32> -> vector<64x128xf32>
    %35 = math.tanh %34 : vector<64x128xf32>
    %c2_62 = arith.constant 2 : index
    %c0_63 = arith.constant 0 : index
    %c0_64 = arith.constant 0 : index
    %36 = vector.load %arg3[%c2_62, %c0_63, %c0_64] : memref<4x64x128xf32, #tpu.memory_space<vmem>>, vector<1x64x128xf32>
    %37 = vector.shape_cast %36 : vector<1x64x128xf32> to vector<64x128xf32>
    %38 = vector.shape_cast %35 : vector<64x128xf32> to vector<1x64x128xf32>
    tpu.vector_store %arg3[%c2_62, %c0_63, %c0_64], %38 {strides = array<i32>} : memref<4x64x128xf32, #tpu.memory_space<vmem>>, vector<1x64x128xf32>,
    %c0_65 = arith.constant 0 : index
    %c2_66 = arith.constant 2 : index
    %c2_67 = arith.constant 2 : index
    %c0_68 = arith.constant 0 : index
    %39 = vector.load %arg1[%c0_65, %c2_66, %c2_67, %c0_68] : memref<1x10x10x32xbf16, #tpu.memory_space<vmem>>, vector<1x8x8x32xbf16>
    %c0_69 = arith.constant 0 : index
    %c2_70 = arith.constant 2 : index
    %c1_71 = arith.constant 1 : index
    %c0_72 = arith.constant 0 : index
    %40 = vector.load %arg1[%c0_69, %c2_70, %c1_71, %c0_72] : memref<1x10x10x32xbf16, #tpu.memory_space<vmem>>, vector<1x8x8x32xbf16>
    %c0_73 = arith.constant 0 : index
    %c1_74 = arith.constant 1 : index
    %c2_75 = arith.constant 2 : index
    %c0_76 = arith.constant 0 : index
    %41 = vector.load %arg1[%c0_73, %c1_74, %c2_75, %c0_76] : memref<1x10x10x32xbf16, #tpu.memory_space<vmem>>, vector<1x8x8x32xbf16>
    %c0_77 = arith.constant 0 : index
    %c1_78 = arith.constant 1 : index
    %c1_79 = arith.constant 1 : index
    %c0_80 = arith.constant 0 : index
    %42 = vector.load %arg1[%c0_77, %c1_78, %c1_79, %c0_80] : memref<1x10x10x32xbf16, #tpu.memory_space<vmem>>, vector<1x8x8x32xbf16>
    %43 = tpu.concatenate %39, %40, %41, %42 in 3 : vector<1x8x8x32xbf16>, vector<1x8x8x32xbf16>, vector<1x8x8x32xbf16>, vector<1x8x8x32xbf16> -> vector<1x8x8x128xbf16>
    %44 = vector.shape_cast %43 : vector<1x8x8x128xbf16> to vector<64x128xbf16>
    %c3 = arith.constant 3 : index
    %c0_81 = arith.constant 0 : index
    %c0_82 = arith.constant 0 : index
    %45 = vector.load %arg2[%c3, %c0_81, %c0_82] : memref<4x128x128xbf16, #tpu.memory_space<vmem>>, vector<1x128x128xbf16>
    %46 = vector.shape_cast %45 : vector<1x128x128xbf16> to vector<128x128xbf16>
    %cst_83 = arith.constant dense<0.000000e+00> : vector<64x128xf32>
    %47 = tpu.matmul %44, %46, %cst_83 {dimension_numbers = #tpu.dot_dimension_numbers<[1], [0], [0], [1], [0, 0, 1, 1], [], []>} : vector<64x128xbf16>, vector<128x128xbf16>, vector<64x128xf32> -> vector<64x128xf32>
    %48 = math.tanh %47 : vector<64x128xf32>
    %c3_84 = arith.constant 3 : index
    %c0_85 = arith.constant 0 : index
    %c0_86 = arith.constant 0 : index
    %49 = vector.load %arg3[%c3_84, %c0_85, %c0_86] : memref<4x64x128xf32, #tpu.memory_space<vmem>>, vector<1x64x128xf32>
    %50 = vector.shape_cast %49 : vector<1x64x128xf32> to vector<64x128xf32>
    %51 = vector.shape_cast %48 : vector<64x128xf32> to vector<1x64x128xf32>
    tpu.vector_store %arg3[%c3_84, %c0_85, %c0_86], %51 {strides = array<i32>} : memref<4x64x128xf32, #tpu.memory_space<vmem>>, vector<1x64x128xf32>,
    return
  }
  func.func @transform_0(%arg0: i32) -> (i32, i32, i32, i32) {
    %c0_i32 = arith.constant 0 : i32
    %c0_i32_0 = arith.constant 0 : i32
    %c0_i32_1 = arith.constant 0 : i32
    %c0_i32_2 = arith.constant 0 : i32
    return %arg0, %c0_i32, %c0_i32_0, %c0_i32_1 : i32, i32, i32, i32
  }
  func.func @transform_1(%arg0: i32) -> (i32, i32, i32) {
    %c0_i32 = arith.constant 0 : i32
    %c0_i32_0 = arith.constant 0 : i32
    %c0_i32_1 = arith.constant 0 : i32
    %c0_i32_2 = arith.constant 0 : i32
    return %c0_i32, %c0_i32_0, %c0_i32_1 : i32, i32, i32
  }
  func.func @transform_2(%arg0: i32) -> (i32, i32, i32) {
    %c0_i32 = arith.constant 0 : i32
    %c0_i32_0 = arith.constant 0 : i32
    %c0_i32_1 = arith.constant 0 : i32
    return %c0_i32, %arg0, %c0_i32_0 : i32, i32, i32
  }
}

</mosaic_0001>

<llo_original>
// kernel: generator_forward.6
$region0: #{generator_forward.6}
  #allocation0 [shape = 'u32[]', space=smem, size = 0x4, offset = 0x4, fixed_abs, tag = 'smem constant byte address 0x4 - core index']
  #allocation1 [shape = 'u32[72,128]{1,0:T(1,128)}', space=vmem, size = 0x9000, scoped, tag = 'internal scratch']
  %s0 = inlined_call_operand.vmem [shape: bf16[16,1024], index: 0, kind: input, shape index: {}]
  %s1 = inlined_call_operand.vmem [shape: f32[1,1024], index: 1, kind: input, shape index: {}]
  %s2 = inlined_call_operand.vmem [shape: f32[1,1024], index: 2, kind: input, shape index: {}]
  %s3 = inlined_call_operand.vmem [shape: bf16[16,1024], index: 3, kind: output, shape index: {}]
  %s4 = sld [smem:[#allocation0]]
  $region22: #{generator_forward.6} parent=0
    _
  %s6 = ssub.s32 1, %s4
  %s7 = scalar_select 0, %s6, %s4
  // Predicated region
  $region2: #{generator_forward.6} parent=0 // pred_check
    _
  $region3: #{generator_forward.6} parent=0 // pred_check_branch
    %9 = sbr.rel (0) target = $region5
  $region4: #{generator_forward.6} parent=0 // pred_region
    _
  $region5: #{generator_forward.6} parent=0 // pred_fallthru
    _
  // Predicated region
  $region6: #{generator_forward.6} parent=0 // pred_check
    _
  $region7: #{generator_forward.6} parent=0 // pred_check_branch
    %11 = sbr.rel (0) target = $region9
  $region8: #{generator_forward.6} parent=0 // pred_region
    _
  $region9: #{generator_forward.6} parent=0 // pred_fallthru
    _
  // Predicated region
  $region10: #{generator_forward.6} parent=0 // pred_check
    _
  $region11: #{generator_forward.6} parent=0 // pred_check_branch
    %13 = sbr.rel (0) target = $region13
  $region12: #{generator_forward.6} parent=0 // pred_region
    _
  $region13: #{generator_forward.6} parent=0 // pred_fallthru
    _
  %v14 = vld [vmem:[%s0] sm:$0xff]
  %v15 = vld [vmem:[%s0 + $0x8] sm:$0xff]
  %v16 = vld [vmem:[%s0 + $0x10] sm:$0xff]
  %v17 = vld [vmem:[%s0 + $0x18] sm:$0xff]
  %v18 = vld [vmem:[%s0 + $0x20] sm:$0xff]
  %v19 = vld [vmem:[%s0 + $0x28] sm:$0xff]
  %v20 = vld [vmem:[%s0 + $0x30] sm:$0xff]
  %v21 = vld [vmem:[%s0 + $0x38] sm:$0xff]
  %v22 = vunpack.c.l.bf16 %v14
  %v23 = vunpack.c.h.bf16 %v14
  %v24 = vunpack.c.l.bf16 %v15
  %v25 = vunpack.c.h.bf16 %v15
  %v26 = vunpack.c.l.bf16 %v16
  %v27 = vunpack.c.h.bf16 %v16
  %v28 = vunpack.c.l.bf16 %v17
  %v29 = vunpack.c.h.bf16 %v17
  %v30 = vunpack.c.l.bf16 %v18
  %v31 = vunpack.c.h.bf16 %v18
  %v32 = vunpack.c.l.bf16 %v19
  %v33 = vunpack.c.h.bf16 %v19
  %v34 = vunpack.c.l.bf16 %v20
  %v35 = vunpack.c.h.bf16 %v20
  %v36 = vunpack.c.l.bf16 %v21
  %v37 = vunpack.c.h.bf16 %v21
  %v38 = vld [vmem:[%s1] sm:$0xff]
  %v40 = vperm.slane %v38, 0
  %v41 = vperm.slane %v38, 1
  %v42 = vperm.slane %v38, 2
  %v43 = vperm.slane %v38, 3
  %v44 = vperm.slane %v38, 4
  %v45 = vperm.slane %v38, 5
  %v46 = vperm.slane %v38, 6
  %v47 = vperm.slane %v38, 7
  %v56 = vmul.f32 %v22, %v40
  %v57 = vmul.f32 %v23, %v41
  %v58 = vmul.f32 %v24, %v42
  %v59 = vmul.f32 %v25, %v43
  %v60 = vmul.f32 %v26, %v44
  %v61 = vmul.f32 %v27, %v45
  %v62 = vmul.f32 %v28, %v46
  %v63 = vmul.f32 %v29, %v47
  %v64 = vmul.f32 %v30, %v40
  %v65 = vmul.f32 %v31, %v41
  %v66 = vmul.f32 %v32, %v42
  %v67 = vmul.f32 %v33, %v43
  %v68 = vmul.f32 %v34, %v44
  %v69 = vmul.f32 %v35, %v45
  %v70 = vmul.f32 %v36, %v46
  %v71 = vmul.f32 %v37, %v47
  %v72 = vld [vmem:[%s2] sm:$0xff]
  %v74 = vperm.slane %v72, 0
  %v75 = vperm.slane %v72, 1
  %v76 = vperm.slane %v72, 2
  %v77 = vperm.slane %v72, 3
  %v78 = vperm.slane %v72, 4
  %v79 = vperm.slane %v72, 5
  %v80 = vperm.slane %v72, 6
  %v81 = vperm.slane %v72, 7
  %v90 = vadd.f32 %v56, %v74
  %v91 = vadd.f32 %v57, %v75
  %v92 = vadd.f32 %v58, %v76
  %v93 = vadd.f32 %v59, %v77
  %v94 = vadd.f32 %v60, %v78
  %v95 = vadd.f32 %v61, %v79
  %v96 = vadd.f32 %v62, %v80
  %v97 = vadd.f32 %v63, %v81
  %v98 = vadd.f32 %v64, %v74
  %v99 = vadd.f32 %v65, %v75
  %v100 = vadd.f32 %v66, %v76
  %v101 = vadd.f32 %v67, %v77
  %v102 = vadd.f32 %v68, %v78
  %v103 = vadd.f32 %v69, %v79
  %v104 = vadd.f32 %v70, %v80
  %v105 = vadd.f32 %v71, %v81
  %v106 = vmax.f32 %v90, 0.0
  %v107 = vmax.f32 %v91, 0.0
  %v108 = vmax.f32 %v92, 0.0
  %v109 = vmax.f32 %v93, 0.0
  %v110 = vmax.f32 %v94, 0.0
  %v111 = vmax.f32 %v95, 0.0
  %v112 = vmax.f32 %v96, 0.0
  %v113 = vmax.f32 %v97, 0.0
  %v114 = vmax.f32 %v98, 0.0
  %v115 = vmax.f32 %v99, 0.0
  %v116 = vmax.f32 %v100, 0.0
  %v117 = vmax.f32 %v101, 0.0
  %v118 = vmax.f32 %v102, 0.0
  %v119 = vmax.f32 %v103, 0.0
  %v120 = vmax.f32 %v104, 0.0
  %v121 = vmax.f32 %v105, 0.0
  %v122 = vpack.c.bf16 %v107, %v106
  %v123 = vpack.c.bf16 %v109, %v108
  %v124 = vpack.c.bf16 %v111, %v110
  %v125 = vpack.c.bf16 %v113, %v112
  %v126 = vpack.c.bf16 %v115, %v114
  %v127 = vpack.c.bf16 %v117, %v116
  %v128 = vpack.c.bf16 %v119, %v118
  %v129 = vpack.c.bf16 %v121, %v120
  %130 = vst [vmem:[%s3] sm:$0xff] %v122
  %131 = vst [vmem:[%s3 + $0x8] sm:$0xff] %v123
  %132 = vst [vmem:[%s3 + $0x10] sm:$0xff] %v124
  %133 = vst [vmem:[%s3 + $0x18] sm:$0xff] %v125
  %134 = vst [vmem:[%s3 + $0x20] sm:$0xff] %v126
  %135 = vst [vmem:[%s3 + $0x28] sm:$0xff] %v127
  %136 = vst [vmem:[%s3 + $0x30] sm:$0xff] %v128
  %137 = vst [vmem:[%s3 + $0x38] sm:$0xff] %v129
  // Predicated region
  $region14: #{generator_forward.6} parent=0 // pred_check
    _
  $region15: #{generator_forward.6} parent=0 // pred_check_branch
    %139 = sbr.rel (0) target = $region17
  $region16: #{generator_forward.6} parent=0 // pred_region
    _
  $region17: #{generator_forward.6} parent=0 // pred_fallthru
    _
  // Predicated region
  $region18: #{generator_forward.6} parent=0 // pred_check
    _
  $region19: #{generator_forward.6} parent=0 // pred_check_branch
    %141 = sbr.rel (0) target = $region21
  $region20: #{generator_forward.6} parent=0 // pred_region
    _
  $region21: #{generator_forward.6} parent=0 // pred_fallthru
    _

// kernel: generator_forward.5
$region0: #{generator_forward.5}
  #allocation0 [shape = 'u32[]', space=smem, size = 0x4, offset = 0x4, fixed_abs, tag = 'smem constant byte address 0x4 - core index']
  #allocation1 [shape = 'u32[72,128]{1,0:T(1,128)}', space=vmem, size = 0x9000, scoped, tag = 'internal scratch']
  %s0 = inlined_call_operand.vmem [shape: bf16[2,32], index: 0, kind: input, shape index: {}]
  %s1 = inlined_call_operand.vmem [shape: bf16[32,1024], index: 1, kind: input, shape index: {}]
  %s2 = inlined_call_operand.vmem [shape: bf16[2,1024], index: 2, kind: output, shape index: {0}]
  %s3 = inlined_call_operand.vmem [shape: f32[2,1024], index: 3, kind: output, shape index: {1}]
  %4 = xla_tuple %s2, %s3
  %s5 = sld [smem:[#allocation0]]
  $region26: #{generator_forward.5} parent=0
    _
  %s7 = ssub.s32 1, %s5
  %s8 = scalar_select 0, %s7, %s5
  // Predicated region
  $region2: #{generator_forward.5} parent=0 // pred_check
    _
  $region3: #{generator_forward.5} parent=0 // pred_check_branch
    %10 = sbr.rel (0) target = $region5
  $region4: #{generator_forward.5} parent=0 // pred_region
    _
  $region5: #{generator_forward.5} parent=0 // pred_fallthru
    _
  // Predicated region
  $region6: #{generator_forward.5} parent=0 // pred_check
    _
  $region7: #{generator_forward.5} parent=0 // pred_check_branch
    %12 = sbr.rel (0) target = $region9
  $region8: #{generator_forward.5} parent=0 // pred_region
    _
  $region9: #{generator_forward.5} parent=0 // pred_fallthru
    _
  %v14 = vld [vmem:[%s0] sm:$0x1]
  %v15 = vld [vmem:[%s1] sm:$0xff]
  %v16 = vld [vmem:[%s1 + $0x8] sm:$0xff]
  %v17 = vld [vmem:[%s1 + $0x10] sm:$0xff]
  %v18 = vld [vmem:[%s1 + $0x18] sm:$0xff]
  %v19 = vld [vmem:[%s1 + $0x20] sm:$0xff]
  %v20 = vld [vmem:[%s1 + $0x28] sm:$0xff]
  %v21 = vld [vmem:[%s1 + $0x30] sm:$0xff]
  %v22 = vld [vmem:[%s1 + $0x38] sm:$0xff]
  %v23 = vld [vmem:[%s1 + $0x40] sm:$0xff]
  %v24 = vld [vmem:[%s1 + $0x48] sm:$0xff]
  %v25 = vld [vmem:[%s1 + $0x50] sm:$0xff]
  %v26 = vld [vmem:[%s1 + $0x58] sm:$0xff]
  %v27 = vld [vmem:[%s1 + $0x60] sm:$0xff]
  %v28 = vld [vmem:[%s1 + $0x68] sm:$0xff]
  %v29 = vld [vmem:[%s1 + $0x70] sm:$0xff]
  %v30 = vld [vmem:[%s1 + $0x78] sm:$0xff]
  %v47 = vunpack.c.l.b16 %v15
  %v48 = vunpack.c.h.b16 %v15
  %v49 = vunpack.c.l.b16 %v16
  %v50 = vunpack.c.h.b16 %v16
  %v51 = vunpack.c.l.b16 %v17
  %v52 = vunpack.c.h.b16 %v17
  %v53 = vunpack.c.l.b16 %v18
  %v54 = vunpack.c.h.b16 %v18
  %v55 = vunpack.c.l.b16 %v19
  %v56 = vunpack.c.h.b16 %v19
  %v57 = vunpack.c.l.b16 %v20
  %v58 = vunpack.c.h.b16 %v20
  %v59 = vunpack.c.l.b16 %v21
  %v60 = vunpack.c.h.b16 %v21
  %v61 = vunpack.c.l.b16 %v22
  %v62 = vunpack.c.h.b16 %v22
  %v63 = vunpack.c.l.b16 %v23
  %v64 = vunpack.c.h.b16 %v23
  %v65 = vunpack.c.l.b16 %v24
  %v66 = vunpack.c.h.b16 %v24
  %v67 = vunpack.c.l.b16 %v25
  %v68 = vunpack.c.h.b16 %v25
  %v69 = vunpack.c.l.b16 %v26
  %v70 = vunpack.c.h.b16 %v26
  %v71 = vunpack.c.l.b16 %v27
  %v72 = vunpack.c.h.b16 %v27
  %v73 = vunpack.c.l.b16 %v28
  %v74 = vunpack.c.h.b16 %v28
  %v75 = vunpack.c.l.b16 %v29
  %v76 = vunpack.c.h.b16 %v29
  %v77 = vunpack.c.l.b16 %v30
  %v78 = vunpack.c.h.b16 %v30
  %v79 = vpack.c.b16 %v55, %v47
  %v80 = vpack.c.b16 %v56, %v48
  %v81 = vpack.c.b16 %v57, %v49
  %v82 = vpack.c.b16 %v58, %v50
  %v83 = vpack.c.b16 %v59, %v51
  %v84 = vpack.c.b16 %v60, %v52
  %v85 = vpack.c.b16 %v61, %v53
  %v86 = vpack.c.b16 %v62, %v54
  %v87 = vpack.c.b16 %v71, %v63
  %v88 = vpack.c.b16 %v72, %v64
  %v89 = vpack.c.b16 %v73, %v65
  %v90 = vpack.c.b16 %v74, %v66
  %v91 = vpack.c.b16 %v75, %v67
  %v92 = vpack.c.b16 %v76, %v68
  %v93 = vpack.c.b16 %v77, %v69
  %v94 = vpack.c.b16 %v78, %v70
  %vm111 = vcmask 261120
  %v113 = vsel %vm111, %v14, 0
  %115 = vmatpush.bf16.msra.mxu0 0
  %116 = vmatpush.bf16.msra.mxu0 0
  %117 = vmatpush.bf16.msra.mxu0 0
  %118 = vmatpush.bf16.msra.mxu0 0
  %119 = vmatpush.bf16.msra.mxu0 0
  %120 = vmatpush.bf16.msra.mxu0 0
  %121 = vmatpush.bf16.msra.mxu0 %v87
  %122 = vmatpush.bf16.msra.mxu0 %v79
  %123 = vmatmul.bf16.gmra.mxu0 %v113
  %v124 = vpop.f32.mrf.mxu0
  %v125 = vadd.f32 0.0, %v124
  %v126 = vpop.f32.mrf.mxu0
  %127 = vdwg.mxu0
  %128 = vmatpush.bf16.msra.mxu0 0
  %129 = vmatpush.bf16.msra.mxu0 0
  %130 = vmatpush.bf16.msra.mxu0 0
  %131 = vmatpush.bf16.msra.mxu0 0
  %132 = vmatpush.bf16.msra.mxu0 0
  %133 = vmatpush.bf16.msra.mxu0 0
  %134 = vmatpush.bf16.msra.mxu0 %v88
  %135 = vmatpush.bf16.msra.mxu0 %v80
  %136 = vmatmul.bf16.gmra.mxu0 %v113
  %v137 = vpop.f32.mrf.mxu0
  %v138 = vadd.f32 0.0, %v137
  %v139 = vpop.f32.mrf.mxu0
  %140 = vdwg.mxu0
  %141 = vmatpush.bf16.msra.mxu0 0
  %142 = vmatpush.bf16.msra.mxu0 0
  %143 = vmatpush.bf16.msra.mxu0 0
  %144 = vmatpush.bf16.msra.mxu0 0
  %145 = vmatpush.bf16.msra.mxu0 0
  %146 = vmatpush.bf16.msra.mxu0 0
  %147 = vmatpush.bf16.msra.mxu0 %v89
  %148 = vmatpush.bf16.msra.mxu0 %v81
  %149 = vmatmul.bf16.gmra.mxu0 %v113
  %v150 = vpop.f32.mrf.mxu0
  %v151 = vadd.f32 0.0, %v150
  %v152 = vpop.f32.mrf.mxu0
  %153 = vdwg.mxu0
  %154 = vmatpush.bf16.msra.mxu0 0
  %155 = vmatpush.bf16.msra.mxu0 0
  %156 = vmatpush.bf16.msra.mxu0 0
  %157 = vmatpush.bf16.msra.mxu0 0
  %158 = vmatpush.bf16.msra.mxu0 0
  %159 = vmatpush.bf16.msra.mxu0 0
  %160 = vmatpush.bf16.msra.mxu0 %v90
  %161 = vmatpush.bf16.msra.mxu0 %v82
  %162 = vmatmul.bf16.gmra.mxu0 %v113
  %v163 = vpop.f32.mrf.mxu0
  %v164 = vadd.f32 0.0, %v163
  %v165 = vpop.f32.mrf.mxu0
  %166 = vdwg.mxu0
  %167 = vmatpush.bf16.msra.mxu0 0
  %168 = vmatpush.bf16.msra.mxu0 0
  %169 = vmatpush.bf16.msra.mxu0 0
  %170 = vmatpush.bf16.msra.mxu0 0
  %171 = vmatpush.bf16.msra.mxu0 0
  %172 = vmatpush.bf16.msra.mxu0 0
  %173 = vmatpush.bf16.msra.mxu0 %v91
  %174 = vmatpush.bf16.msra.mxu0 %v83
  %175 = vmatmul.bf16.gmra.mxu0 %v113
  %v176 = vpop.f32.mrf.mxu0
  %v177 = vadd.f32 0.0, %v176
  %v178 = vpop.f32.mrf.mxu0
  %179 = vdwg.mxu0
  %180 = vmatpush.bf16.msra.mxu0 0
  %181 = vmatpush.bf16.msra.mxu0 0
  %182 = vmatpush.bf16.msra.mxu0 0
  %183 = vmatpush.bf16.msra.mxu0 0
  %184 = vmatpush.bf16.msra.mxu0 0
  %185 = vmatpush.bf16.msra.mxu0 0
  %186 = vmatpush.bf16.msra.mxu0 %v92
  %187 = vmatpush.bf16.msra.mxu0 %v84
  %188 = vmatmul.bf16.gmra.mxu0 %v113
  %v189 = vpop.f32.mrf.mxu0
  %v190 = vadd.f32 0.0, %v189
  %v191 = vpop.f32.mrf.mxu0
  %192 = vdwg.mxu0
  %193 = vmatpush.bf16.msra.mxu0 0
  %194 = vmatpush.bf16.msra.mxu0 0
  %195 = vmatpush.bf16.msra.mxu0 0
  %196 = vmatpush.bf16.msra.mxu0 0
  %197 = vmatpush.bf16.msra.mxu0 0
  %198 = vmatpush.bf16.msra.mxu0 0
  %199 = vmatpush.bf16.msra.mxu0 %v93
  %200 = vmatpush.bf16.msra.mxu0 %v85
  %201 = vmatmul.bf16.gmra.mxu0 %v113
  %v202 = vpop.f32.mrf.mxu0
  %v203 = vadd.f32 0.0, %v202
  %v204 = vpop.f32.mrf.mxu0
  %205 = vdwg.mxu0
  %206 = vmatpush.bf16.msra.mxu0 0
  %207 = vmatpush.bf16.msra.mxu0 0
  %208 = vmatpush.bf16.msra.mxu0 0
  %209 = vmatpush.bf16.msra.mxu0 0
  %210 = vmatpush.bf16.msra.mxu0 0
  %211 = vmatpush.bf16.msra.mxu0 0
  %212 = vmatpush.bf16.msra.mxu0 %v94
  %213 = vmatpush.bf16.msra.mxu0 %v86
  %214 = vmatmul.bf16.gmra.mxu0 %v113
  %v215 = vpop.f32.mrf.mxu0
  %v216 = vadd.f32 0.0, %v215
  %v217 = vpop.f32.mrf.mxu0
  %218 = vdwg.mxu0
  %v219 = vpack.c.bf16 %v138, %v125
  %v220 = vpack.c.bf16 %v164, %v151
  %v221 = vpack.c.bf16 %v190, %v177
  %v222 = vpack.c.bf16 %v216, %v203
  %v223 = vunpack.c.l.bf16 %v219
  %v224 = vunpack.c.h.bf16 %v219
  %v225 = vunpack.c.l.bf16 %v220
  %v226 = vunpack.c.h.bf16 %v220
  %v227 = vunpack.c.l.bf16 %v221
  %v228 = vunpack.c.h.bf16 %v221
  %v229 = vunpack.c.l.bf16 %v222
  %v230 = vunpack.c.h.bf16 %v222
  %vm231 = vcmask 1041408
  %v232 = vsel %vm231, %v223, 0.0
  %v233 = vrot.slane %v232, 4
  %v234 = vadd.f32 %v232, %v233
  %v235 = vrot.slane %v234, 2
  %v236 = vadd.f32 %v234, %v235
  %v237 = vrot.slane %v236, 1
  %v238 = vadd.f32 %v236, %v237
  %v239 = vsel %vm231, %v224, 0.0
  %v240 = vrot.slane %v239, 4
  %v241 = vadd.f32 %v239, %v240
  %v242 = vrot.slane %v241, 2
  %v243 = vadd.f32 %v241, %v242
  %v244 = vrot.slane %v243, 1
  %v245 = vadd.f32 %v243, %v244
  %v246 = vsel %vm231, %v225, 0.0
  %v247 = vrot.slane %v246, 4
  %v248 = vadd.f32 %v246, %v247
  %v249 = vrot.slane %v248, 2
  %v250 = vadd.f32 %v248, %v249
  %v251 = vrot.slane %v250, 1
  %v252 = vadd.f32 %v250, %v251
  %v253 = vsel %vm231, %v226, 0.0
  %v254 = vrot.slane %v253, 4
  %v255 = vadd.f32 %v253, %v254
  %v256 = vrot.slane %v255, 2
  %v257 = vadd.f32 %v255, %v256
  %v258 = vrot.slane %v257, 1
  %v259 = vadd.f32 %v257, %v258
  %v260 = vsel %vm231, %v227, 0.0
  %v261 = vrot.slane %v260, 4
  %v262 = vadd.f32 %v260, %v261
  %v263 = vrot.slane %v262, 2
  %v264 = vadd.f32 %v262, %v263
  %v265 = vrot.slane %v264, 1
  %v266 = vadd.f32 %v264, %v265
  %v267 = vsel %vm231, %v228, 0.0
  %v268 = vrot.slane %v267, 4
  %v269 = vadd.f32 %v267, %v268
  %v270 = vrot.slane %v269, 2
  %v271 = vadd.f32 %v269, %v270
  %v272 = vrot.slane %v271, 1
  %v273 = vadd.f32 %v271, %v272
  %v274 = vsel %vm231, %v229, 0.0
  %v275 = vrot.slane %v274, 4
  %v276 = vadd.f32 %v274, %v275
  %v277 = vrot.slane %v276, 2
  %v278 = vadd.f32 %v276, %v277
  %v279 = vrot.slane %v278, 1
  %v280 = vadd.f32 %v278, %v279
  %v281 = vsel %vm231, %v230, 0.0
  %v282 = vrot.slane %v281, 4
  %v283 = vadd.f32 %v281, %v282
  %v284 = vrot.slane %v283, 2
  %v285 = vadd.f32 %v283, %v284
  %v286 = vrot.slane %v285, 1
  %v287 = vadd.f32 %v285, %v286
  %v288 = vmul.f32 %v223, %v223
  %v289 = vmul.f32 %v224, %v224
  %v290 = vmul.f32 %v225, %v225
  %v291 = vmul.f32 %v226, %v226
  %v292 = vmul.f32 %v227, %v227
  %v293 = vmul.f32 %v228, %v228
  %v294 = vmul.f32 %v229, %v229
  %v295 = vmul.f32 %v230, %v230
  %v296 = vsel %vm231, %v288, 0.0
  %v297 = vrot.slane %v296, 4
  %v298 = vadd.f32 %v296, %v297
  %v299 = vrot.slane %v298, 2
  %v300 = vadd.f32 %v298, %v299
  %v301 = vrot.slane %v300, 1
  %v302 = vadd.f32 %v300, %v301
  %v303 = vsel %vm231, %v289, 0.0
  %v304 = vrot.slane %v303, 4
  %v305 = vadd.f32 %v303, %v304
  %v306 = vrot.slane %v305, 2
  %v307 = vadd.f32 %v305, %v306
  %v308 = vrot.slane %v307, 1
  %v309 = vadd.f32 %v307, %v308
  %v310 = vsel %vm231, %v290, 0.0
  %v311 = vrot.slane %v310, 4
  %v312 = vadd.f32 %v310, %v311
  %v313 = vrot.slane %v312, 2
  %v314 = vadd.f32 %v312, %v313
  %v315 = vrot.slane %v314, 1
  %v316 = vadd.f32 %v314, %v315
  %v317 = vsel %vm231, %v291, 0.0
  %v318 = vrot.slane %v317, 4
  %v319 = vadd.f32 %v317, %v318
  %v320 = vrot.slane %v319, 2
  %v321 = vadd.f32 %v319, %v320
  %v322 = vrot.slane %v321, 1
  %v323 = vadd.f32 %v321, %v322
  %v324 = vsel %vm231, %v292, 0.0
  %v325 = vrot.slane %v324, 4
  %v326 = vadd.f32 %v324, %v325
  %v327 = vrot.slane %v326, 2
  %v328 = vadd.f32 %v326, %v327
  %v329 = vrot.slane %v328, 1
  %v330 = vadd.f32 %v328, %v329
  %v331 = vsel %vm231, %v293, 0.0
  %v332 = vrot.slane %v331, 4
  %v333 = vadd.f32 %v331, %v332
  %v334 = vrot.slane %v333, 2
  %v335 = vadd.f32 %v333, %v334
  %v336 = vrot.slane %v335, 1
  %v337 = vadd.f32 %v335, %v336
  %v338 = vsel %vm231, %v294, 0.0
  %v339 = vrot.slane %v338, 4
  %v340 = vadd.f32 %v338, %v339
  %v341 = vrot.slane %v340, 2
  %v342 = vadd.f32 %v340, %v341
  %v343 = vrot.slane %v342, 1
  %v344 = vadd.f32 %v342, %v343
  %v345 = vsel %vm231, %v295, 0.0
  %v346 = vrot.slane %v345, 4
  %v347 = vadd.f32 %v345, %v346
  %v348 = vrot.slane %v347, 2
  %v349 = vadd.f32 %v347, %v348
  %v350 = vrot.slane %v349, 1
  %v351 = vadd.f32 %v349, %v350
  %vm352 = vcmask 1040384
  %v353 = vsel %vm352, %v238, %v302
  %v354 = vsel %vm352, %v245, %v309
  %v355 = vsel %vm352, %v252, %v316
  %v356 = vsel %vm352, %v259, %v323
  %v357 = vsel %vm352, %v266, %v330
  %v358 = vsel %vm352, %v273, %v337
  %v359 = vsel %vm352, %v280, %v344
  %v360 = vsel %vm352, %v287, %v351
  %v369 = vrot.slane %v354, 6
  %v370 = vrot.slane %v355, 4
  %v371 = vrot.slane %v356, 2
  %v372 = vrot.slane %v358, 6
  %v373 = vrot.slane %v359, 4
  %v374 = vrot.slane %v360, 2
  %v375 = vsel %vm231, %v353, %v369
  %vm376 = vcmask 1045508
  %v377 = vsel %vm376, %v370, %v371
  %vm378 = vcmask 1043456
  %v379 = vsel %vm378, %v375, %v377
  %v380 = vsel %vm231, %v357, %v372
  %v381 = vsel %vm376, %v373, %v374
  %v382 = vsel %vm378, %v380, %v381
  %385 = vst [vmem:[%s3] sm:$0xff] %v379
  %386 = vst [vmem:[%s3 + $0x8] sm:$0xff] %v382
  %v391 = vrot.slane %v219, 3
  %v392 = vrot.slane %v220, 6
  %v393 = vrot.slane %v220, 1
  %v394 = vrot.slane %v221, 4
  %v395 = vrot.slane %v221, 7
  %v396 = vrot.slane %v222, 2
  %v397 = vrot.slane %v222, 5
  %v400 = vsel %vm352, %v219, %v391
  %vm401 = vcmask 1042434
  %v404 = vsel %vm401, %v392, %v393
  %v405 = vsel %vm231, %v400, %v404
  %vm406 = vcmask 1044484
  %v409 = vsel %vm406, %v394, %v395
  %vm410 = vcmask 1046534
  %v413 = vsel %vm410, %v396, %v397
  %v414 = vsel %vm376, %v409, %v413
  %v415 = vsel %vm378, %v405, %v414
  %417 = vst [vmem:[%s2] sm:$0xff] %v415
  // Predicated region
  $region10: #{generator_forward.5} parent=0 // pred_check
    _
  $region11: #{generator_forward.5} parent=0 // pred_check_branch
    %419 = sbr.rel (0) target = $region13
  $region12: #{generator_forward.5} parent=0 // pred_region
    _
  $region13: #{generator_forward.5} parent=0 // pred_fallthru
    _
  // Predicated region
  $region14: #{generator_forward.5} parent=0 // pred_check
    _
  $region15: #{generator_forward.5} parent=0 // pred_check_branch
    %421 = sbr.rel (0) target = $region17
  $region16: #{generator_forward.5} parent=0 // pred_region
    _
  $region17: #{generator_forward.5} parent=0 // pred_fallthru
    _
  // Predicated region
  $region18: #{generator_forward.5} parent=0 // pred_check
    _
  $region19: #{generator_forward.5} parent=0 // pred_check_branch
    %423 = sbr.rel (0) target = $region21
  $region20: #{generator_forward.5} parent=0 // pred_region
    _
  $region21: #{generator_forward.5} parent=0 // pred_fallthru
    _
  // Predicated region
  $region22: #{generator_forward.5} parent=0 // pred_check
    _
  $region23: #{generator_forward.5} parent=0 // pred_check_branch
    %425 = sbr.rel (0) target = $region25
  $region24: #{generator_forward.5} parent=0 // pred_region
    _
  $region25: #{generator_forward.5} parent=0 // pred_fallthru
    _

// kernel: tile.18
$region0: #{tile.18}
  #allocation0 [shape = 's32[1]{0}', space=sflag, size = 0x4, scoped, tag = 'scoped memory for tile.18']
  %s0 = inlined_call_operand.vmem [shape: f32[32], index: 0, kind: input, shape index: {}]
  %s1 = inlined_call_operand.vmem [shape: f32[4,32], index: 1, kind: output, shape index: {}]
  // Predicated region
  $region2: #{tile.18} parent=0 // pred_check
    _
  $region3: #{tile.18} parent=0 // pred_check_branch
    %3 = sbr.rel (0) target = $region5
  $region4: #{tile.18} parent=0 // pred_region
    _
  $region5: #{tile.18} parent=0 // pred_fallthru
    _
  %v4 = vld [vmem:[%s0] ss:$0 sm:$0xff]
  %5 = vst [vmem:[%s1] sm:$0xf] %v4

// kernel: tile.19
$region0: #{tile.19}
  %s0 = inlined_call_operand.vmem [shape: f32[4,32], index: 0, kind: input, shape index: {}]
  %s1 = inlined_call_operand.vmem [shape: f32[1,128], index: 1, kind: output, shape index: {}]
  $region1: #{tile.19} parent=0
    #allocation0 [shape = 'u8[4096]{0}', space=vmem, size = 0x1000, scoped, tag = 'scoped mem for output reshape']
    #allocation1 [shape = 'u8[4096]{0}', space=vmem, size = 0x1000, scoped, tag = 'scoped mem for input reshape']
    %s3 = ssub.s32 16, 1
    %v4 = vld [vmem:[%s0] sm:%s3]
    %5 = vst [vmem:[#allocation1] sm:%s3] %v4
    %v6 = vld [vmem:[#allocation1] sm:$0x1]
    %vm7 = vcmask 261120
    %8 = vst.msk [vmem:[#allocation0] sm:$0x1] %vm7, %v6
    %s9 = scalar_lea.vmem [#allocation1], 3
    %v10 = vld [vmem:[%s9] sm:$0x1]
    %11 = vrot.lane.b32.xlu0 %v10, 96
    %v12 = vpop.permute.xlu0 %11
    %vm13 = vcmask 1048320
    %14 = vst.msk [vmem:[#allocation0] sm:$0x1] %vm13, %v12
    %s15 = scalar_lea.vmem [#allocation1], 2
    %v16 = vld [vmem:[%s15] sm:$0x1]
    %17 = vrot.lane.b32.xlu0 %v16, 64
    %v18 = vpop.permute.xlu0 %17
    %vm19 = vcmask 785920
    %20 = vst.msk [vmem:[#allocation0] sm:$0x1] %vm19, %v18
    %s21 = scalar_lea.vmem [#allocation1], 1
    %v22 = vld [vmem:[%s21] sm:$0x1]
    %23 = vrot.lane.b32.xlu0 %v22, 32
    %v24 = vpop.permute.xlu0 %23
    %vm25 = vcmask 523520
    %26 = vst.msk [vmem:[#allocation0] sm:$0x1] %vm25, %v24
    %s28 = ssub.s32 2, 1
    %v29 = vld [vmem:[#allocation0] sm:%s28]
    %s31 = ssub.s32 2, 1
    %32 = vst [vmem:[%s1] sm:%s31] %v29

// kernel: generator_forward.8
$region0: #{generator_forward.8}
  #allocation0 [shape = 'u32[]', space=smem, size = 0x4, offset = 0x4, fixed_abs, tag = 'smem constant byte address 0x4 - core index']
  #allocation1 [shape = 'u32[72,128]{1,0:T(1,128)}', space=vmem, size = 0x9000, scoped, tag = 'internal scratch']
  %s0 = inlined_call_operand.vmem [shape: bf16[32,128], index: 0, kind: input, shape index: {}]
  %s1 = inlined_call_operand.vmem [shape: f32[1,128], index: 1, kind: input, shape index: {}]
  %s2 = inlined_call_operand.vmem [shape: f32[1,128], index: 2, kind: input, shape index: {}]
  %s3 = inlined_call_operand.vmem [shape: bf16[32,128], index: 3, kind: output, shape index: {}]
  %s4 = sld [smem:[#allocation0]]
  $region22: #{generator_forward.8} parent=0
    _
  %s6 = ssub.s32 1, %s4
  %s7 = scalar_select 0, %s6, %s4
  // Predicated region
  $region2: #{generator_forward.8} parent=0 // pred_check
    _
  $region3: #{generator_forward.8} parent=0 // pred_check_branch
    %9 = sbr.rel (0) target = $region5
  $region4: #{generator_forward.8} parent=0 // pred_region
    _
  $region5: #{generator_forward.8} parent=0 // pred_fallthru
    _
  // Predicated region
  $region6: #{generator_forward.8} parent=0 // pred_check
    _
  $region7: #{generator_forward.8} parent=0 // pred_check_branch
    %11 = sbr.rel (0) target = $region9
  $region8: #{generator_forward.8} parent=0 // pred_region
    _
  $region9: #{generator_forward.8} parent=0 // pred_fallthru
    _
  // Predicated region
  $region10: #{generator_forward.8} parent=0 // pred_check
    _
  $region11: #{generator_forward.8} parent=0 // pred_check_branch
    %13 = sbr.rel (0) target = $region13
  $region12: #{generator_forward.8} parent=0 // pred_region
    _
  $region13: #{generator_forward.8} parent=0 // pred_fallthru
    _
  %v14 = vld [vmem:[%s0] sm:$0xf]
  %v15 = vld [vmem:[%s0 + $0x4] sm:$0xf]
  %v16 = vld [vmem:[%s0 + $0x8] sm:$0xf]
  %v17 = vld [vmem:[%s0 + $0xc] sm:$0xf]
  %v18 = vunpack.c.l.bf16 %v14
  %v19 = vunpack.c.l.bf16 %v15
  %v20 = vunpack.c.l.bf16 %v16
  %v21 = vunpack.c.l.bf16 %v17
  %v22 = vld [vmem:[%s1] sm:$0x1]
  %v24 = vperm.slane %v22, 0
  %v26 = vmul.f32 %v18, %v24
  %v27 = vmul.f32 %v19, %v24
  %v28 = vmul.f32 %v20, %v24
  %v29 = vmul.f32 %v21, %v24
  %v30 = vld [vmem:[%s2] sm:$0x1]
  %v32 = vperm.slane %v30, 0
  %v34 = vadd.f32 %v26, %v32
  %v35 = vadd.f32 %v27, %v32
  %v36 = vadd.f32 %v28, %v32
  %v37 = vadd.f32 %v29, %v32
  %v38 = vmax.f32 %v34, 0.0
  %v39 = vmax.f32 %v35, 0.0
  %v40 = vmax.f32 %v36, 0.0
  %v41 = vmax.f32 %v37, 0.0
  %v42 = vpack.c.bf16 %v38, %v38
  %v43 = vpack.c.bf16 %v39, %v39
  %v44 = vpack.c.bf16 %v40, %v40
  %v45 = vpack.c.bf16 %v41, %v41
  %46 = vst [vmem:[%s3] sm:$0xf] %v42
  %47 = vst [vmem:[%s3 + $0x4] sm:$0xf] %v43
  %48 = vst [vmem:[%s3 + $0x8] sm:$0xf] %v44
  %49 = vst [vmem:[%s3 + $0xc] sm:$0xf] %v45
  // Predicated region
  $region14: #{generator_forward.8} parent=0 // pred_check
    _
  $region15: #{generator_forward.8} parent=0 // pred_check_branch
    %51 = sbr.rel (0) target = $region17
  $region16: #{generator_forward.8} parent=0 // pred_region
    _
  $region17: #{generator_forward.8} parent=0 // pred_fallthru
    _
  // Predicated region
  $region18: #{generator_forward.8} parent=0 // pred_check
    _
  $region19: #{generator_forward.8} parent=0 // pred_check_branch
    %53 = sbr.rel (0) target = $region21
  $region20: #{generator_forward.8} parent=0 // pred_region
    _
  $region21: #{generator_forward.8} parent=0 // pred_fallthru
    _

// kernel: generator_forward.7
$region0: #{generator_forward.7}
  #allocation0 [shape = 'u32[]', space=smem, size = 0x4, offset = 0x4, fixed_abs, tag = 'smem constant byte address 0x4 - core index']
  #allocation1 [shape = 'u32[72,128]{1,0:T(1,128)}', space=vmem, size = 0x9000, scoped, tag = 'internal scratch']
  %s0 = inlined_call_operand.vmem [shape: bf16[2,6,6,64], index: 0, kind: input, shape index: {}]
  %s1 = inlined_call_operand.vmem [shape: bf16[4,256,32], index: 1, kind: input, shape index: {}]
  %s2 = inlined_call_operand.vmem [shape: bf16[4,32,32], index: 2, kind: output, shape index: {0}]
  %s3 = inlined_call_operand.vmem [shape: f32[2,2,32], index: 3, kind: output, shape index: {1}]
  %4 = xla_tuple %s2, %s3
  %s5 = sld [smem:[#allocation0]]
  $region86: #{generator_forward.7} parent=0
    _
  %s7 = ssub.s32 1, %s5
  %s8 = scalar_select 0, %s7, %s5
  $region1: #{generator_forward.7} parent=0
    #allocation2 [shape = 'u8[32768]{0}', space=vmem, size = 0x8000, scoped, tag = 'output window, operand 0']
    loop: start=0, step=1, limit=4
    $region2: #{generator_forward.7} parent=1 // loop_pre_header
      _
    $region3: #{generator_forward.7} parent=1 // loop_header
      %s10 = sphi 0, %s14
      %p11 = scmp.ge.s32.totalorder %s10, 4
      %s20 = sphi 0, %s22
      %s23 = sphi 0, %s20
      %s24 = sphi 0, %s23
      %s40 = sphi 0, %s24
      %s44 = sphi 0, %s44
      %s46 = sphi 0, %s44
      %s47 = sphi 0, %s46
      %s61 = sphi 0, %s47
      %s67 = sphi 0, %s69
      %s70 = sphi 0, %s67
      %s71 = sphi 0, %s70
      %s87 = sphi 0, %s71
      %s93 = sphi 0, %s95
      %s96 = sphi 0, %s93
      %s97 = sphi 0, %s96
      %s113 = sphi 0, %s97
    $region4: #{generator_forward.7} parent=1 // loop_header_branch
      %13 = sbr.rel (%p11) target = $region8
    $region5: #{generator_forward.7} parent=1 // loop_body
      %s15 = ssub.s32 %s10, 1
      %s16 = ssub.s32 %s10, 2
      %s17 = sadd.s32 %s10, 1
      %s18 = ssub.s32 %s10, %s17
      %p19 = scmp.eq.s32.totalorder %s18, 0
      %s21 = sadd.s32 %s20, 1
      %s22 = scalar_select %p19, %s20, %s21
      %p25 = pneg %p19
      %p26 = scmp.eq.s32.totalorder %s10, 1
      %p27 = por %p25, %p26
      %p28 = scmp.ne.s32.totalorder %s20, %s23
      %p29 = scmp.eq.s32.totalorder %s10, 0
      %p30 = por %p28, %p29
      %p31 = scmp.ne.s32.totalorder %s20, %s23
      %p32 = scmp.eq.s32.totalorder %s15, 1
      %p33 = por %p31, %p32
      %p34 = scmp.ne.s32.totalorder %s23, %s24
      %p35 = scmp.eq.s32.totalorder %s15, 0
      %p36 = por %p34, %p35
      %p37 = scmp.ne.s32.totalorder %s23, %s24
      %p38 = scmp.eq.s32.totalorder %s16, 1
      %p39 = por %p37, %p38
      %p41 = scmp.ne.s32.totalorder %s24, %s40
      %p42 = scmp.eq.s32.totalorder %s16, 0
      %p43 = por %p41, %p42
      %s45 = sadd.s32 %s44, 1
      %p48 = scmp.eq.s32.totalorder %s10, 1
      %p49 = scmp.ne.s32.totalorder %s44, %s46
      %p50 = scmp.eq.s32.totalorder %s10, 0
      %p51 = por %p49, %p50
      %p52 = scmp.ne.s32.totalorder %s44, %s46
      %p53 = scmp.eq.s32.totalorder %s15, 1
      %p54 = por %p52, %p53
      %p55 = scmp.ne.s32.totalorder %s46, %s47
      %p56 = scmp.eq.s32.totalorder %s15, 0
      %p57 = por %p55, %p56
      %p58 = scmp.ne.s32.totalorder %s46, %s47
      %p59 = scmp.eq.s32.totalorder %s16, 1
      %p60 = por %p58, %p59
      %p62 = scmp.ne.s32.totalorder %s47, %s61
      %p63 = scmp.eq.s32.totalorder %s16, 0
      %p64 = por %p62, %p63
      %s65 = ssub.s32 %s10, %s17
      %p66 = scmp.eq.s32.totalorder %s65, 0
      %s68 = sadd.s32 %s67, 1
      %s69 = scalar_select %p66, %s67, %s68
      %p72 = pneg %p66
      %p73 = scmp.eq.s32.totalorder %s10, 1
      %p74 = por %p72, %p73
      %p75 = scmp.ne.s32.totalorder %s67, %s70
      %p76 = scmp.eq.s32.totalorder %s10, 0
      %p77 = por %p75, %p76
      %p78 = scmp.ne.s32.totalorder %s67, %s70
      %p79 = scmp.eq.s32.totalorder %s15, 1
      %p80 = por %p78, %p79
      %p81 = scmp.ne.s32.totalorder %s70, %s71
      %p82 = scmp.eq.s32.totalorder %s15, 0
      %p83 = por %p81, %p82
      %p84 = scmp.ne.s32.totalorder %s70, %s71
      %p85 = scmp.eq.s32.totalorder %s16, 1
      %p86 = por %p84, %p85
      %p88 = scmp.ne.s32.totalorder %s71, %s87
      %p89 = scmp.eq.s32.totalorder %s16, 0
      %p90 = por %p88, %p89
      %s91 = ssub.s32 %s10, %s17
      %p92 = scmp.eq.s32.totalorder %s91, 0
      %s94 = sadd.s32 %s93, 1
      %s95 = scalar_select %p92, %s93, %s94
      %p98 = pneg %p92
      %p99 = scmp.eq.s32.totalorder %s10, 1
      %p100 = por %p98, %p99
      %p101 = scmp.ne.s32.totalorder %s93, %s96
      %p102 = scmp.eq.s32.totalorder %s10, 0
      %p103 = por %p101, %p102
      %p104 = scmp.ne.s32.totalorder %s93, %s96
      %p105 = scmp.eq.s32.totalorder %s15, 1
      %p106 = por %p104, %p105
      %p107 = scmp.ne.s32.totalorder %s96, %s97
      %p108 = scmp.eq.s32.totalorder %s15, 0
      %p109 = por %p107, %p108
      %p110 = scmp.ne.s32.totalorder %s96, %s97
      %p111 = scmp.eq.s32.totalorder %s16, 1
      %p112 = por %p110, %p111
      %p114 = scmp.ne.s32.totalorder %s97, %s113
      %p115 = scmp.eq.s32.totalorder %s16, 0
      %p116 = por %p114, %p115
      %p117 = scmp.le.s32.totalorder 1, %s10
      %p118 = scmp.lt.s32.totalorder %s10, 3
      %p119 = pnand %p117, %p118
      %p120 = pneg %p119
      // Predicated region
      $region9: #{generator_forward.7} parent=5 // pred_check
        _
      $region10: #{generator_forward.7} parent=5 // pred_check_branch
        %122 = sbr.rel (%p119) target = $region12
      $region11: #{generator_forward.7} parent=5 // pred_region
        %s123 = ssub.s32 %s10, 1
        // Predicated region
        $region13: #{generator_forward.7} parent=11 // pred_check
          %p124 = pneg %p57
        $region14: #{generator_forward.7} parent=11 // pred_check_branch
          %126 = sbr.rel (%p124) target = $region16
        $region15: #{generator_forward.7} parent=11 // pred_region
          _
        $region16: #{generator_forward.7} parent=11 // pred_fallthru
          _
      $region12: #{generator_forward.7} parent=5 // pred_fallthru
        _
      %p127 = scmp.lt.s32.totalorder %s10, 2
      // Predicated region
      $region17: #{generator_forward.7} parent=5 // pred_check
        %p128 = pneg %p127
      $region18: #{generator_forward.7} parent=5 // pred_check_branch
        %130 = sbr.rel (%p128) target = $region20
      $region19: #{generator_forward.7} parent=5 // pred_region
        // Predicated region
        $region21: #{generator_forward.7} parent=19 // pred_check
          %p131 = pneg %p30
        $region22: #{generator_forward.7} parent=19 // pred_check_branch
          %133 = sbr.rel (%p131) target = $region24
        $region23: #{generator_forward.7} parent=19 // pred_region
          %p134 = scmp.lt.s32.totalorder %s10, 1
          %s135 = scalar_select %p134, %s10, 1
          %s136 = smul.addr %s135, 6
          %s137 = smul.addr %s136, 4
          %s138 = scalar_lea.vmem %s0, %s137
        $region24: #{generator_forward.7} parent=19 // pred_fallthru
          _
      $region20: #{generator_forward.7} parent=5 // pred_fallthru
        _
      %p139 = scmp.le.s32.totalorder 1, %s10
      %p140 = scmp.lt.s32.totalorder %s10, 3
      %p141 = pnand %p139, %p140
      %p142 = pneg %p141
      // Predicated region
      $region25: #{generator_forward.7} parent=5 // pred_check
        _
      $region26: #{generator_forward.7} parent=5 // pred_check_branch
        %144 = sbr.rel (%p141) target = $region28
      $region27: #{generator_forward.7} parent=5 // pred_region
        %s145 = ssub.s32 %s10, 1
        %p146 = scmp.lt.s32.totalorder %s15, 1
        %s147 = scalar_select %p146, %s15, 1
        %s148 = smul.addr %s147, 6
        %s149 = smul.addr %s148, 4
        %s150 = scalar_lea.vmem %s0, %s149
        %p151 = pneg %p36
        %p152 = pneg %p33
        %p153 = pneg %p57
        %p154 = pneg %p54
        %p155 = pneg %p83
        %p156 = pneg %p80
        %s157 = sand.u32 %s70, 1
        %s158 = sand.u32 %s70, 1
        %s159 = smul.addr %s158, 32
        %s160 = scalar_lea.vmem [#allocation2], %s159
        %p161 = pneg %p109
        %p162 = pneg %p106
        %p163 = scmp.lt.s32.totalorder %s15, 1
        %s164 = scalar_select %p163, %s15, 1
        %s165 = smul.addr %s164, 2
        %s166 = scalar_lea.vmem %s3, %s165
        %p167 = scmp.lt.s32.totalorder %s15, 1
        %s168 = scalar_select %p167, %s15, 1
        %s169 = smul.addr %s168, 6
        %s170 = smul.addr %s169, 4
        %s171 = scalar_lea.vmem %s0, %s170
        %s172 = smul.u32 2, %s15
        %p173 = scmp.lt.s32.totalorder %s15, 1
        %s174 = scalar_select %p173, %s15, 1
        %s175 = smul.addr %s174, 2
        %s176 = scalar_lea.vmem %s3, %s175
        %s177 = scalar_lea.vmem %s171, 4
        %v178 = vld [vmem:[%s177] sm:$0x7]
        %v179 = vld [vmem:[%s177 + $0x4] sm:$0x7]
        %v180 = vld [vmem:[%s177 + $0x8] sm:$0x7]
        %v181 = vld [vmem:[%s177 + $0xc] sm:$0x7]
        %v182 = vld [vmem:[%s177] sm:$0x3]
        %v183 = vld [vmem:[%s177 + $0x4] sm:$0x3]
        %v184 = vld [vmem:[%s177 + $0x8] sm:$0x3]
        %v185 = vld [vmem:[%s177 + $0xc] sm:$0x3]
        %v186 = vld [vmem:[%s171] sm:$0x7]
        %v187 = vld [vmem:[%s171 + $0x4] sm:$0x7]
        %v188 = vld [vmem:[%s171 + $0x8] sm:$0x7]
        %v189 = vld [vmem:[%s171 + $0xc] sm:$0x7]
        %v190 = vld [vmem:[%s171] sm:$0x3]
        %v191 = vld [vmem:[%s171 + $0x4] sm:$0x3]
        %v192 = vld [vmem:[%s171 + $0x8] sm:$0x3]
        %v193 = vld [vmem:[%s171 + $0xc] sm:$0x3]
        %v198 = vunpack.c.l.b16 %v182
        %v199 = vunpack.c.l.b16 %v183
        %v200 = vunpack.c.l.b16 %v184
        %v201 = vunpack.c.l.b16 %v185
        %v202 = vpack.c.b16 %v198, %v198
        %v203 = vpack.c.b16 %v199, %v199
        %v204 = vpack.c.b16 %v200, %v200
        %v205 = vpack.c.b16 %v201, %v201
        %v207 = vshrl.u32 %v202, 16
        %v209 = vrot.slane %v207, 7
        %v210 = vshll.u32 %v202, 16
        %v212 = vor.u32 %v209, %v210
        %v214 = vshrl.u32 %v203, 16
        %v216 = vrot.slane %v214, 7
        %v217 = vshll.u32 %v203, 16
        %v219 = vor.u32 %v216, %v217
        %v221 = vshrl.u32 %v204, 16
        %v223 = vrot.slane %v221, 7
        %v224 = vshll.u32 %v204, 16
        %v226 = vor.u32 %v223, %v224
        %v228 = vshrl.u32 %v205, 16
        %v230 = vrot.slane %v228, 7
        %v231 = vshll.u32 %v205, 16
        %v233 = vor.u32 %v230, %v231
        %234 = vrot.lane.b32.xlu0 %v212, 64
        %v235 = vpop.permute.xlu0 %234
        %236 = vrot.lane.b32.xlu0 %v219, 64
        %v237 = vpop.permute.xlu0 %236
        %238 = vrot.lane.b32.xlu0 %v226, 64
        %v239 = vpop.permute.xlu0 %238
        %240 = vrot.lane.b32.xlu0 %v233, 64
        %v241 = vpop.permute.xlu0 %240
        %v246 = vunpack.c.l.b16 %v190
        %v247 = vunpack.c.l.b16 %v191
        %v248 = vunpack.c.l.b16 %v192
        %v249 = vunpack.c.l.b16 %v193
        %v250 = vpack.c.b16 %v246, %v246
        %v251 = vpack.c.b16 %v247, %v247
        %v252 = vpack.c.b16 %v248, %v248
        %v253 = vpack.c.b16 %v249, %v249
        %v255 = vshrl.u32 %v250, 16
        %v257 = vrot.slane %v255, 7
        %v258 = vshll.u32 %v250, 16
        %v260 = vor.u32 %v257, %v258
        %v262 = vshrl.u32 %v251, 16
        %v264 = vrot.slane %v262, 7
        %v265 = vshll.u32 %v251, 16
        %v267 = vor.u32 %v264, %v265
        %v269 = vshrl.u32 %v252, 16
        %v271 = vrot.slane %v269, 7
        %v272 = vshll.u32 %v252, 16
        %v274 = vor.u32 %v271, %v272
        %v276 = vshrl.u32 %v253, 16
        %v278 = vrot.slane %v276, 7
        %v279 = vshll.u32 %v253, 16
        %v281 = vor.u32 %v278, %v279
        %282 = vrot.lane.b32.xlu0 %v260, 64
        %v283 = vpop.permute.xlu0 %282
        %284 = vrot.lane.b32.xlu0 %v267, 64
        %v285 = vpop.permute.xlu0 %284
        %286 = vrot.lane.b32.xlu0 %v274, 64
        %v287 = vpop.permute.xlu0 %286
        %288 = vrot.lane.b32.xlu0 %v281, 64
        %v289 = vpop.permute.xlu0 %288
        %vm290 = vcmask 523264
        %v293 = vsel %vm290, %v178, %v235
        %v296 = vsel %vm290, %v179, %v237
        %v299 = vsel %vm290, %v180, %v239
        %v302 = vsel %vm290, %v181, %v241
        %v305 = vsel %vm290, %v186, %v283
        %v308 = vsel %vm290, %v187, %v285
        %v311 = vsel %vm290, %v188, %v287
        %v314 = vsel %vm290, %v189, %v289
        %v319 = vrot.slane %v305, 6
        %v320 = vrot.slane %v308, 6
        %v321 = vrot.slane %v311, 6
        %v322 = vrot.slane %v314, 6
        %vm323 = vcmask 1041408
        %v325 = vsel %vm323, %v293, %v319
        %vm326 = vcmask 1043458
        %v327 = vsel %vm326, %v293, %v319
        %v329 = vrot.slane %v327, 2
        %v331 = vsel %vm323, %v296, %v320
        %v332 = vsel %vm326, %v296, %v320
        %v334 = vrot.slane %v332, 2
        %v336 = vsel %vm323, %v299, %v321
        %v337 = vsel %vm326, %v299, %v321
        %v339 = vrot.slane %v337, 2
        %v341 = vsel %vm323, %v302, %v322
        %v342 = vsel %vm326, %v302, %v322
        %v344 = vrot.slane %v342, 2
        %vm345 = vsmask.f32 1280
        %vm346 = vsmask.f32 3336
        %vm347 = vmor %vm345, %vm346
        %vm348 = vsmask.f32 5392
        %vm349 = vmor %vm347, %vm348
        %vm350 = vsmask.f32 7448
        %vm351 = vmor %vm349, %vm350
        %v352 = vshrl.u32 %v325, 16
        %v354 = vrot.slane %v352, 6
        %v355 = vshll.u32 %v325, 16
        %v357 = vrot.slane %v355, 7
        %v358 = vor.u32 %v354, %v357
        %v359 = vrot.slane %v358, 2
        %v361 = vshll.u32 %v329, 16
        %v363 = vrot.slane %v361, 7
        %v364 = vsel %vm351, %v359, %v363
        %v365 = vshrl.u32 %v331, 16
        %v367 = vrot.slane %v365, 6
        %v368 = vshll.u32 %v331, 16
        %v370 = vrot.slane %v368, 7
        %v371 = vor.u32 %v367, %v370
        %v372 = vrot.slane %v371, 2
        %v374 = vshll.u32 %v334, 16
        %v376 = vrot.slane %v374, 7
        %v377 = vsel %vm351, %v372, %v376
        %v378 = vshrl.u32 %v336, 16
        %v380 = vrot.slane %v378, 6
        %v381 = vshll.u32 %v336, 16
        %v383 = vrot.slane %v381, 7
        %v384 = vor.u32 %v380, %v383
        %v385 = vrot.slane %v384, 2
        %v387 = vshll.u32 %v339, 16
        %v389 = vrot.slane %v387, 7
        %v390 = vsel %vm351, %v385, %v389
        %v391 = vshrl.u32 %v341, 16
        %v393 = vrot.slane %v391, 6
        %v394 = vshll.u32 %v341, 16
        %v396 = vrot.slane %v394, 7
        %v397 = vor.u32 %v393, %v396
        %v398 = vrot.slane %v397, 2
        %v400 = vshll.u32 %v344, 16
        %v402 = vrot.slane %v400, 7
        %v403 = vsel %vm351, %v398, %v402
        %v404 = vld [vmem:[%s1] sm:$0xf]
        %v405 = vld [vmem:[%s1 + $0x4] sm:$0xf]
        %v406 = vld [vmem:[%s1 + $0x8] sm:$0xf]
        %v407 = vld [vmem:[%s1 + $0xc] sm:$0xf]
        %v408 = vld [vmem:[%s1 + $0x10] sm:$0xf]
        %v409 = vld [vmem:[%s1 + $0x14] sm:$0xf]
        %v410 = vld [vmem:[%s1 + $0x18] sm:$0xf]
        %v411 = vld [vmem:[%s1 + $0x1c] sm:$0xf]
        %v412 = vld [vmem:[%s1 + $0x20] sm:$0xf]
        %v413 = vld [vmem:[%s1 + $0x24] sm:$0xf]
        %v414 = vld [vmem:[%s1 + $0x28] sm:$0xf]
        %v415 = vld [vmem:[%s1 + $0x2c] sm:$0xf]
        %v416 = vld [vmem:[%s1 + $0x30] sm:$0xf]
        %v417 = vld [vmem:[%s1 + $0x34] sm:$0xf]
        %v418 = vld [vmem:[%s1 + $0x38] sm:$0xf]
        %v419 = vld [vmem:[%s1 + $0x3c] sm:$0xf]
        %v420 = vld [vmem:[%s1 + $0x40] sm:$0xf]
        %v421 = vld [vmem:[%s1 + $0x44] sm:$0xf]
        %v422 = vld [vmem:[%s1 + $0x48] sm:$0xf]
        %v423 = vld [vmem:[%s1 + $0x4c] sm:$0xf]
        %v424 = vld [vmem:[%s1 + $0x50] sm:$0xf]
        %v425 = vld [vmem:[%s1 + $0x54] sm:$0xf]
        %v426 = vld [vmem:[%s1 + $0x58] sm:$0xf]
        %v427 = vld [vmem:[%s1 + $0x5c] sm:$0xf]
        %v428 = vld [vmem:[%s1 + $0x60] sm:$0xf]
        %v429 = vld [vmem:[%s1 + $0x64] sm:$0xf]
        %v430 = vld [vmem:[%s1 + $0x68] sm:$0xf]
        %v431 = vld [vmem:[%s1 + $0x6c] sm:$0xf]
        %v432 = vld [vmem:[%s1 + $0x70] sm:$0xf]
        %v433 = vld [vmem:[%s1 + $0x74] sm:$0xf]
        %v434 = vld [vmem:[%s1 + $0x78] sm:$0xf]
        %v435 = vld [vmem:[%s1 + $0x7c] sm:$0xf]
        %437 = vst [vmem:[#allocation1] ss:$4 sm:$0xff] %v364
        %s439 = scalar_lea.vmem [#allocation1], 1
        %440 = vst [vmem:[%s439] ss:$4 sm:$0xff] %v377
        %s442 = scalar_lea.vmem [#allocation1], 2
        %443 = vst [vmem:[%s442] ss:$4 sm:$0xff] %v390
        %s445 = scalar_lea.vmem [#allocation1], 3
        %446 = vst [vmem:[%s445] ss:$4 sm:$0xff] %v403
        %v447 = vld.sshfl [vmem:[#allocation1] sm:$0xff pattern:$0x73625140]
        %v448 = vld.sshfl [vmem:[#allocation1 + $0x8] sm:$0xff pattern:$0x73625140]
        %v483 = vunpack.c.l.b16 %v404
        %v484 = vunpack.c.l.b16 %v405
        %v485 = vunpack.c.l.b16 %v406
        %v486 = vunpack.c.l.b16 %v407
        %v487 = vunpack.c.l.b16 %v408
        %v488 = vunpack.c.l.b16 %v409
        %v489 = vunpack.c.l.b16 %v410
        %v490 = vunpack.c.l.b16 %v411
        %v491 = vunpack.c.l.b16 %v412
        %v492 = vunpack.c.l.b16 %v413
        %v493 = vunpack.c.l.b16 %v414
        %v494 = vunpack.c.l.b16 %v415
        %v495 = vunpack.c.l.b16 %v416
        %v496 = vunpack.c.l.b16 %v417
        %v497 = vunpack.c.l.b16 %v418
        %v498 = vunpack.c.l.b16 %v419
        %v499 = vunpack.c.l.b16 %v420
        %v500 = vunpack.c.l.b16 %v421
        %v501 = vunpack.c.l.b16 %v422
        %v502 = vunpack.c.l.b16 %v423
        %v503 = vunpack.c.l.b16 %v424
        %v504 = vunpack.c.l.b16 %v425
        %v505 = vunpack.c.l.b16 %v426
        %v506 = vunpack.c.l.b16 %v427
        %v507 = vunpack.c.l.b16 %v428
        %v508 = vunpack.c.l.b16 %v429
        %v509 = vunpack.c.l.b16 %v430
        %v510 = vunpack.c.l.b16 %v431
        %v511 = vunpack.c.l.b16 %v432
        %v512 = vunpack.c.l.b16 %v433
        %v513 = vunpack.c.l.b16 %v434
        %v514 = vunpack.c.l.b16 %v435
        %v515 = vpack.c.b16 %v484, %v483
        %v516 = vpack.c.b16 %v486, %v485
        %v517 = vpack.c.b16 %v488, %v487
        %v518 = vpack.c.b16 %v490, %v489
        %v519 = vpack.c.b16 %v492, %v491
        %v520 = vpack.c.b16 %v494, %v493
        %v521 = vpack.c.b16 %v496, %v495
        %v522 = vpack.c.b16 %v498, %v497
        %v523 = vpack.c.b16 %v500, %v499
        %v524 = vpack.c.b16 %v502, %v501
        %v525 = vpack.c.b16 %v504, %v503
        %v526 = vpack.c.b16 %v506, %v505
        %v527 = vpack.c.b16 %v508, %v507
        %v528 = vpack.c.b16 %v510, %v509
        %v529 = vpack.c.b16 %v512, %v511
        %v530 = vpack.c.b16 %v514, %v513
        %547 = vmatpush.bf16.msra.mxu0 %v522
        %548 = vmatpush.bf16.msra.mxu0 %v521
        %549 = vmatpush.bf16.msra.mxu0 %v520
        %550 = vmatpush.bf16.msra.mxu0 %v519
        %551 = vmatpush.bf16.msra.mxu0 %v518
        %552 = vmatpush.bf16.msra.mxu0 %v517
        %553 = vmatpush.bf16.msra.mxu0 %v516
        %554 = vmatpush.bf16.msra.mxu0 %v515
        %555 = vmatmul.bf16.gmra.mxu0 %v447
        %v556 = vpop.f32.mrf.mxu0
        %v557 = vadd.f32 0.0, %v556
        %v558 = vpop.f32.mrf.mxu0
        %v559 = vadd.f32 0.0, %v558
        %560 = vdwg.mxu0
        %561 = vmatpush.bf16.msra.mxu0 %v530
        %562 = vmatpush.bf16.msra.mxu0 %v529
        %563 = vmatpush.bf16.msra.mxu0 %v528
        %564 = vmatpush.bf16.msra.mxu0 %v527
        %565 = vmatpush.bf16.msra.mxu0 %v526
        %566 = vmatpush.bf16.msra.mxu0 %v525
        %567 = vmatpush.bf16.msra.mxu0 %v524
        %568 = vmatpush.bf16.msra.mxu0 %v523
        %569 = vmatmul.bf16.gmra.mxu0 %v448
        %v570 = vpop.f32.mrf.mxu0
        %v571 = vadd.f32 %v557, %v570
        %v572 = vpop.f32.mrf.mxu0
        %v573 = vadd.f32 %v559, %v572
        %574 = vdwg.mxu0
        %v575 = vpack.c.bf16 %v571, %v571
        %v576 = vpack.c.bf16 %v573, %v573
        %vm577 = vcmask 257024
        %578 = vst.msk [vmem:[%s160] sm:$0xf] %vm577, %v575
        %579 = vst.msk [vmem:[%s160 + $0x4] sm:$0xf] %vm577, %v576
        %v580 = vunpack.c.l.bf16 %v575
        %v581 = vunpack.c.l.bf16 %v576
        %vm582 = vcmask 261120
        %v583 = vsel %vm582, %v580, 0.0
        %v584 = vsel %vm582, %v581, 0.0
        %v585 = vadd.f32 %v583, %v584
        %v586 = vrot.slane %v585, 4
        %v587 = vadd.f32 %v585, %v586
        %v588 = vrot.slane %v587, 2
        %v589 = vadd.f32 %v587, %v588
        %v590 = vrot.slane %v589, 1
        %v591 = vadd.f32 %v589, %v590
        %v592 = vmul.f32 %v580, %v580
        %v593 = vmul.f32 %v581, %v581
        %v594 = vsel %vm582, %v592, 0.0
        %v595 = vsel %vm582, %v593, 0.0
        %v596 = vadd.f32 %v594, %v595
        %v597 = vrot.slane %v596, 4
        %v598 = vadd.f32 %v596, %v597
        %v599 = vrot.slane %v598, 2
        %v600 = vadd.f32 %v598, %v599
        %v601 = vrot.slane %v600, 1
        %v602 = vadd.f32 %v600, %v601
        %vm603 = vcmask 1040384
        %v604 = vsel %vm603, %v591, %v602
        %v605 = vld [vmem:[%s177] sm:$0x6]
        %v606 = vld [vmem:[%s177 + $0x4] sm:$0x6]
        %v607 = vld [vmem:[%s177 + $0x8] sm:$0x6]
        %v608 = vld [vmem:[%s177 + $0xc] sm:$0x6]
        %v609 = vld [vmem:[%s177] sm:$0x7]
        %v610 = vld [vmem:[%s177 + $0x4] sm:$0x7]
        %v611 = vld [vmem:[%s177 + $0x8] sm:$0x7]
        %v612 = vld [vmem:[%s177 + $0xc] sm:$0x7]
        %v613 = vld [vmem:[%s171] sm:$0x6]
        %v614 = vld [vmem:[%s171 + $0x4] sm:$0x6]
        %v615 = vld [vmem:[%s171 + $0x8] sm:$0x6]
        %v616 = vld [vmem:[%s171 + $0xc] sm:$0x6]
        %v617 = vld [vmem:[%s171] sm:$0x7]
        %v618 = vld [vmem:[%s171 + $0x4] sm:$0x7]
        %v619 = vld [vmem:[%s171 + $0x8] sm:$0x7]
        %v620 = vld [vmem:[%s171 + $0xc] sm:$0x7]
        %v625 = vunpack.c.l.b16 %v609
        %v626 = vunpack.c.l.b16 %v610
        %v627 = vunpack.c.l.b16 %v611
        %v628 = vunpack.c.l.b16 %v612
        %v629 = vpack.c.b16 %v625, %v625
        %v630 = vpack.c.b16 %v626, %v626
        %v631 = vpack.c.b16 %v627, %v627
        %v632 = vpack.c.b16 %v628, %v628
        %v634 = vshrl.u32 %v629, 16
        %v636 = vrot.slane %v634, 7
        %v637 = vshll.u32 %v629, 16
        %v639 = vor.u32 %v636, %v637
        %v641 = vshrl.u32 %v630, 16
        %v643 = vrot.slane %v641, 7
        %v644 = vshll.u32 %v630, 16
        %v646 = vor.u32 %v643, %v644
        %v648 = vshrl.u32 %v631, 16
        %v650 = vrot.slane %v648, 7
        %v651 = vshll.u32 %v631, 16
        %v653 = vor.u32 %v650, %v651
        %v655 = vshrl.u32 %v632, 16
        %v657 = vrot.slane %v655, 7
        %v658 = vshll.u32 %v632, 16
        %v660 = vor.u32 %v657, %v658
        %661 = vrot.lane.b32.xlu0 %v639, 64
        %v662 = vpop.permute.xlu0 %661
        %663 = vrot.lane.b32.xlu0 %v646, 64
        %v664 = vpop.permute.xlu0 %663
        %665 = vrot.lane.b32.xlu0 %v653, 64
        %v666 = vpop.permute.xlu0 %665
        %667 = vrot.lane.b32.xlu0 %v660, 64
        %v668 = vpop.permute.xlu0 %667
        %v673 = vunpack.c.l.b16 %v617
        %v674 = vunpack.c.l.b16 %v618
        %v675 = vunpack.c.l.b16 %v619
        %v676 = vunpack.c.l.b16 %v620
        %v677 = vpack.c.b16 %v673, %v673
        %v678 = vpack.c.b16 %v674, %v674
        %v679 = vpack.c.b16 %v675, %v675
        %v680 = vpack.c.b16 %v676, %v676
        %v682 = vshrl.u32 %v677, 16
        %v684 = vrot.slane %v682, 7
        %v685 = vshll.u32 %v677, 16
        %v687 = vor.u32 %v684, %v685
        %v689 = vshrl.u32 %v678, 16
        %v691 = vrot.slane %v689, 7
        %v692 = vshll.u32 %v678, 16
        %v694 = vor.u32 %v691, %v692
        %v696 = vshrl.u32 %v679, 16
        %v698 = vrot.slane %v696, 7
        %v699 = vshll.u32 %v679, 16
        %v701 = vor.u32 %v698, %v699
        %v703 = vshrl.u32 %v680, 16
        %v705 = vrot.slane %v703, 7
        %v706 = vshll.u32 %v680, 16
        %v708 = vor.u32 %v705, %v706
        %709 = vrot.lane.b32.xlu0 %v687, 64
        %v710 = vpop.permute.xlu0 %709
        %711 = vrot.lane.b32.xlu0 %v694, 64
        %v712 = vpop.permute.xlu0 %711
        %713 = vrot.lane.b32.xlu0 %v701, 64
        %v714 = vpop.permute.xlu0 %713
        %715 = vrot.lane.b32.xlu0 %v708, 64
        %v716 = vpop.permute.xlu0 %715
        %v719 = vsel %vm290, %v605, %v662
        %v722 = vsel %vm290, %v606, %v664
        %v725 = vsel %vm290, %v607, %v666
        %v728 = vsel %vm290, %v608, %v668
        %v731 = vsel %vm290, %v613, %v710
        %v734 = vsel %vm290, %v614, %v712
        %v737 = vsel %vm290, %v615, %v714
        %v740 = vsel %vm290, %v616, %v716
        %v745 = vrot.slane %v731, 6
        %v746 = vrot.slane %v734, 6
        %v747 = vrot.slane %v737, 6
        %v748 = vrot.slane %v740, 6
        %v750 = vsel %vm323, %v719, %v745
        %v752 = vsel %vm326, %v719, %v745
        %v754 = vrot.slane %v752, 2
        %v756 = vsel %vm323, %v722, %v746
        %v758 = vsel %vm326, %v722, %v746
        %v760 = vrot.slane %v758, 2
        %v762 = vsel %vm323, %v725, %v747
        %v764 = vsel %vm326, %v725, %v747
        %v766 = vrot.slane %v764, 2
        %v768 = vsel %vm323, %v728, %v748
        %v770 = vsel %vm326, %v728, %v748
        %v772 = vrot.slane %v770, 2
        %vm773 = vcmask 1040384
        %vm774 = vcmask 1042434
        %vm775 = vmor %vm773, %vm774
        %vm776 = vcmask 1044484
        %vm777 = vmor %vm775, %vm776
        %vm778 = vcmask 1046534
        %vm779 = vmor %vm777, %vm778
        %v780 = vrot.slane %v750, 7
        %v781 = vrot.slane %v780, 2
        %v782 = vrot.slane %v754, 7
        %v783 = vsel %vm779, %v781, %v782
        %v784 = vrot.slane %v756, 7
        %v785 = vrot.slane %v784, 2
        %v786 = vrot.slane %v760, 7
        %v787 = vsel %vm779, %v785, %v786
        %v788 = vrot.slane %v762, 7
        %v789 = vrot.slane %v788, 2
        %v790 = vrot.slane %v766, 7
        %v791 = vsel %vm779, %v789, %v790
        %v792 = vrot.slane %v768, 7
        %v793 = vrot.slane %v792, 2
        %v794 = vrot.slane %v772, 7
        %v795 = vsel %vm779, %v793, %v794
        %s796 = scalar_lea.vmem %s1, 128
        %v797 = vld [vmem:[%s796] sm:$0xf]
        %v798 = vld [vmem:[%s796 + $0x4] sm:$0xf]
        %v799 = vld [vmem:[%s796 + $0x8] sm:$0xf]
        %v800 = vld [vmem:[%s796 + $0xc] sm:$0xf]
        %v801 = vld [vmem:[%s796 + $0x10] sm:$0xf]
        %v802 = vld [vmem:[%s796 + $0x14] sm:$0xf]
        %v803 = vld [vmem:[%s796 + $0x18] sm:$0xf]
        %v804 = vld [vmem:[%s796 + $0x1c] sm:$0xf]
        %v805 = vld [vmem:[%s796 + $0x20] sm:$0xf]
        %v806 = vld [vmem:[%s796 + $0x24] sm:$0xf]
        %v807 = vld [vmem:[%s796 + $0x28] sm:$0xf]
        %v808 = vld [vmem:[%s796 + $0x2c] sm:$0xf]
        %v809 = vld [vmem:[%s796 + $0x30] sm:$0xf]
        %v810 = vld [vmem:[%s796 + $0x34] sm:$0xf]
        %v811 = vld [vmem:[%s796 + $0x38] sm:$0xf]
        %v812 = vld [vmem:[%s796 + $0x3c] sm:$0xf]
        %v813 = vld [vmem:[%s796 + $0x40] sm:$0xf]
        %v814 = vld [vmem:[%s796 + $0x44] sm:$0xf]
        %v815 = vld [vmem:[%s796 + $0x48] sm:$0xf]
        %v816 = vld [vmem:[%s796 + $0x4c] sm:$0xf]
        %v817 = vld [vmem:[%s796 + $0x50] sm:$0xf]
        %v818 = vld [vmem:[%s796 + $0x54] sm:$0xf]
        %v819 = vld [vmem:[%s796 + $0x58] sm:$0xf]
        %v820 = vld [vmem:[%s796 + $0x5c] sm:$0xf]
        %v821 = vld [vmem:[%s796 + $0x60] sm:$0xf]
        %v822 = vld [vmem:[%s796 + $0x64] sm:$0xf]
        %v823 = vld [vmem:[%s796 + $0x68] sm:$0xf]
        %v824 = vld [vmem:[%s796 + $0x6c] sm:$0xf]
        %v825 = vld [vmem:[%s796 + $0x70] sm:$0xf]
        %v826 = vld [vmem:[%s796 + $0x74] sm:$0xf]
        %v827 = vld [vmem:[%s796 + $0x78] sm:$0xf]
        %v828 = vld [vmem:[%s796 + $0x7c] sm:$0xf]
        %830 = vst [vmem:[#allocation1] ss:$4 sm:$0xff] %v783
        %s832 = scalar_lea.vmem [#allocation1], 1
        %833 = vst [vmem:[%s832] ss:$4 sm:$0xff] %v787
        %s835 = scalar_lea.vmem [#allocation1], 2
        %836 = vst [vmem:[%s835] ss:$4 sm:$0xff] %v791
        %s838 = scalar_lea.vmem [#allocation1], 3
        %839 = vst [vmem:[%s838] ss:$4 sm:$0xff] %v795
        %v840 = vld.sshfl [vmem:[#allocation1] sm:$0xff pattern:$0x73625140]
        %v841 = vld.sshfl [vmem:[#allocation1 + $0x8] sm:$0xff pattern:$0x73625140]
        %v876 = vunpack.c.l.b16 %v797
        %v877 = vunpack.c.l.b16 %v798
        %v878 = vunpack.c.l.b16 %v799
        %v879 = vunpack.c.l.b16 %v800
        %v880 = vunpack.c.l.b16 %v801
        %v881 = vunpack.c.l.b16 %v802
        %v882 = vunpack.c.l.b16 %v803
        %v883 = vunpack.c.l.b16 %v804
        %v884 = vunpack.c.l.b16 %v805
        %v885 = vunpack.c.l.b16 %v806
        %v886 = vunpack.c.l.b16 %v807
        %v887 = vunpack.c.l.b16 %v808
        %v888 = vunpack.c.l.b16 %v809
        %v889 = vunpack.c.l.b16 %v810
        %v890 = vunpack.c.l.b16 %v811
        %v891 = vunpack.c.l.b16 %v812
        %v892 = vunpack.c.l.b16 %v813
        %v893 = vunpack.c.l.b16 %v814
        %v894 = vunpack.c.l.b16 %v815
        %v895 = vunpack.c.l.b16 %v816
        %v896 = vunpack.c.l.b16 %v817
        %v897 = vunpack.c.l.b16 %v818
        %v898 = vunpack.c.l.b16 %v819
        %v899 = vunpack.c.l.b16 %v820
        %v900 = vunpack.c.l.b16 %v821
        %v901 = vunpack.c.l.b16 %v822
        %v902 = vunpack.c.l.b16 %v823
        %v903 = vunpack.c.l.b16 %v824
        %v904 = vunpack.c.l.b16 %v825
        %v905 = vunpack.c.l.b16 %v826
        %v906 = vunpack.c.l.b16 %v827
        %v907 = vunpack.c.l.b16 %v828
        %v908 = vpack.c.b16 %v877, %v876
        %v909 = vpack.c.b16 %v879, %v878
        %v910 = vpack.c.b16 %v881, %v880
        %v911 = vpack.c.b16 %v883, %v882
        %v912 = vpack.c.b16 %v885, %v884
        %v913 = vpack.c.b16 %v887, %v886
        %v914 = vpack.c.b16 %v889, %v888
        %v915 = vpack.c.b16 %v891, %v890
        %v916 = vpack.c.b16 %v893, %v892
        %v917 = vpack.c.b16 %v895, %v894
        %v918 = vpack.c.b16 %v897, %v896
        %v919 = vpack.c.b16 %v899, %v898
        %v920 = vpack.c.b16 %v901, %v900
        %v921 = vpack.c.b16 %v903, %v902
        %v922 = vpack.c.b16 %v905, %v904
        %v923 = vpack.c.b16 %v907, %v906
        %940 = vmatpush.bf16.msra.mxu0 %v915
        %941 = vmatpush.bf16.msra.mxu0 %v914
        %942 = vmatpush.bf16.msra.mxu0 %v913
        %943 = vmatpush.bf16.msra.mxu0 %v912
        %944 = vmatpush.bf16.msra.mxu0 %v911
        %945 = vmatpush.bf16.msra.mxu0 %v910
        %946 = vmatpush.bf16.msra.mxu0 %v909
        %947 = vmatpush.bf16.msra.mxu0 %v908
        %948 = vmatmul.bf16.gmra.mxu0 %v840
        %v949 = vpop.f32.mrf.mxu0
        %v950 = vadd.f32 0.0, %v949
        %v951 = vpop.f32.mrf.mxu0
        %v952 = vadd.f32 0.0, %v951
        %953 = vdwg.mxu0
        %954 = vmatpush.bf16.msra.mxu0 %v923
        %955 = vmatpush.bf16.msra.mxu0 %v922
        %956 = vmatpush.bf16.msra.mxu0 %v921
        %957 = vmatpush.bf16.msra.mxu0 %v920
        %958 = vmatpush.bf16.msra.mxu0 %v919
        %959 = vmatpush.bf16.msra.mxu0 %v918
        %960 = vmatpush.bf16.msra.mxu0 %v917
        %961 = vmatpush.bf16.msra.mxu0 %v916
        %962 = vmatmul.bf16.gmra.mxu0 %v841
        %v963 = vpop.f32.mrf.mxu0
        %v964 = vadd.f32 %v950, %v963
        %v965 = vpop.f32.mrf.mxu0
        %v966 = vadd.f32 %v952, %v965
        %967 = vdwg.mxu0
        %v968 = vpack.c.bf16 %v964, %v964
        %v969 = vpack.c.bf16 %v966, %v966
        %s970 = scalar_lea.vmem %s160, 8 [#allocation2]
        %971 = vst.msk [vmem:[%s970] sm:$0xf] %vm577, %v968
        %972 = vst.msk [vmem:[%s970 + $0x4] sm:$0xf] %vm577, %v969
        %v973 = vunpack.c.l.bf16 %v968
        %v974 = vunpack.c.l.bf16 %v969
        %v975 = vsel %vm582, %v973, 0.0
        %v976 = vsel %vm582, %v974, 0.0
        %v977 = vadd.f32 %v975, %v976
        %v978 = vrot.slane %v977, 4
        %v979 = vadd.f32 %v977, %v978
        %v980 = vrot.slane %v979, 2
        %v981 = vadd.f32 %v979, %v980
        %v982 = vrot.slane %v981, 1
        %v983 = vadd.f32 %v981, %v982
        %v984 = vmul.f32 %v973, %v973
        %v985 = vmul.f32 %v974, %v974
        %v986 = vsel %vm582, %v984, 0.0
        %v987 = vsel %vm582, %v985, 0.0
        %v988 = vadd.f32 %v986, %v987
        %v989 = vrot.slane %v988, 4
        %v990 = vadd.f32 %v988, %v989
        %v991 = vrot.slane %v990, 2
        %v992 = vadd.f32 %v990, %v991
        %v993 = vrot.slane %v992, 1
        %v994 = vadd.f32 %v992, %v993
        %v995 = vsel %vm603, %v983, %v994
        %v996 = vadd.f32 %v604, %v995
        %s997 = scalar_lea.vmem %s171, 8
        %v998 = vld [vmem:[%s997] sm:$0x7]
        %v999 = vld [vmem:[%s997 + $0x4] sm:$0x7]
        %v1000 = vld [vmem:[%s997 + $0x8] sm:$0x7]
        %v1001 = vld [vmem:[%s997 + $0xc] sm:$0x7]
        %v1002 = vld [vmem:[%s997] sm:$0x3]
        %v1003 = vld [vmem:[%s997 + $0x4] sm:$0x3]
        %v1004 = vld [vmem:[%s997 + $0x8] sm:$0x3]
        %v1005 = vld [vmem:[%s997 + $0xc] sm:$0x3]
        %v1006 = vld [vmem:[%s177] sm:$0x7]
        %v1007 = vld [vmem:[%s177 + $0x4] sm:$0x7]
        %v1008 = vld [vmem:[%s177 + $0x8] sm:$0x7]
        %v1009 = vld [vmem:[%s177 + $0xc] sm:$0x7]
        %v1010 = vld [vmem:[%s177] sm:$0x3]
        %v1011 = vld [vmem:[%s177 + $0x4] sm:$0x3]
        %v1012 = vld [vmem:[%s177 + $0x8] sm:$0x3]
        %v1013 = vld [vmem:[%s177 + $0xc] sm:$0x3]
        %v1018 = vunpack.c.l.b16 %v1002
        %v1019 = vunpack.c.l.b16 %v1003
        %v1020 = vunpack.c.l.b16 %v1004
        %v1021 = vunpack.c.l.b16 %v1005
        %v1022 = vpack.c.b16 %v1018, %v1018
        %v1023 = vpack.c.b16 %v1019, %v1019
        %v1024 = vpack.c.b16 %v1020, %v1020
        %v1025 = vpack.c.b16 %v1021, %v1021
        %v1027 = vshrl.u32 %v1022, 16
        %v1029 = vrot.slane %v1027, 7
        %v1030 = vshll.u32 %v1022, 16
        %v1032 = vor.u32 %v1029, %v1030
        %v1034 = vshrl.u32 %v1023, 16
        %v1036 = vrot.slane %v1034, 7
        %v1037 = vshll.u32 %v1023, 16
        %v1039 = vor.u32 %v1036, %v1037
        %v1041 = vshrl.u32 %v1024, 16
        %v1043 = vrot.slane %v1041, 7
        %v1044 = vshll.u32 %v1024, 16
        %v1046 = vor.u32 %v1043, %v1044
        %v1048 = vshrl.u32 %v1025, 16
        %v1050 = vrot.slane %v1048, 7
        %v1051 = vshll.u32 %v1025, 16
        %v1053 = vor.u32 %v1050, %v1051
        %1054 = vrot.lane.b32.xlu0 %v1032, 64
        %v1055 = vpop.permute.xlu0 %1054
        %1056 = vrot.lane.b32.xlu0 %v1039, 64
        %v1057 = vpop.permute.xlu0 %1056
        %1058 = vrot.lane.b32.xlu0 %v1046, 64
        %v1059 = vpop.permute.xlu0 %1058
        %1060 = vrot.lane.b32.xlu0 %v1053, 64
        %v1061 = vpop.permute.xlu0 %1060
        %v1066 = vunpack.c.l.b16 %v1010
        %v1067 = vunpack.c.l.b16 %v1011
        %v1068 = vunpack.c.l.b16 %v1012
        %v1069 = vunpack.c.l.b16 %v1013
        %v1070 = vpack.c.b16 %v1066, %v1066
        %v1071 = vpack.c.b16 %v1067, %v1067
        %v1072 = vpack.c.b16 %v1068, %v1068
        %v1073 = vpack.c.b16 %v1069, %v1069
        %v1075 = vshrl.u32 %v1070, 16
        %v1077 = vrot.slane %v1075, 7
        %v1078 = vshll.u32 %v1070, 16
        %v1080 = vor.u32 %v1077, %v1078
        %v1082 = vshrl.u32 %v1071, 16
        %v1084 = vrot.slane %v1082, 7
        %v1085 = vshll.u32 %v1071, 16
        %v1087 = vor.u32 %v1084, %v1085
        %v1089 = vshrl.u32 %v1072, 16
        %v1091 = vrot.slane %v1089, 7
        %v1092 = vshll.u32 %v1072, 16
        %v1094 = vor.u32 %v1091, %v1092
        %v1096 = vshrl.u32 %v1073, 16
        %v1098 = vrot.slane %v1096, 7
        %v1099 = vshll.u32 %v1073, 16
        %v1101 = vor.u32 %v1098, %v1099
        %1102 = vrot.lane.b32.xlu0 %v1080, 64
        %v1103 = vpop.permute.xlu0 %1102
        %1104 = vrot.lane.b32.xlu0 %v1087, 64
        %v1105 = vpop.permute.xlu0 %1104
        %1106 = vrot.lane.b32.xlu0 %v1094, 64
        %v1107 = vpop.permute.xlu0 %1106
        %1108 = vrot.lane.b32.xlu0 %v1101, 64
        %v1109 = vpop.permute.xlu0 %1108
        %v1112 = vsel %vm290, %v998, %v1055
        %v1115 = vsel %vm290, %v999, %v1057
        %v1118 = vsel %vm290, %v1000, %v1059
        %v1121 = vsel %vm290, %v1001, %v1061
        %v1124 = vsel %vm290, %v1006, %v1103
        %v1127 = vsel %vm290, %v1007, %v1105
        %v1130 = vsel %vm290, %v1008, %v1107
        %v1133 = vsel %vm290, %v1009, %v1109
        %v1138 = vrot.slane %v1124, 6
        %v1139 = vrot.slane %v1127, 6
        %v1140 = vrot.slane %v1130, 6
        %v1141 = vrot.slane %v1133, 6
        %v1143 = vsel %vm323, %v1112, %v1138
        %v1144 = vsel %vm326, %v1112, %v1138
        %v1146 = vrot.slane %v1144, 2
        %v1148 = vsel %vm323, %v1115, %v1139
        %v1149 = vsel %vm326, %v1115, %v1139
        %v1151 = vrot.slane %v1149, 2
        %v1153 = vsel %vm323, %v1118, %v1140
        %v1154 = vsel %vm326, %v1118, %v1140
        %v1156 = vrot.slane %v1154, 2
        %v1158 = vsel %vm323, %v1121, %v1141
        %v1159 = vsel %vm326, %v1121, %v1141
        %v1161 = vrot.slane %v1159, 2
        %v1162 = vshrl.u32 %v1143, 16
        %v1164 = vrot.slane %v1162, 6
        %v1165 = vshll.u32 %v1143, 16
        %v1167 = vrot.slane %v1165, 7
        %v1168 = vor.u32 %v1164, %v1167
        %v1169 = vrot.slane %v1168, 2
        %v1171 = vshll.u32 %v1146, 16
        %v1173 = vrot.slane %v1171, 7
        %v1174 = vsel %vm351, %v1169, %v1173
        %v1175 = vshrl.u32 %v1148, 16
        %v1177 = vrot.slane %v1175, 6
        %v1178 = vshll.u32 %v1148, 16
        %v1180 = vrot.slane %v1178, 7
        %v1181 = vor.u32 %v1177, %v1180
        %v1182 = vrot.slane %v1181, 2
        %v1184 = vshll.u32 %v1151, 16
        %v1186 = vrot.slane %v1184, 7
        %v1187 = vsel %vm351, %v1182, %v1186
        %v1188 = vshrl.u32 %v1153, 16
        %v1190 = vrot.slane %v1188, 6
        %v1191 = vshll.u32 %v1153, 16
        %v1193 = vrot.slane %v1191, 7
        %v1194 = vor.u32 %v1190, %v1193
        %v1195 = vrot.slane %v1194, 2
        %v1197 = vshll.u32 %v1156, 16
        %v1199 = vrot.slane %v1197, 7
        %v1200 = vsel %vm351, %v1195, %v1199
        %v1201 = vshrl.u32 %v1158, 16
        %v1203 = vrot.slane %v1201, 6
        %v1204 = vshll.u32 %v1158, 16
        %v1206 = vrot.slane %v1204, 7
        %v1207 = vor.u32 %v1203, %v1206
        %v1208 = vrot.slane %v1207, 2
        %v1210 = vshll.u32 %v1161, 16
        %v1212 = vrot.slane %v1210, 7
        %v1213 = vsel %vm351, %v1208, %v1212
        %s1214 = scalar_lea.vmem %s1, 256
        %v1215 = vld [vmem:[%s1214] sm:$0xf]
        %v1216 = vld [vmem:[%s1214 + $0x4] sm:$0xf]
        %v1217 = vld [vmem:[%s1214 + $0x8] sm:$0xf]
        %v1218 = vld [vmem:[%s1214 + $0xc] sm:$0xf]
        %v1219 = vld [vmem:[%s1214 + $0x10] sm:$0xf]
        %v1220 = vld [vmem:[%s1214 + $0x14] sm:$0xf]
        %v1221 = vld [vmem:[%s1214 + $0x18] sm:$0xf]
        %v1222 = vld [vmem:[%s1214 + $0x1c] sm:$0xf]
        %v1223 = vld [vmem:[%s1214 + $0x20] sm:$0xf]
        %v1224 = vld [vmem:[%s1214 + $0x24] sm:$0xf]
        %v1225 = vld [vmem:[%s1214 + $0x28] sm:$0xf]
        %v1226 = vld [vmem:[%s1214 + $0x2c] sm:$0xf]
        %v1227 = vld [vmem:[%s1214 + $0x30] sm:$0xf]
        %v1228 = vld [vmem:[%s1214 + $0x34] sm:$0xf]
        %v1229 = vld [vmem:[%s1214 + $0x38] sm:$0xf]
        %v1230 = vld [vmem:[%s1214 + $0x3c] sm:$0xf]
        %v1231 = vld [vmem:[%s1214 + $0x40] sm:$0xf]
        %v1232 = vld [vmem:[%s1214 + $0x44] sm:$0xf]
        %v1233 = vld [vmem:[%s1214 + $0x48] sm:$0xf]
        %v1234 = vld [vmem:[%s1214 + $0x4c] sm:$0xf]
        %v1235 = vld [vmem:[%s1214 + $0x50] sm:$0xf]
        %v1236 = vld [vmem:[%s1214 + $0x54] sm:$0xf]
        %v1237 = vld [vmem:[%s1214 + $0x58] sm:$0xf]
        %v1238 = vld [vmem:[%s1214 + $0x5c] sm:$0xf]
        %v1239 = vld [vmem:[%s1214 + $0x60] sm:$0xf]
        %v1240 = vld [vmem:[%s1214 + $0x64] sm:$0xf]
        %v1241 = vld [vmem:[%s1214 + $0x68] sm:$0xf]
        %v1242 = vld [vmem:[%s1214 + $0x6c] sm:$0xf]
        %v1243 = vld [vmem:[%s1214 + $0x70] sm:$0xf]
        %v1244 = vld [vmem:[%s1214 + $0x74] sm:$0xf]
        %v1245 = vld [vmem:[%s1214 + $0x78] sm:$0xf]
        %v1246 = vld [vmem:[%s1214 + $0x7c] sm:$0xf]
        %1248 = vst [vmem:[#allocation1] ss:$4 sm:$0xff] %v1174
        %s1250 = scalar_lea.vmem [#allocation1], 1
        %1251 = vst [vmem:[%s1250] ss:$4 sm:$0xff] %v1187
        %s1253 = scalar_lea.vmem [#allocation1], 2
        %1254 = vst [vmem:[%s1253] ss:$4 sm:$0xff] %v1200
        %s1256 = scalar_lea.vmem [#allocation1], 3
        %1257 = vst [vmem:[%s1256] ss:$4 sm:$0xff] %v1213
        %v1258 = vld.sshfl [vmem:[#allocation1] sm:$0xff pattern:$0x73625140]
        %v1259 = vld.sshfl [vmem:[#allocation1 + $0x8] sm:$0xff pattern:$0x73625140]
        %v1294 = vunpack.c.l.b16 %v1215
        %v1295 = vunpack.c.l.b16 %v1216
        %v1296 = vunpack.c.l.b16 %v1217
        %v1297 = vunpack.c.l.b16 %v1218
        %v1298 = vunpack.c.l.b16 %v1219
        %v1299 = vunpack.c.l.b16 %v1220
        %v1300 = vunpack.c.l.b16 %v1221
        %v1301 = vunpack.c.l.b16 %v1222
        %v1302 = vunpack.c.l.b16 %v1223
        %v1303 = vunpack.c.l.b16 %v1224
        %v1304 = vunpack.c.l.b16 %v1225
        %v1305 = vunpack.c.l.b16 %v1226
        %v1306 = vunpack.c.l.b16 %v1227
        %v1307 = vunpack.c.l.b16 %v1228
        %v1308 = vunpack.c.l.b16 %v1229
        %v1309 = vunpack.c.l.b16 %v1230
        %v1310 = vunpack.c.l.b16 %v1231
        %v1311 = vunpack.c.l.b16 %v1232
        %v1312 = vunpack.c.l.b16 %v1233
        %v1313 = vunpack.c.l.b16 %v1234
        %v1314 = vunpack.c.l.b16 %v1235
        %v1315 = vunpack.c.l.b16 %v1236
        %v1316 = vunpack.c.l.b16 %v1237
        %v1317 = vunpack.c.l.b16 %v1238
        %v1318 = vunpack.c.l.b16 %v1239
        %v1319 = vunpack.c.l.b16 %v1240
        %v1320 = vunpack.c.l.b16 %v1241
        %v1321 = vunpack.c.l.b16 %v1242
        %v1322 = vunpack.c.l.b16 %v1243
        %v1323 = vunpack.c.l.b16 %v1244
        %v1324 = vunpack.c.l.b16 %v1245
        %v1325 = vunpack.c.l.b16 %v1246
        %v1326 = vpack.c.b16 %v1295, %v1294
        %v1327 = vpack.c.b16 %v1297, %v1296
        %v1328 = vpack.c.b16 %v1299, %v1298
        %v1329 = vpack.c.b16 %v1301, %v1300
        %v1330 = vpack.c.b16 %v1303, %v1302
        %v1331 = vpack.c.b16 %v1305, %v1304
        %v1332 = vpack.c.b16 %v1307, %v1306
        %v1333 = vpack.c.b16 %v1309, %v1308
        %v1334 = vpack.c.b16 %v1311, %v1310
        %v1335 = vpack.c.b16 %v1313, %v1312
        %v1336 = vpack.c.b16 %v1315, %v1314
        %v1337 = vpack.c.b16 %v1317, %v1316
        %v1338 = vpack.c.b16 %v1319, %v1318
        %v1339 = vpack.c.b16 %v1321, %v1320
        %v1340 = vpack.c.b16 %v1323, %v1322
        %v1341 = vpack.c.b16 %v1325, %v1324
        %1358 = vmatpush.bf16.msra.mxu0 %v1333
        %1359 = vmatpush.bf16.msra.mxu0 %v1332
        %1360 = vmatpush.bf16.msra.mxu0 %v1331
        %1361 = vmatpush.bf16.msra.mxu0 %v1330
        %1362 = vmatpush.bf16.msra.mxu0 %v1329
        %1363 = vmatpush.bf16.msra.mxu0 %v1328
        %1364 = vmatpush.bf16.msra.mxu0 %v1327
        %1365 = vmatpush.bf16.msra.mxu0 %v1326
        %1366 = vmatmul.bf16.gmra.mxu0 %v1258
        %v1367 = vpop.f32.mrf.mxu0
        %v1368 = vadd.f32 0.0, %v1367
        %v1369 = vpop.f32.mrf.mxu0
        %v1370 = vadd.f32 0.0, %v1369
        %1371 = vdwg.mxu0
        %1372 = vmatpush.bf16.msra.mxu0 %v1341
        %1373 = vmatpush.bf16.msra.mxu0 %v1340
        %1374 = vmatpush.bf16.msra.mxu0 %v1339
        %1375 = vmatpush.bf16.msra.mxu0 %v1338
        %1376 = vmatpush.bf16.msra.mxu0 %v1337
        %1377 = vmatpush.bf16.msra.mxu0 %v1336
        %1378 = vmatpush.bf16.msra.mxu0 %v1335
        %1379 = vmatpush.bf16.msra.mxu0 %v1334
        %1380 = vmatmul.bf16.gmra.mxu0 %v1259
        %v1381 = vpop.f32.mrf.mxu0
        %v1382 = vadd.f32 %v1368, %v1381
        %v1383 = vpop.f32.mrf.mxu0
        %v1384 = vadd.f32 %v1370, %v1383
        %1385 = vdwg.mxu0
        %v1386 = vpack.c.bf16 %v1382, %v1382
        %v1387 = vpack.c.bf16 %v1384, %v1384
        %s1388 = scalar_lea.vmem %s160, 16 [#allocation2]
        %1389 = vst.msk [vmem:[%s1388] sm:$0xf] %vm577, %v1386
        %1390 = vst.msk [vmem:[%s1388 + $0x4] sm:$0xf] %vm577, %v1387
        %v1391 = vunpack.c.l.bf16 %v1386
        %v1392 = vunpack.c.l.bf16 %v1387
        %v1393 = vsel %vm582, %v1391, 0.0
        %v1394 = vsel %vm582, %v1392, 0.0
        %v1395 = vadd.f32 %v1393, %v1394
        %v1396 = vrot.slane %v1395, 4
        %v1397 = vadd.f32 %v1395, %v1396
        %v1398 = vrot.slane %v1397, 2
        %v1399 = vadd.f32 %v1397, %v1398
        %v1400 = vrot.slane %v1399, 1
        %v1401 = vadd.f32 %v1399, %v1400
        %v1402 = vmul.f32 %v1391, %v1391
        %v1403 = vmul.f32 %v1392, %v1392
        %v1404 = vsel %vm582, %v1402, 0.0
        %v1405 = vsel %vm582, %v1403, 0.0
        %v1406 = vadd.f32 %v1404, %v1405
        %v1407 = vrot.slane %v1406, 4
        %v1408 = vadd.f32 %v1406, %v1407
        %v1409 = vrot.slane %v1408, 2
        %v1410 = vadd.f32 %v1408, %v1409
        %v1411 = vrot.slane %v1410, 1
        %v1412 = vadd.f32 %v1410, %v1411
        %v1413 = vsel %vm603, %v1401, %v1412
        %v1414 = vadd.f32 %v996, %v1413
        %v1415 = vld [vmem:[%s997] sm:$0x6]
        %v1416 = vld [vmem:[%s997 + $0x4] sm:$0x6]
        %v1417 = vld [vmem:[%s997 + $0x8] sm:$0x6]
        %v1418 = vld [vmem:[%s997 + $0xc] sm:$0x6]
        %v1419 = vld [vmem:[%s997] sm:$0x7]
        %v1420 = vld [vmem:[%s997 + $0x4] sm:$0x7]
        %v1421 = vld [vmem:[%s997 + $0x8] sm:$0x7]
        %v1422 = vld [vmem:[%s997 + $0xc] sm:$0x7]
        %v1423 = vld [vmem:[%s177] sm:$0x6]
        %v1424 = vld [vmem:[%s177 + $0x4] sm:$0x6]
        %v1425 = vld [vmem:[%s177 + $0x8] sm:$0x6]
        %v1426 = vld [vmem:[%s177 + $0xc] sm:$0x6]
        %v1427 = vld [vmem:[%s177] sm:$0x7]
        %v1428 = vld [vmem:[%s177 + $0x4] sm:$0x7]
        %v1429 = vld [vmem:[%s177 + $0x8] sm:$0x7]
        %v1430 = vld [vmem:[%s177 + $0xc] sm:$0x7]
        %v1435 = vunpack.c.l.b16 %v1419
        %v1436 = vunpack.c.l.b16 %v1420
        %v1437 = vunpack.c.l.b16 %v1421
        %v1438 = vunpack.c.l.b16 %v1422
        %v1439 = vpack.c.b16 %v1435, %v1435
        %v1440 = vpack.c.b16 %v1436, %v1436
        %v1441 = vpack.c.b16 %v1437, %v1437
        %v1442 = vpack.c.b16 %v1438, %v1438
        %v1444 = vshrl.u32 %v1439, 16
        %v1446 = vrot.slane %v1444, 7
        %v1447 = vshll.u32 %v1439, 16
        %v1449 = vor.u32 %v1446, %v1447
        %v1451 = vshrl.u32 %v1440, 16
        %v1453 = vrot.slane %v1451, 7
        %v1454 = vshll.u32 %v1440, 16
        %v1456 = vor.u32 %v1453, %v1454
        %v1458 = vshrl.u32 %v1441, 16
        %v1460 = vrot.slane %v1458, 7
        %v1461 = vshll.u32 %v1441, 16
        %v1463 = vor.u32 %v1460, %v1461
        %v1465 = vshrl.u32 %v1442, 16
        %v1467 = vrot.slane %v1465, 7
        %v1468 = vshll.u32 %v1442, 16
        %v1470 = vor.u32 %v1467, %v1468
        %1471 = vrot.lane.b32.xlu0 %v1449, 64
        %v1472 = vpop.permute.xlu0 %1471
        %1473 = vrot.lane.b32.xlu0 %v1456, 64
        %v1474 = vpop.permute.xlu0 %1473
        %1475 = vrot.lane.b32.xlu0 %v1463, 64
        %v1476 = vpop.permute.xlu0 %1475
        %1477 = vrot.lane.b32.xlu0 %v1470, 64
        %v1478 = vpop.permute.xlu0 %1477
        %v1483 = vunpack.c.l.b16 %v1427
        %v1484 = vunpack.c.l.b16 %v1428
        %v1485 = vunpack.c.l.b16 %v1429
        %v1486 = vunpack.c.l.b16 %v1430
        %v1487 = vpack.c.b16 %v1483, %v1483
        %v1488 = vpack.c.b16 %v1484, %v1484
        %v1489 = vpack.c.b16 %v1485, %v1485
        %v1490 = vpack.c.b16 %v1486, %v1486
        %v1492 = vshrl.u32 %v1487, 16
        %v1494 = vrot.slane %v1492, 7
        %v1495 = vshll.u32 %v1487, 16
        %v1497 = vor.u32 %v1494, %v1495
        %v1499 = vshrl.u32 %v1488, 16
        %v1501 = vrot.slane %v1499, 7
        %v1502 = vshll.u32 %v1488, 16
        %v1504 = vor.u32 %v1501, %v1502
        %v1506 = vshrl.u32 %v1489, 16
        %v1508 = vrot.slane %v1506, 7
        %v1509 = vshll.u32 %v1489, 16
        %v1511 = vor.u32 %v1508, %v1509
        %v1513 = vshrl.u32 %v1490, 16
        %v1515 = vrot.slane %v1513, 7
        %v1516 = vshll.u32 %v1490, 16
        %v1518 = vor.u32 %v1515, %v1516
        %1519 = vrot.lane.b32.xlu0 %v1497, 64
        %v1520 = vpop.permute.xlu0 %1519
        %1521 = vrot.lane.b32.xlu0 %v1504, 64
        %v1522 = vpop.permute.xlu0 %1521
        %1523 = vrot.lane.b32.xlu0 %v1511, 64
        %v1524 = vpop.permute.xlu0 %1523
        %1525 = vrot.lane.b32.xlu0 %v1518, 64
        %v1526 = vpop.permute.xlu0 %1525
        %v1529 = vsel %vm290, %v1415, %v1472
        %v1532 = vsel %vm290, %v1416, %v1474
        %v1535 = vsel %vm290, %v1417, %v1476
        %v1538 = vsel %vm290, %v1418, %v1478
        %v1541 = vsel %vm290, %v1423, %v1520
        %v1544 = vsel %vm290, %v1424, %v1522
        %v1547 = vsel %vm290, %v1425, %v1524
        %v1550 = vsel %vm290, %v1426, %v1526
        %v1555 = vrot.slane %v1541, 6
        %v1556 = vrot.slane %v1544, 6
        %v1557 = vrot.slane %v1547, 6
        %v1558 = vrot.slane %v1550, 6
        %v1560 = vsel %vm323, %v1529, %v1555
        %v1562 = vsel %vm326, %v1529, %v1555
        %v1564 = vrot.slane %v1562, 2
        %v1566 = vsel %vm323, %v1532, %v1556
        %v1568 = vsel %vm326, %v1532, %v1556
        %v1570 = vrot.slane %v1568, 2
        %v1572 = vsel %vm323, %v1535, %v1557
        %v1574 = vsel %vm326, %v1535, %v1557
        %v1576 = vrot.slane %v1574, 2
        %v1578 = vsel %vm323, %v1538, %v1558
        %v1580 = vsel %vm326, %v1538, %v1558
        %v1582 = vrot.slane %v1580, 2
        %v1583 = vrot.slane %v1560, 7
        %v1584 = vrot.slane %v1583, 2
        %v1585 = vrot.slane %v1564, 7
        %v1586 = vsel %vm779, %v1584, %v1585
        %v1587 = vrot.slane %v1566, 7
        %v1588 = vrot.slane %v1587, 2
        %v1589 = vrot.slane %v1570, 7
        %v1590 = vsel %vm779, %v1588, %v1589
        %v1591 = vrot.slane %v1572, 7
        %v1592 = vrot.slane %v1591, 2
        %v1593 = vrot.slane %v1576, 7
        %v1594 = vsel %vm779, %v1592, %v1593
        %v1595 = vrot.slane %v1578, 7
        %v1596 = vrot.slane %v1595, 2
        %v1597 = vrot.slane %v1582, 7
        %v1598 = vsel %vm779, %v1596, %v1597
        %s1599 = scalar_lea.vmem %s1, 384
        %v1600 = vld [vmem:[%s1599] sm:$0xf]
        %v1601 = vld [vmem:[%s1599 + $0x4] sm:$0xf]
        %v1602 = vld [vmem:[%s1599 + $0x8] sm:$0xf]
        %v1603 = vld [vmem:[%s1599 + $0xc] sm:$0xf]
        %v1604 = vld [vmem:[%s1599 + $0x10] sm:$0xf]
        %v1605 = vld [vmem:[%s1599 + $0x14] sm:$0xf]
        %v1606 = vld [vmem:[%s1599 + $0x18] sm:$0xf]
        %v1607 = vld [vmem:[%s1599 + $0x1c] sm:$0xf]
        %v1608 = vld [vmem:[%s1599 + $0x20] sm:$0xf]
        %v1609 = vld [vmem:[%s1599 + $0x24] sm:$0xf]
        %v1610 = vld [vmem:[%s1599 + $0x28] sm:$0xf]
        %v1611 = vld [vmem:[%s1599 + $0x2c] sm:$0xf]
        %v1612 = vld [vmem:[%s1599 + $0x30] sm:$0xf]
        %v1613 = vld [vmem:[%s1599 + $0x34] sm:$0xf]
        %v1614 = vld [vmem:[%s1599 + $0x38] sm:$0xf]
        %v1615 = vld [vmem:[%s1599 + $0x3c] sm:$0xf]
        %v1616 = vld [vmem:[%s1599 + $0x40] sm:$0xf]
        %v1617 = vld [vmem:[%s1599 + $0x44] sm:$0xf]
        %v1618 = vld [vmem:[%s1599 + $0x48] sm:$0xf]
        %v1619 = vld [vmem:[%s1599 + $0x4c] sm:$0xf]
        %v1620 = vld [vmem:[%s1599 + $0x50] sm:$0xf]
        %v1621 = vld [vmem:[%s1599 + $0x54] sm:$0xf]
        %v1622 = vld [vmem:[%s1599 + $0x58] sm:$0xf]
        %v1623 = vld [vmem:[%s1599 + $0x5c] sm:$0xf]
        %v1624 = vld [vmem:[%s1599 + $0x60] sm:$0xf]
        %v1625 = vld [vmem:[%s1599 + $0x64] sm:$0xf]
        %v1626 = vld [vmem:[%s1599 + $0x68] sm:$0xf]
        %v1627 = vld [vmem:[%s1599 + $0x6c] sm:$0xf]
        %v1628 = vld [vmem:[%s1599 + $0x70] sm:$0xf]
        %v1629 = vld [vmem:[%s1599 + $0x74] sm:$0xf]
        %v1630 = vld [vmem:[%s1599 + $0x78] sm:$0xf]
        %v1631 = vld [vmem:[%s1599 + $0x7c] sm:$0xf]
        %1633 = vst [vmem:[#allocation1] ss:$4 sm:$0xff] %v1586
        %s1635 = scalar_lea.vmem [#allocation1], 1
        %1636 = vst [vmem:[%s1635] ss:$4 sm:$0xff] %v1590
        %s1638 = scalar_lea.vmem [#allocation1], 2
        %1639 = vst [vmem:[%s1638] ss:$4 sm:$0xff] %v1594
        %s1641 = scalar_lea.vmem [#allocation1], 3
        %1642 = vst [vmem:[%s1641] ss:$4 sm:$0xff] %v1598
        %v1643 = vld.sshfl [vmem:[#allocation1] sm:$0xff pattern:$0x73625140]
        %v1644 = vld.sshfl [vmem:[#allocation1 + $0x8] sm:$0xff pattern:$0x73625140]
        %v1679 = vunpack.c.l.b16 %v1600
        %v1680 = vunpack.c.l.b16 %v1601
        %v1681 = vunpack.c.l.b16 %v1602
        %v1682 = vunpack.c.l.b16 %v1603
        %v1683 = vunpack.c.l.b16 %v1604
        %v1684 = vunpack.c.l.b16 %v1605
        %v1685 = vunpack.c.l.b16 %v1606
        %v1686 = vunpack.c.l.b16 %v1607
        %v1687 = vunpack.c.l.b16 %v1608
        %v1688 = vunpack.c.l.b16 %v1609
        %v1689 = vunpack.c.l.b16 %v1610
        %v1690 = vunpack.c.l.b16 %v1611
        %v1691 = vunpack.c.l.b16 %v1612
        %v1692 = vunpack.c.l.b16 %v1613
        %v1693 = vunpack.c.l.b16 %v1614
        %v1694 = vunpack.c.l.b16 %v1615
        %v1695 = vunpack.c.l.b16 %v1616
        %v1696 = vunpack.c.l.b16 %v1617
        %v1697 = vunpack.c.l.b16 %v1618
        %v1698 = vunpack.c.l.b16 %v1619
        %v1699 = vunpack.c.l.b16 %v1620
        %v1700 = vunpack.c.l.b16 %v1621
        %v1701 = vunpack.c.l.b16 %v1622
        %v1702 = vunpack.c.l.b16 %v1623
        %v1703 = vunpack.c.l.b16 %v1624
        %v1704 = vunpack.c.l.b16 %v1625
        %v1705 = vunpack.c.l.b16 %v1626
        %v1706 = vunpack.c.l.b16 %v1627
        %v1707 = vunpack.c.l.b16 %v1628
        %v1708 = vunpack.c.l.b16 %v1629
        %v1709 = vunpack.c.l.b16 %v1630
        %v1710 = vunpack.c.l.b16 %v1631
        %v1711 = vpack.c.b16 %v1680, %v1679
        %v1712 = vpack.c.b16 %v1682, %v1681
        %v1713 = vpack.c.b16 %v1684, %v1683
        %v1714 = vpack.c.b16 %v1686, %v1685
        %v1715 = vpack.c.b16 %v1688, %v1687
        %v1716 = vpack.c.b16 %v1690, %v1689
        %v1717 = vpack.c.b16 %v1692, %v1691
        %v1718 = vpack.c.b16 %v1694, %v1693
        %v1719 = vpack.c.b16 %v1696, %v1695
        %v1720 = vpack.c.b16 %v1698, %v1697
        %v1721 = vpack.c.b16 %v1700, %v1699
        %v1722 = vpack.c.b16 %v1702, %v1701
        %v1723 = vpack.c.b16 %v1704, %v1703
        %v1724 = vpack.c.b16 %v1706, %v1705
        %v1725 = vpack.c.b16 %v1708, %v1707
        %v1726 = vpack.c.b16 %v1710, %v1709
        %1743 = vmatpush.bf16.msra.mxu0 %v1718
        %1744 = vmatpush.bf16.msra.mxu0 %v1717
        %1745 = vmatpush.bf16.msra.mxu0 %v1716
        %1746 = vmatpush.bf16.msra.mxu0 %v1715
        %1747 = vmatpush.bf16.msra.mxu0 %v1714
        %1748 = vmatpush.bf16.msra.mxu0 %v1713
        %1749 = vmatpush.bf16.msra.mxu0 %v1712
        %1750 = vmatpush.bf16.msra.mxu0 %v1711
        %1751 = vmatmul.bf16.gmra.mxu0 %v1643
        %v1752 = vpop.f32.mrf.mxu0
        %v1753 = vadd.f32 0.0, %v1752
        %v1754 = vpop.f32.mrf.mxu0
        %v1755 = vadd.f32 0.0, %v1754
        %1756 = vdwg.mxu0
        %1757 = vmatpush.bf16.msra.mxu0 %v1726
        %1758 = vmatpush.bf16.msra.mxu0 %v1725
        %1759 = vmatpush.bf16.msra.mxu0 %v1724
        %1760 = vmatpush.bf16.msra.mxu0 %v1723
        %1761 = vmatpush.bf16.msra.mxu0 %v1722
        %1762 = vmatpush.bf16.msra.mxu0 %v1721
        %1763 = vmatpush.bf16.msra.mxu0 %v1720
        %1764 = vmatpush.bf16.msra.mxu0 %v1719
        %1765 = vmatmul.bf16.gmra.mxu0 %v1644
        %v1766 = vpop.f32.mrf.mxu0
        %v1767 = vadd.f32 %v1753, %v1766
        %v1768 = vpop.f32.mrf.mxu0
        %v1769 = vadd.f32 %v1755, %v1768
        %1770 = vdwg.mxu0
        %v1771 = vpack.c.bf16 %v1767, %v1767
        %v1772 = vpack.c.bf16 %v1769, %v1769
        %s1773 = scalar_lea.vmem %s160, 24 [#allocation2]
        %1774 = vst.msk [vmem:[%s1773] sm:$0xf] %vm577, %v1771
        %1775 = vst.msk [vmem:[%s1773 + $0x4] sm:$0xf] %vm577, %v1772
        %v1776 = vunpack.c.l.bf16 %v1771
        %v1777 = vunpack.c.l.bf16 %v1772
        %v1778 = vsel %vm582, %v1776, 0.0
        %v1779 = vsel %vm582, %v1777, 0.0
        %v1780 = vadd.f32 %v1778, %v1779
        %v1781 = vrot.slane %v1780, 4
        %v1782 = vadd.f32 %v1780, %v1781
        %v1783 = vrot.slane %v1782, 2
        %v1784 = vadd.f32 %v1782, %v1783
        %v1785 = vrot.slane %v1784, 1
        %v1786 = vadd.f32 %v1784, %v1785
        %v1787 = vmul.f32 %v1776, %v1776
        %v1788 = vmul.f32 %v1777, %v1777
        %v1789 = vsel %vm582, %v1787, 0.0
        %v1790 = vsel %vm582, %v1788, 0.0
        %v1791 = vadd.f32 %v1789, %v1790
        %v1792 = vrot.slane %v1791, 4
        %v1793 = vadd.f32 %v1791, %v1792
        %v1794 = vrot.slane %v1793, 2
        %v1795 = vadd.f32 %v1793, %v1794
        %v1796 = vrot.slane %v1795, 1
        %v1797 = vadd.f32 %v1795, %v1796
        %v1798 = vsel %vm603, %v1786, %v1797
        %v1799 = vadd.f32 %v1414, %v1798
        %vm1800 = vcmask 254976
        %1801 = vst.msk [vmem:[%s176] sm:$0x3] %vm1800, %v1799
        %s1802 = sand.u32 %s70, 1
        %s1803 = sand.u32 %s70, 1
        %s1804 = smul.addr %s1803, 32
        %s1805 = scalar_lea.vmem [#allocation2], %s1804
        %p1806 = scmp.lt.s32.totalorder %s15, 1
        %s1807 = scalar_select %p1806, %s15, 1
        %s1808 = smul.addr %s1807, 2
        %s1809 = scalar_lea.vmem %s3, %s1808
        // Predicated region
        $region29: #{generator_forward.7} parent=27 // pred_check
          %p1810 = pneg %p80
        $region30: #{generator_forward.7} parent=27 // pred_check_branch
          %1812 = sbr.rel (%p1810) target = $region32
        $region31: #{generator_forward.7} parent=27 // pred_region
          %s1813 = smul.u32 2, %s15
          %s1814 = smul.addr %s1813, 4
          %s1815 = scalar_lea.vmem %s2, %s1814
          // Predicated region
          $region33: #{generator_forward.7} parent=31 // pred_check
            _
          $region34: #{generator_forward.7} parent=31 // pred_check_branch
            %1817 = sbr.rel (0) target = $region36
          $region35: #{generator_forward.7} parent=31 // pred_region
            // Predicated region
            $region37: #{generator_forward.7} parent=35 // pred_check
              _
            $region38: #{generator_forward.7} parent=35 // pred_check_branch
              %1819 = sbr.rel target = $region40
            $region39: #{generator_forward.7} parent=35 // pred_region
              // Predicated region
              $region52: #{generator_forward.7} parent=39 // pred_check
                _
              $region53: #{generator_forward.7} parent=39 // pred_check_branch
                %1849 = sbr.rel (0) target = $region55
              $region54: #{generator_forward.7} parent=39 // pred_region
                loop: start=0, step=1, limit=1
                $region56: #{generator_forward.7} parent=54 // loop_pre_header
                  _
                $region57: #{generator_forward.7} parent=54 // loop_header
                  %s1851 = sphi 0, %s1855
                  %p1852 = scmp.ge.s32.totalorder %s1851, 1
                  %s1856 = sphi %s1805, %s1805
                  %s1857 = sphi %s1815, %s1815
                $region58: #{generator_forward.7} parent=54 // loop_header_branch
                  %1854 = sbr.rel (%p1852) target = $region62
                $region59: #{generator_forward.7} parent=54 // loop_body
                  _
                $region60: #{generator_forward.7} parent=54 // loop_footer
                  %s1855 = sadd.s32 1, %s1851
                $region61: #{generator_forward.7} parent=54 // loop_footer_branch
                  %1850 = sbr.rel target = $region57
                $region62: #{generator_forward.7} parent=54 // loop_exit
                  _
                %s1859 = ssub.s32 16, 1
                loop: start=0, step=1, limit=1
                $region63: #{generator_forward.7} parent=54 // loop_pre_header
                  _
                $region64: #{generator_forward.7} parent=54 // loop_header
                  %s1861 = sphi 0, %s1865
                  %p1862 = scmp.ge.s32.totalorder %s1861, 1
                  %s1866 = sphi %s1805, %s1805
                  %s1867 = sphi %s1815, %s1815
                $region65: #{generator_forward.7} parent=54 // loop_header_branch
                  %1864 = sbr.rel (%p1862) target = $region69
                $region66: #{generator_forward.7} parent=54 // loop_body
                  %v1868 = vld [vmem:[%s1866] sm:%s1859]
                  %1869 = vst [vmem:[%s1867] sm:%s1859] %v1868
                  %v1870 = vld [vmem:[%s1866 + $0x4] sm:%s1859]
                  %1871 = vst [vmem:[%s1867 + $0x4] sm:%s1859] %v1870
                  %v1872 = vld [vmem:[%s1866 + $0x8] sm:%s1859]
                  %1873 = vst [vmem:[%s1867 + $0x10] sm:%s1859] %v1872
                  %v1874 = vld [vmem:[%s1866 + $0xc] sm:%s1859]
                  %1875 = vst [vmem:[%s1867 + $0x14] sm:%s1859] %v1874
                  %v1876 = vld [vmem:[%s1866 + $0x10] sm:%s1859]
                  %1877 = vst [vmem:[%s1867 + $0x20] sm:%s1859] %v1876
                  %v1878 = vld [vmem:[%s1866 + $0x14] sm:%s1859]
                  %1879 = vst [vmem:[%s1867 + $0x24] sm:%s1859] %v1878
                  %v1880 = vld [vmem:[%s1866 + $0x18] sm:%s1859]
                  %1881 = vst [vmem:[%s1867 + $0x30] sm:%s1859] %v1880
                  %v1882 = vld [vmem:[%s1866 + $0x1c] sm:%s1859]
                  %1883 = vst [vmem:[%s1867 + $0x34] sm:%s1859] %v1882
                $region67: #{generator_forward.7} parent=54 // loop_footer
                  %s1865 = sadd.s32 1, %s1861
                $region68: #{generator_forward.7} parent=54 // loop_footer_branch
                  %1860 = sbr.rel target = $region64
                $region69: #{generator_forward.7} parent=54 // loop_exit
                  _
              $region55: #{generator_forward.7} parent=39 // pred_fallthru
                _
            $region40: #{generator_forward.7} parent=35 // pred_fallthru
              _
            // Predicated region
            $region41: #{generator_forward.7} parent=35 // pred_check
              _
            $region42: #{generator_forward.7} parent=35 // pred_check_branch
              %1821 = sbr.rel (0) target = $region44
            $region43: #{generator_forward.7} parent=35 // pred_region
              %s1823 = ssub.s32 16, 1
              loop: start=0, step=1, limit=1
              $region45: #{generator_forward.7} parent=43 // loop_pre_header
                _
              $region46: #{generator_forward.7} parent=43 // loop_header
                %s1825 = sphi 0, %s1829
                %p1826 = scmp.ge.s32.totalorder %s1825, 1
                %s1830 = sphi %s1805, %s1805
                %s1831 = sphi %s1815, %s1815
              $region47: #{generator_forward.7} parent=43 // loop_header_branch
                %1828 = sbr.rel (%p1826) target = $region51
              $region48: #{generator_forward.7} parent=43 // loop_body
                %v1832 = vld [vmem:[%s1830] sm:%s1823]
                %1833 = vst [vmem:[%s1831] sm:%s1823] %v1832
                %v1834 = vld [vmem:[%s1830 + $0x4] sm:%s1823]
                %1835 = vst [vmem:[%s1831 + $0x4] sm:%s1823] %v1834
                %v1836 = vld [vmem:[%s1830 + $0x8] sm:%s1823]
                %1837 = vst [vmem:[%s1831 + $0x10] sm:%s1823] %v1836
                %v1838 = vld [vmem:[%s1830 + $0xc] sm:%s1823]
                %1839 = vst [vmem:[%s1831 + $0x14] sm:%s1823] %v1838
                %v1840 = vld [vmem:[%s1830 + $0x10] sm:%s1823]
                %1841 = vst [vmem:[%s1831 + $0x20] sm:%s1823] %v1840
                %v1842 = vld [vmem:[%s1830 + $0x14] sm:%s1823]
                %1843 = vst [vmem:[%s1831 + $0x24] sm:%s1823] %v1842
                %v1844 = vld [vmem:[%s1830 + $0x18] sm:%s1823]
                %1845 = vst [vmem:[%s1831 + $0x30] sm:%s1823] %v1844
                %v1846 = vld [vmem:[%s1830 + $0x1c] sm:%s1823]
                %1847 = vst [vmem:[%s1831 + $0x34] sm:%s1823] %v1846
              $region49: #{generator_forward.7} parent=43 // loop_footer
                %s1829 = sadd.s32 1, %s1825
              $region50: #{generator_forward.7} parent=43 // loop_footer_branch
                %1824 = sbr.rel target = $region46
              $region51: #{generator_forward.7} parent=43 // loop_exit
                _
            $region44: #{generator_forward.7} parent=35 // pred_fallthru
              _
          $region36: #{generator_forward.7} parent=31 // pred_fallthru
            _
          %1884 = vnop
        $region32: #{generator_forward.7} parent=27 // pred_fallthru
          _
        // Predicated region
        $region70: #{generator_forward.7} parent=27 // pred_check
          %p1885 = pneg %p106
        $region71: #{generator_forward.7} parent=27 // pred_check_branch
          %1887 = sbr.rel (%p1885) target = $region73
        $region72: #{generator_forward.7} parent=27 // pred_region
          _
        $region73: #{generator_forward.7} parent=27 // pred_fallthru
          _
      $region28: #{generator_forward.7} parent=5 // pred_fallthru
        _
      %p1888 = scmp.le.s32.totalorder 2, %s10
      // Predicated region
      $region74: #{generator_forward.7} parent=5 // pred_check
        %p1889 = pneg %p1888
      $region75: #{generator_forward.7} parent=5 // pred_check_branch
        %1891 = sbr.rel (%p1889) target = $region77
      $region76: #{generator_forward.7} parent=5 // pred_region
        %s1892 = ssub.s32 %s10, 2
        // Predicated region
        $region78: #{generator_forward.7} parent=76 // pred_check
          %p1893 = pneg %p86
        $region79: #{generator_forward.7} parent=76 // pred_check_branch
          %1895 = sbr.rel (%p1893) target = $region81
        $region80: #{generator_forward.7} parent=76 // pred_region
          %s1896 = sand.u32 %s71, 1
          %s1897 = sand.u32 %s71, 1
          %s1898 = smul.addr %s1897, 32
          %s1899 = scalar_lea.vmem [#allocation2], %s1898
        $region81: #{generator_forward.7} parent=76 // pred_fallthru
          _
        // Predicated region
        $region82: #{generator_forward.7} parent=76 // pred_check
          %p1900 = pneg %p112
        $region83: #{generator_forward.7} parent=76 // pred_check_branch
          %1902 = sbr.rel (%p1900) target = $region85
        $region84: #{generator_forward.7} parent=76 // pred_region
          %p1903 = scmp.lt.s32.totalorder %s16, 1
          %s1904 = scalar_select %p1903, %s16, 1
          %s1905 = smul.addr %s1904, 2
          %s1906 = scalar_lea.vmem %s3, %s1905
        $region85: #{generator_forward.7} parent=76 // pred_fallthru
          _
      $region77: #{generator_forward.7} parent=5 // pred_fallthru
        _
    $region6: #{generator_forward.7} parent=1 // loop_footer
      %s14 = sadd.s32 1, %s10
    $region7: #{generator_forward.7} parent=1 // loop_footer_branch
      %9 = sbr.rel target = $region3
    $region8: #{generator_forward.7} parent=1 // loop_exit
      _

// kernel: generator_forward.9
$region0: #{generator_forward.9}
  #allocation0 [shape = 'u32[]', space=smem, size = 0x4, offset = 0x4, fixed_abs, tag = 'smem constant byte address 0x4 - core index']
  #allocation1 [shape = 'u32[72,128]{1,0:T(1,128)}', space=vmem, size = 0x9000, scoped, tag = 'internal scratch']
  %s0 = inlined_call_operand.vmem [shape: bf16[2,10,10,32], index: 0, kind: input, shape index: {}]
  %s1 = inlined_call_operand.vmem [shape: bf16[4,128,128], index: 1, kind: input, shape index: {}]
  %s2 = inlined_call_operand.vmem [shape: f32[4,128,128], index: 2, kind: output, shape index: {}]
  %s3 = sld [smem:[#allocation0]]
  $region75: #{generator_forward.9} parent=0
    _
  %s5 = ssub.s32 1, %s3
  %s6 = scalar_select 0, %s5, %s3
  $region1: #{generator_forward.9} parent=0
    #allocation2 [shape = 'u8[262144]{0}', space=vmem, size = 0x40000, scoped, tag = 'output window, operand 0']
    loop: start=0, step=1, limit=4
    $region2: #{generator_forward.9} parent=1 // loop_pre_header
      _
    $region3: #{generator_forward.9} parent=1 // loop_header
      %s8 = sphi 0, %s12
      %p9 = scmp.ge.s32.totalorder %s8, 4
      %s18 = sphi 0, %s20
      %s21 = sphi 0, %s18
      %s22 = sphi 0, %s21
      %s38 = sphi 0, %s22
      %s42 = sphi 0, %s42
      %s44 = sphi 0, %s42
      %s45 = sphi 0, %s44
      %s59 = sphi 0, %s45
      %s65 = sphi 0, %s67
      %s68 = sphi 0, %s65
      %s69 = sphi 0, %s68
      %s85 = sphi 0, %s69
    $region4: #{generator_forward.9} parent=1 // loop_header_branch
      %11 = sbr.rel (%p9) target = $region8
    $region5: #{generator_forward.9} parent=1 // loop_body
      %s13 = ssub.s32 %s8, 1
      %s14 = ssub.s32 %s8, 2
      %s15 = sadd.s32 %s8, 1
      %s16 = ssub.s32 %s8, %s15
      %p17 = scmp.eq.s32.totalorder %s16, 0
      %s19 = sadd.s32 %s18, 1
      %s20 = scalar_select %p17, %s18, %s19
      %p23 = pneg %p17
      %p24 = scmp.eq.s32.totalorder %s8, 1
      %p25 = por %p23, %p24
      %p26 = scmp.ne.s32.totalorder %s18, %s21
      %p27 = scmp.eq.s32.totalorder %s8, 0
      %p28 = por %p26, %p27
      %p29 = scmp.ne.s32.totalorder %s18, %s21
      %p30 = scmp.eq.s32.totalorder %s13, 1
      %p31 = por %p29, %p30
      %p32 = scmp.ne.s32.totalorder %s21, %s22
      %p33 = scmp.eq.s32.totalorder %s13, 0
      %p34 = por %p32, %p33
      %p35 = scmp.ne.s32.totalorder %s21, %s22
      %p36 = scmp.eq.s32.totalorder %s14, 1
      %p37 = por %p35, %p36
      %p39 = scmp.ne.s32.totalorder %s22, %s38
      %p40 = scmp.eq.s32.totalorder %s14, 0
      %p41 = por %p39, %p40
      %s43 = sadd.s32 %s42, 1
      %p46 = scmp.eq.s32.totalorder %s8, 1
      %p47 = scmp.ne.s32.totalorder %s42, %s44
      %p48 = scmp.eq.s32.totalorder %s8, 0
      %p49 = por %p47, %p48
      %p50 = scmp.ne.s32.totalorder %s42, %s44
      %p51 = scmp.eq.s32.totalorder %s13, 1
      %p52 = por %p50, %p51
      %p53 = scmp.ne.s32.totalorder %s44, %s45
      %p54 = scmp.eq.s32.totalorder %s13, 0
      %p55 = por %p53, %p54
      %p56 = scmp.ne.s32.totalorder %s44, %s45
      %p57 = scmp.eq.s32.totalorder %s14, 1
      %p58 = por %p56, %p57
      %p60 = scmp.ne.s32.totalorder %s45, %s59
      %p61 = scmp.eq.s32.totalorder %s14, 0
      %p62 = por %p60, %p61
      %s63 = ssub.s32 %s8, %s15
      %p64 = scmp.eq.s32.totalorder %s63, 0
      %s66 = sadd.s32 %s65, 1
      %s67 = scalar_select %p64, %s65, %s66
      %p70 = pneg %p64
      %p71 = scmp.eq.s32.totalorder %s8, 1
      %p72 = por %p70, %p71
      %p73 = scmp.ne.s32.totalorder %s65, %s68
      %p74 = scmp.eq.s32.totalorder %s8, 0
      %p75 = por %p73, %p74
      %p76 = scmp.ne.s32.totalorder %s65, %s68
      %p77 = scmp.eq.s32.totalorder %s13, 1
      %p78 = por %p76, %p77
      %p79 = scmp.ne.s32.totalorder %s68, %s69
      %p80 = scmp.eq.s32.totalorder %s13, 0
      %p81 = por %p79, %p80
      %p82 = scmp.ne.s32.totalorder %s68, %s69
      %p83 = scmp.eq.s32.totalorder %s14, 1
      %p84 = por %p82, %p83
      %p86 = scmp.ne.s32.totalorder %s69, %s85
      %p87 = scmp.eq.s32.totalorder %s14, 0
      %p88 = por %p86, %p87
      %p89 = scmp.le.s32.totalorder 1, %s8
      %p90 = scmp.lt.s32.totalorder %s8, 3
      %p91 = pnand %p89, %p90
      %p92 = pneg %p91
      // Predicated region
      $region9: #{generator_forward.9} parent=5 // pred_check
        _
      $region10: #{generator_forward.9} parent=5 // pred_check_branch
        %94 = sbr.rel (%p91) target = $region12
      $region11: #{generator_forward.9} parent=5 // pred_region
        %s95 = ssub.s32 %s8, 1
        // Predicated region
        $region13: #{generator_forward.9} parent=11 // pred_check
          %p96 = pneg %p55
        $region14: #{generator_forward.9} parent=11 // pred_check_branch
          %98 = sbr.rel (%p96) target = $region16
        $region15: #{generator_forward.9} parent=11 // pred_region
          _
        $region16: #{generator_forward.9} parent=11 // pred_fallthru
          _
      $region12: #{generator_forward.9} parent=5 // pred_fallthru
        _
      %p99 = scmp.lt.s32.totalorder %s8, 2
      // Predicated region
      $region17: #{generator_forward.9} parent=5 // pred_check
        %p100 = pneg %p99
      $region18: #{generator_forward.9} parent=5 // pred_check_branch
        %102 = sbr.rel (%p100) target = $region20
      $region19: #{generator_forward.9} parent=5 // pred_region
        // Predicated region
        $region21: #{generator_forward.9} parent=19 // pred_check
          %p103 = pneg %p28
        $region22: #{generator_forward.9} parent=19 // pred_check_branch
          %105 = sbr.rel (%p103) target = $region24
        $region23: #{generator_forward.9} parent=19 // pred_region
          %p106 = scmp.lt.s32.totalorder %s8, 1
          %s107 = scalar_select %p106, %s8, 1
          %s108 = smul.addr %s107, 20
          %s109 = smul.addr %s108, 4
          %s110 = scalar_lea.vmem %s0, %s109
        $region24: #{generator_forward.9} parent=19 // pred_fallthru
          _
      $region20: #{generator_forward.9} parent=5 // pred_fallthru
        _
      %p111 = scmp.le.s32.totalorder 1, %s8
      %p112 = scmp.lt.s32.totalorder %s8, 3
      %p113 = pnand %p111, %p112
      %p114 = pneg %p113
      // Predicated region
      $region25: #{generator_forward.9} parent=5 // pred_check
        _
      $region26: #{generator_forward.9} parent=5 // pred_check_branch
        %116 = sbr.rel (%p113) target = $region28
      $region27: #{generator_forward.9} parent=5 // pred_region
        %s117 = ssub.s32 %s8, 1
        %p118 = scmp.lt.s32.totalorder %s13, 1
        %s119 = scalar_select %p118, %s13, 1
        %s120 = smul.addr %s119, 20
        %s121 = smul.addr %s120, 4
        %s122 = scalar_lea.vmem %s0, %s121
        %p123 = pneg %p34
        %p124 = pneg %p31
        %p125 = pneg %p55
        %p126 = pneg %p52
        %p127 = pneg %p81
        %p128 = pneg %p78
        %s129 = sand.u32 %s68, 1
        %s130 = sand.u32 %s68, 1
        %s131 = smul.addr %s130, 256
        %s132 = scalar_lea.vmem [#allocation2], %s131
        %p133 = scmp.lt.s32.totalorder %s13, 1
        %s134 = scalar_select %p133, %s13, 1
        %s135 = smul.addr %s134, 20
        %s136 = smul.addr %s135, 4
        %s137 = scalar_lea.vmem %s0, %s136
        %s138 = smul.u32 8, %s13
        %s139 = scalar_lea.vmem %s137, 8
        %v140 = vld [vmem:[%s139] sm:$0xf]
        %v141 = vld [vmem:[%s139 + $0x4] sm:$0x1]
        %v142 = vld [vmem:[%s139 + $0x8] sm:$0xf]
        %v143 = vld [vmem:[%s139 + $0xc] sm:$0x1]
        %v144 = vld [vmem:[%s139 + $0x10] sm:$0xf]
        %v145 = vld [vmem:[%s139 + $0x14] sm:$0x1]
        %v146 = vld [vmem:[%s139 + $0x18] sm:$0xf]
        %v147 = vld [vmem:[%s139 + $0x1c] sm:$0x1]
        %v148 = vld [vmem:[%s139 + $0x20] sm:$0xf]
        %v149 = vld [vmem:[%s139 + $0x24] sm:$0x1]
        %v150 = vld [vmem:[%s139 + $0x28] sm:$0xf]
        %v151 = vld [vmem:[%s139 + $0x2c] sm:$0x1]
        %v152 = vld [vmem:[%s139 + $0x30] sm:$0xf]
        %v153 = vld [vmem:[%s139 + $0x34] sm:$0x1]
        %v154 = vld [vmem:[%s139 + $0x38] sm:$0xf]
        %v155 = vld [vmem:[%s139 + $0x3c] sm:$0x1]
        %v156 = vld [vmem:[%s137] sm:$0xf]
        %v157 = vld [vmem:[%s137 + $0x4] sm:$0x1]
        %v158 = vld [vmem:[%s137 + $0x8] sm:$0xf]
        %v159 = vld [vmem:[%s137 + $0xc] sm:$0x1]
        %v160 = vld [vmem:[%s137 + $0x10] sm:$0xf]
        %v161 = vld [vmem:[%s137 + $0x14] sm:$0x1]
        %v162 = vld [vmem:[%s137 + $0x18] sm:$0xf]
        %v163 = vld [vmem:[%s137 + $0x1c] sm:$0x1]
        %v164 = vld [vmem:[%s137 + $0x20] sm:$0xf]
        %v165 = vld [vmem:[%s137 + $0x24] sm:$0x1]
        %v166 = vld [vmem:[%s137 + $0x28] sm:$0xf]
        %v167 = vld [vmem:[%s137 + $0x2c] sm:$0x1]
        %v168 = vld [vmem:[%s137 + $0x30] sm:$0xf]
        %v169 = vld [vmem:[%s137 + $0x34] sm:$0x1]
        %v170 = vld [vmem:[%s137 + $0x38] sm:$0xf]
        %v171 = vld [vmem:[%s137 + $0x3c] sm:$0x1]
        %v188 = vunpack.c.l.b16 %v140
        %v189 = vunpack.c.l.b16 %v141
        %v190 = vunpack.c.l.b16 %v142
        %v191 = vunpack.c.l.b16 %v143
        %v192 = vunpack.c.l.b16 %v144
        %v193 = vunpack.c.l.b16 %v145
        %v194 = vunpack.c.l.b16 %v146
        %v195 = vunpack.c.l.b16 %v147
        %v196 = vunpack.c.l.b16 %v148
        %v197 = vunpack.c.l.b16 %v149
        %v198 = vunpack.c.l.b16 %v150
        %v199 = vunpack.c.l.b16 %v151
        %v200 = vunpack.c.l.b16 %v152
        %v201 = vunpack.c.l.b16 %v153
        %v202 = vunpack.c.l.b16 %v154
        %v203 = vunpack.c.l.b16 %v155
        %v204 = vpack.c.b16 %v189, %v188
        %v205 = vpack.c.b16 %v191, %v190
        %v206 = vpack.c.b16 %v193, %v192
        %v207 = vpack.c.b16 %v195, %v194
        %v208 = vpack.c.b16 %v197, %v196
        %v209 = vpack.c.b16 %v199, %v198
        %v210 = vpack.c.b16 %v201, %v200
        %v211 = vpack.c.b16 %v203, %v202
        %v212 = vpack.c.b16 %v188, %v188
        %v213 = vpack.c.b16 %v190, %v190
        %v214 = vpack.c.b16 %v192, %v192
        %v215 = vpack.c.b16 %v194, %v194
        %v216 = vpack.c.b16 %v196, %v196
        %v217 = vpack.c.b16 %v198, %v198
        %v218 = vpack.c.b16 %v200, %v200
        %v219 = vpack.c.b16 %v202, %v202
        %v221 = vshrl.u32 %v212, 16
        %v223 = vrot.slane %v221, 7
        %v224 = vshll.u32 %v212, 16
        %v226 = vor.u32 %v223, %v224
        %v228 = vshrl.u32 %v213, 16
        %v230 = vrot.slane %v228, 7
        %v231 = vshll.u32 %v213, 16
        %v233 = vor.u32 %v230, %v231
        %v235 = vshrl.u32 %v214, 16
        %v237 = vrot.slane %v235, 7
        %v238 = vshll.u32 %v214, 16
        %v240 = vor.u32 %v237, %v238
        %v242 = vshrl.u32 %v215, 16
        %v244 = vrot.slane %v242, 7
        %v245 = vshll.u32 %v215, 16
        %v247 = vor.u32 %v244, %v245
        %v249 = vshrl.u32 %v216, 16
        %v251 = vrot.slane %v249, 7
        %v252 = vshll.u32 %v216, 16
        %v254 = vor.u32 %v251, %v252
        %v256 = vshrl.u32 %v217, 16
        %v258 = vrot.slane %v256, 7
        %v259 = vshll.u32 %v217, 16
        %v261 = vor.u32 %v258, %v259
        %v263 = vshrl.u32 %v218, 16
        %v265 = vrot.slane %v263, 7
        %v266 = vshll.u32 %v218, 16
        %v268 = vor.u32 %v265, %v266
        %v270 = vshrl.u32 %v219, 16
        %v272 = vrot.slane %v270, 7
        %v273 = vshll.u32 %v219, 16
        %v275 = vor.u32 %v272, %v273
        %276 = vrot.lane.b32.xlu0 %v226, 32
        %v277 = vpop.permute.xlu0 %276
        %278 = vrot.lane.b32.xlu0 %v233, 32
        %v279 = vpop.permute.xlu0 %278
        %280 = vrot.lane.b32.xlu0 %v240, 32
        %v281 = vpop.permute.xlu0 %280
        %282 = vrot.lane.b32.xlu0 %v247, 32
        %v283 = vpop.permute.xlu0 %282
        %284 = vrot.lane.b32.xlu0 %v254, 32
        %v285 = vpop.permute.xlu0 %284
        %286 = vrot.lane.b32.xlu0 %v261, 32
        %v287 = vpop.permute.xlu0 %286
        %288 = vrot.lane.b32.xlu0 %v268, 32
        %v289 = vpop.permute.xlu0 %288
        %290 = vrot.lane.b32.xlu0 %v275, 32
        %v291 = vpop.permute.xlu0 %290
        %v308 = vunpack.c.l.b16 %v156
        %v309 = vunpack.c.l.b16 %v157
        %v310 = vunpack.c.l.b16 %v158
        %v311 = vunpack.c.l.b16 %v159
        %v312 = vunpack.c.l.b16 %v160
        %v313 = vunpack.c.l.b16 %v161
        %v314 = vunpack.c.l.b16 %v162
        %v315 = vunpack.c.l.b16 %v163
        %v316 = vunpack.c.l.b16 %v164
        %v317 = vunpack.c.l.b16 %v165
        %v318 = vunpack.c.l.b16 %v166
        %v319 = vunpack.c.l.b16 %v167
        %v320 = vunpack.c.l.b16 %v168
        %v321 = vunpack.c.l.b16 %v169
        %v322 = vunpack.c.l.b16 %v170
        %v323 = vunpack.c.l.b16 %v171
        %v324 = vpack.c.b16 %v309, %v308
        %v325 = vpack.c.b16 %v311, %v310
        %v326 = vpack.c.b16 %v313, %v312
        %v327 = vpack.c.b16 %v315, %v314
        %v328 = vpack.c.b16 %v317, %v316
        %v329 = vpack.c.b16 %v319, %v318
        %v330 = vpack.c.b16 %v321, %v320
        %v331 = vpack.c.b16 %v323, %v322
        %332 = vrot.lane.b32.xlu0 %v324, 64
        %v333 = vpop.permute.xlu0 %332
        %334 = vrot.lane.b32.xlu0 %v325, 64
        %v335 = vpop.permute.xlu0 %334
        %336 = vrot.lane.b32.xlu0 %v326, 64
        %v337 = vpop.permute.xlu0 %336
        %338 = vrot.lane.b32.xlu0 %v327, 64
        %v339 = vpop.permute.xlu0 %338
        %340 = vrot.lane.b32.xlu0 %v328, 64
        %v341 = vpop.permute.xlu0 %340
        %342 = vrot.lane.b32.xlu0 %v329, 64
        %v343 = vpop.permute.xlu0 %342
        %344 = vrot.lane.b32.xlu0 %v330, 64
        %v345 = vpop.permute.xlu0 %344
        %346 = vrot.lane.b32.xlu0 %v331, 64
        %v347 = vpop.permute.xlu0 %346
        %v348 = vpack.c.b16 %v308, %v308
        %v349 = vpack.c.b16 %v310, %v310
        %v350 = vpack.c.b16 %v312, %v312
        %v351 = vpack.c.b16 %v314, %v314
        %v352 = vpack.c.b16 %v316, %v316
        %v353 = vpack.c.b16 %v318, %v318
        %v354 = vpack.c.b16 %v320, %v320
        %v355 = vpack.c.b16 %v322, %v322
        %v357 = vshrl.u32 %v348, 16
        %v359 = vrot.slane %v357, 7
        %v360 = vshll.u32 %v348, 16
        %v362 = vor.u32 %v359, %v360
        %v364 = vshrl.u32 %v349, 16
        %v366 = vrot.slane %v364, 7
        %v367 = vshll.u32 %v349, 16
        %v369 = vor.u32 %v366, %v367
        %v371 = vshrl.u32 %v350, 16
        %v373 = vrot.slane %v371, 7
        %v374 = vshll.u32 %v350, 16
        %v376 = vor.u32 %v373, %v374
        %v378 = vshrl.u32 %v351, 16
        %v380 = vrot.slane %v378, 7
        %v381 = vshll.u32 %v351, 16
        %v383 = vor.u32 %v380, %v381
        %v385 = vshrl.u32 %v352, 16
        %v387 = vrot.slane %v385, 7
        %v388 = vshll.u32 %v352, 16
        %v390 = vor.u32 %v387, %v388
        %v392 = vshrl.u32 %v353, 16
        %v394 = vrot.slane %v392, 7
        %v395 = vshll.u32 %v353, 16
        %v397 = vor.u32 %v394, %v395
        %v399 = vshrl.u32 %v354, 16
        %v401 = vrot.slane %v399, 7
        %v402 = vshll.u32 %v354, 16
        %v404 = vor.u32 %v401, %v402
        %v406 = vshrl.u32 %v355, 16
        %v408 = vrot.slane %v406, 7
        %v409 = vshll.u32 %v355, 16
        %v411 = vor.u32 %v408, %v409
        %412 = vrot.lane.b32.xlu0 %v362, 96
        %v413 = vpop.permute.xlu0 %412
        %414 = vrot.lane.b32.xlu0 %v369, 96
        %v415 = vpop.permute.xlu0 %414
        %416 = vrot.lane.b32.xlu0 %v376, 96
        %v417 = vpop.permute.xlu0 %416
        %418 = vrot.lane.b32.xlu0 %v383, 96
        %v419 = vpop.permute.xlu0 %418
        %420 = vrot.lane.b32.xlu0 %v390, 96
        %v421 = vpop.permute.xlu0 %420
        %422 = vrot.lane.b32.xlu0 %v397, 96
        %v423 = vpop.permute.xlu0 %422
        %424 = vrot.lane.b32.xlu0 %v404, 96
        %v425 = vpop.permute.xlu0 %424
        %426 = vrot.lane.b32.xlu0 %v411, 96
        %v427 = vpop.permute.xlu0 %426
        %vm428 = vcmask 261120
        %v431 = vsel %vm428, %v204, %v277
        %v434 = vsel %vm428, %v205, %v279
        %v437 = vsel %vm428, %v206, %v281
        %v440 = vsel %vm428, %v207, %v283
        %v443 = vsel %vm428, %v208, %v285
        %v446 = vsel %vm428, %v209, %v287
        %v449 = vsel %vm428, %v210, %v289
        %v452 = vsel %vm428, %v211, %v291
        %vm453 = vcmask 523264
        %v455 = vsel %vm453, %v431, %v333
        %v457 = vsel %vm453, %v434, %v335
        %v459 = vsel %vm453, %v437, %v337
        %v461 = vsel %vm453, %v440, %v339
        %v463 = vsel %vm453, %v443, %v341
        %v465 = vsel %vm453, %v446, %v343
        %v467 = vsel %vm453, %v449, %v345
        %v469 = vsel %vm453, %v452, %v347
        %vm470 = vcmask 785408
        %v472 = vsel %vm470, %v455, %v413
        %v474 = vsel %vm470, %v457, %v415
        %v476 = vsel %vm470, %v459, %v417
        %v478 = vsel %vm470, %v461, %v419
        %v480 = vsel %vm470, %v463, %v421
        %v482 = vsel %vm470, %v465, %v423
        %v484 = vsel %vm470, %v467, %v425
        %v486 = vsel %vm470, %v469, %v427
        %v495 = vunpack.c.l.b16 %v472
        %v496 = vunpack.c.h.b16 %v472
        %v497 = vunpack.c.l.b16 %v474
        %v498 = vunpack.c.h.b16 %v474
        %v499 = vunpack.c.l.b16 %v476
        %v500 = vunpack.c.h.b16 %v476
        %v501 = vunpack.c.l.b16 %v478
        %v502 = vunpack.c.h.b16 %v478
        %v503 = vunpack.c.l.b16 %v480
        %v504 = vunpack.c.h.b16 %v480
        %v505 = vunpack.c.l.b16 %v482
        %v506 = vunpack.c.h.b16 %v482
        %v507 = vunpack.c.l.b16 %v484
        %v508 = vunpack.c.h.b16 %v484
        %v509 = vunpack.c.l.b16 %v486
        %v510 = vunpack.c.h.b16 %v486
        %v511 = vpack.c.b16 %v495, %v495
        %v512 = vpack.c.b16 %v496, %v496
        %v513 = vpack.c.b16 %v497, %v497
        %v514 = vpack.c.b16 %v498, %v498
        %v515 = vpack.c.b16 %v499, %v499
        %v516 = vpack.c.b16 %v500, %v500
        %v517 = vpack.c.b16 %v501, %v501
        %v518 = vpack.c.b16 %v502, %v502
        %v519 = vpack.c.b16 %v503, %v503
        %v520 = vpack.c.b16 %v504, %v504
        %v521 = vpack.c.b16 %v505, %v505
        %v522 = vpack.c.b16 %v506, %v506
        %v523 = vpack.c.b16 %v507, %v507
        %v524 = vpack.c.b16 %v508, %v508
        %v525 = vpack.c.b16 %v509, %v509
        %v526 = vpack.c.b16 %v510, %v510
        %vm527 = vsmask.f32 3328
        %vm528 = vsmask.f32 7440
        %vm529 = vmor %vm527, %vm528
        %v531 = vshrl.u32 %v511, 16
        %v533 = vrot.slane %v531, 4
        %v534 = vshll.u32 %v511, 16
        %v536 = vrot.slane %v534, 5
        %v537 = vor.u32 %v533, %v536
        %v538 = vrot.slane %v537, 4
        %v540 = vshll.u32 %v512, 16
        %v542 = vrot.slane %v540, 5
        %v543 = vsel %vm529, %v538, %v542
        %v545 = vshrl.u32 %v513, 16
        %v547 = vrot.slane %v545, 4
        %v548 = vshll.u32 %v513, 16
        %v550 = vrot.slane %v548, 5
        %v551 = vor.u32 %v547, %v550
        %v552 = vrot.slane %v551, 4
        %v554 = vshll.u32 %v514, 16
        %v556 = vrot.slane %v554, 5
        %v557 = vsel %vm529, %v552, %v556
        %v559 = vshrl.u32 %v515, 16
        %v561 = vrot.slane %v559, 4
        %v562 = vshll.u32 %v515, 16
        %v564 = vrot.slane %v562, 5
        %v565 = vor.u32 %v561, %v564
        %v566 = vrot.slane %v565, 4
        %v568 = vshll.u32 %v516, 16
        %v570 = vrot.slane %v568, 5
        %v571 = vsel %vm529, %v566, %v570
        %v573 = vshrl.u32 %v517, 16
        %v575 = vrot.slane %v573, 4
        %v576 = vshll.u32 %v517, 16
        %v578 = vrot.slane %v576, 5
        %v579 = vor.u32 %v575, %v578
        %v580 = vrot.slane %v579, 4
        %v582 = vshll.u32 %v518, 16
        %v584 = vrot.slane %v582, 5
        %v585 = vsel %vm529, %v580, %v584
        %v587 = vshrl.u32 %v519, 16
        %v589 = vrot.slane %v587, 4
        %v590 = vshll.u32 %v519, 16
        %v592 = vrot.slane %v590, 5
        %v593 = vor.u32 %v589, %v592
        %v594 = vrot.slane %v593, 4
        %v596 = vshll.u32 %v520, 16
        %v598 = vrot.slane %v596, 5
        %v599 = vsel %vm529, %v594, %v598
        %v601 = vshrl.u32 %v521, 16
        %v603 = vrot.slane %v601, 4
        %v604 = vshll.u32 %v521, 16
        %v606 = vrot.slane %v604, 5
        %v607 = vor.u32 %v603, %v606
        %v608 = vrot.slane %v607, 4
        %v610 = vshll.u32 %v522, 16
        %v612 = vrot.slane %v610, 5
        %v613 = vsel %vm529, %v608, %v612
        %v615 = vshrl.u32 %v523, 16
        %v617 = vrot.slane %v615, 4
        %v618 = vshll.u32 %v523, 16
        %v620 = vrot.slane %v618, 5
        %v621 = vor.u32 %v617, %v620
        %v622 = vrot.slane %v621, 4
        %v624 = vshll.u32 %v524, 16
        %v626 = vrot.slane %v624, 5
        %v627 = vsel %vm529, %v622, %v626
        %v629 = vshrl.u32 %v525, 16
        %v631 = vrot.slane %v629, 4
        %v632 = vshll.u32 %v525, 16
        %v634 = vrot.slane %v632, 5
        %v635 = vor.u32 %v631, %v634
        %v636 = vrot.slane %v635, 4
        %v638 = vshll.u32 %v526, 16
        %v640 = vrot.slane %v638, 5
        %v641 = vsel %vm529, %v636, %v640
        %v642 = vld [vmem:[%s1] sm:$0xf]
        %v643 = vld [vmem:[%s1 + $0x4] sm:$0xf]
        %v644 = vld [vmem:[%s1 + $0x8] sm:$0xf]
        %v645 = vld [vmem:[%s1 + $0xc] sm:$0xf]
        %v646 = vld [vmem:[%s1 + $0x10] sm:$0xf]
        %v647 = vld [vmem:[%s1 + $0x14] sm:$0xf]
        %v648 = vld [vmem:[%s1 + $0x18] sm:$0xf]
        %v649 = vld [vmem:[%s1 + $0x1c] sm:$0xf]
        %v650 = vld [vmem:[%s1 + $0x20] sm:$0xf]
        %v651 = vld [vmem:[%s1 + $0x24] sm:$0xf]
        %v652 = vld [vmem:[%s1 + $0x28] sm:$0xf]
        %v653 = vld [vmem:[%s1 + $0x2c] sm:$0xf]
        %v654 = vld [vmem:[%s1 + $0x30] sm:$0xf]
        %v655 = vld [vmem:[%s1 + $0x34] sm:$0xf]
        %v656 = vld [vmem:[%s1 + $0x38] sm:$0xf]
        %v657 = vld [vmem:[%s1 + $0x3c] sm:$0xf]
        %v658 = vunpack.c.l.b16 %v543
        %v659 = vunpack.c.l.b16 %v557
        %v660 = vunpack.c.l.b16 %v571
        %v661 = vunpack.c.l.b16 %v585
        %v662 = vunpack.c.l.b16 %v599
        %v663 = vunpack.c.l.b16 %v613
        %v664 = vunpack.c.l.b16 %v627
        %v665 = vunpack.c.l.b16 %v641
        %v666 = vpack.c.b16 %v659, %v658
        %v667 = vpack.c.b16 %v661, %v660
        %v668 = vpack.c.b16 %v663, %v662
        %v669 = vpack.c.b16 %v665, %v664
        %v690 = vunpack.c.l.b16 %v642
        %v691 = vunpack.c.l.b16 %v643
        %v692 = vunpack.c.l.b16 %v644
        %v693 = vunpack.c.l.b16 %v645
        %v694 = vunpack.c.l.b16 %v646
        %v695 = vunpack.c.l.b16 %v647
        %v696 = vunpack.c.l.b16 %v648
        %v697 = vunpack.c.l.b16 %v649
        %v698 = vunpack.c.l.b16 %v650
        %v699 = vunpack.c.l.b16 %v651
        %v700 = vunpack.c.l.b16 %v652
        %v701 = vunpack.c.l.b16 %v653
        %v702 = vunpack.c.l.b16 %v654
        %v703 = vunpack.c.l.b16 %v655
        %v704 = vunpack.c.l.b16 %v656
        %v705 = vunpack.c.l.b16 %v657
        %v706 = vpack.c.b16 %v691, %v690
        %v707 = vpack.c.b16 %v693, %v692
        %v708 = vpack.c.b16 %v695, %v694
        %v709 = vpack.c.b16 %v697, %v696
        %v710 = vpack.c.b16 %v699, %v698
        %v711 = vpack.c.b16 %v701, %v700
        %v712 = vpack.c.b16 %v703, %v702
        %v713 = vpack.c.b16 %v705, %v704
        %722 = vmatpush.bf16.msra.mxu0 %v713
        %723 = vmatpush.bf16.msra.mxu0 %v712
        %724 = vmatpush.bf16.msra.mxu0 %v711
        %725 = vmatpush.bf16.msra.mxu0 %v710
        %726 = vmatpush.bf16.msra.mxu0 %v709
        %727 = vmatpush.bf16.msra.mxu0 %v708
        %728 = vmatpush.bf16.msra.mxu0 %v707
        %729 = vmatpush.bf16.msra.mxu0 %v706
        %730 = vmatmul.bf16.gmra.mxu0 %v666
        %v731 = vpop.f32.mrf.mxu0
        %v732 = vadd.f32 0.0, %v731
        %v733 = vpop.f32.mrf.mxu0
        %v734 = vadd.f32 0.0, %v733
        %735 = vmatmul.bf16.gmra.mxu0 %v667
        %v736 = vpop.f32.mrf.mxu0
        %v737 = vadd.f32 0.0, %v736
        %v738 = vpop.f32.mrf.mxu0
        %v739 = vadd.f32 0.0, %v738
        %740 = vmatmul.bf16.gmra.mxu0 %v668
        %v741 = vpop.f32.mrf.mxu0
        %v742 = vadd.f32 0.0, %v741
        %v743 = vpop.f32.mrf.mxu0
        %v744 = vadd.f32 0.0, %v743
        %745 = vmatmul.bf16.gmra.mxu0 %v669
        %v746 = vpop.f32.mrf.mxu0
        %v747 = vadd.f32 0.0, %v746
        %v748 = vpop.f32.mrf.mxu0
        %v749 = vadd.f32 0.0, %v748
        %750 = vdwg.mxu0
        %v751 = vtanh.pop %v732
        %v752 = vtanh.pop %v734
        %v753 = vtanh.pop %v737
        %v754 = vtanh.pop %v739
        %v755 = vtanh.pop %v742
        %v756 = vtanh.pop %v744
        %v757 = vtanh.pop %v747
        %v758 = vtanh.pop %v749
        %759 = vst [vmem:[%s132] sm:$0xff] %v751
        %760 = vst [vmem:[%s132 + $0x8] sm:$0xff] %v752
        %761 = vst [vmem:[%s132 + $0x10] sm:$0xff] %v753
        %762 = vst [vmem:[%s132 + $0x18] sm:$0xff] %v754
        %763 = vst [vmem:[%s132 + $0x20] sm:$0xff] %v755
        %764 = vst [vmem:[%s132 + $0x28] sm:$0xff] %v756
        %765 = vst [vmem:[%s132 + $0x30] sm:$0xff] %v757
        %766 = vst [vmem:[%s132 + $0x38] sm:$0xff] %v758
        %v767 = vld [vmem:[%s139] sm:$0xe]
        %v768 = vld [vmem:[%s139 + $0x4] sm:$0x1]
        %v769 = vld [vmem:[%s139 + $0x8] sm:$0xe]
        %v770 = vld [vmem:[%s139 + $0xc] sm:$0x1]
        %v771 = vld [vmem:[%s139 + $0x10] sm:$0xe]
        %v772 = vld [vmem:[%s139 + $0x14] sm:$0x1]
        %v773 = vld [vmem:[%s139 + $0x18] sm:$0xe]
        %v774 = vld [vmem:[%s139 + $0x1c] sm:$0x1]
        %v775 = vld [vmem:[%s139 + $0x20] sm:$0xe]
        %v776 = vld [vmem:[%s139 + $0x24] sm:$0x1]
        %v777 = vld [vmem:[%s139 + $0x28] sm:$0xe]
        %v778 = vld [vmem:[%s139 + $0x2c] sm:$0x1]
        %v779 = vld [vmem:[%s139 + $0x30] sm:$0xe]
        %v780 = vld [vmem:[%s139 + $0x34] sm:$0x1]
        %v781 = vld [vmem:[%s139 + $0x38] sm:$0xe]
        %v782 = vld [vmem:[%s139 + $0x3c] sm:$0x1]
        %v783 = vld [vmem:[%s139] sm:$0xf]
        %v784 = vld [vmem:[%s139 + $0x8] sm:$0xf]
        %v785 = vld [vmem:[%s139 + $0x10] sm:$0xf]
        %v786 = vld [vmem:[%s139 + $0x18] sm:$0xf]
        %v787 = vld [vmem:[%s139 + $0x20] sm:$0xf]
        %v788 = vld [vmem:[%s139 + $0x28] sm:$0xf]
        %v789 = vld [vmem:[%s139 + $0x30] sm:$0xf]
        %v790 = vld [vmem:[%s139 + $0x38] sm:$0xf]
        %v791 = vld [vmem:[%s137] sm:$0xe]
        %v792 = vld [vmem:[%s137 + $0x4] sm:$0x1]
        %v793 = vld [vmem:[%s137 + $0x8] sm:$0xe]
        %v794 = vld [vmem:[%s137 + $0xc] sm:$0x1]
        %v795 = vld [vmem:[%s137 + $0x10] sm:$0xe]
        %v796 = vld [vmem:[%s137 + $0x14] sm:$0x1]
        %v797 = vld [vmem:[%s137 + $0x18] sm:$0xe]
        %v798 = vld [vmem:[%s137 + $0x1c] sm:$0x1]
        %v799 = vld [vmem:[%s137 + $0x20] sm:$0xe]
        %v800 = vld [vmem:[%s137 + $0x24] sm:$0x1]
        %v801 = vld [vmem:[%s137 + $0x28] sm:$0xe]
        %v802 = vld [vmem:[%s137 + $0x2c] sm:$0x1]
        %v803 = vld [vmem:[%s137 + $0x30] sm:$0xe]
        %v804 = vld [vmem:[%s137 + $0x34] sm:$0x1]
        %v805 = vld [vmem:[%s137 + $0x38] sm:$0xe]
        %v806 = vld [vmem:[%s137 + $0x3c] sm:$0x1]
        %v807 = vld [vmem:[%s137] sm:$0xf]
        %v808 = vld [vmem:[%s137 + $0x8] sm:$0xf]
        %v809 = vld [vmem:[%s137 + $0x10] sm:$0xf]
        %v810 = vld [vmem:[%s137 + $0x18] sm:$0xf]
        %v811 = vld [vmem:[%s137 + $0x20] sm:$0xf]
        %v812 = vld [vmem:[%s137 + $0x28] sm:$0xf]
        %v813 = vld [vmem:[%s137 + $0x30] sm:$0xf]
        %v814 = vld [vmem:[%s137 + $0x38] sm:$0xf]
        %v831 = vunpack.c.l.b16 %v767
        %v832 = vunpack.c.l.b16 %v768
        %v833 = vunpack.c.l.b16 %v769
        %v834 = vunpack.c.l.b16 %v770
        %v835 = vunpack.c.l.b16 %v771
        %v836 = vunpack.c.l.b16 %v772
        %v837 = vunpack.c.l.b16 %v773
        %v838 = vunpack.c.l.b16 %v774
        %v839 = vunpack.c.l.b16 %v775
        %v840 = vunpack.c.l.b16 %v776
        %v841 = vunpack.c.l.b16 %v777
        %v842 = vunpack.c.l.b16 %v778
        %v843 = vunpack.c.l.b16 %v779
        %v844 = vunpack.c.l.b16 %v780
        %v845 = vunpack.c.l.b16 %v781
        %v846 = vunpack.c.l.b16 %v782
        %v847 = vpack.c.b16 %v832, %v831
        %v848 = vpack.c.b16 %v834, %v833
        %v849 = vpack.c.b16 %v836, %v835
        %v850 = vpack.c.b16 %v838, %v837
        %v851 = vpack.c.b16 %v840, %v839
        %v852 = vpack.c.b16 %v842, %v841
        %v853 = vpack.c.b16 %v844, %v843
        %v854 = vpack.c.b16 %v846, %v845
        %v863 = vunpack.c.l.b16 %v783
        %v864 = vunpack.c.l.b16 %v784
        %v865 = vunpack.c.l.b16 %v785
        %v866 = vunpack.c.l.b16 %v786
        %v867 = vunpack.c.l.b16 %v787
        %v868 = vunpack.c.l.b16 %v788
        %v869 = vunpack.c.l.b16 %v789
        %v870 = vunpack.c.l.b16 %v790
        %v871 = vpack.c.b16 %v832, %v863
        %v872 = vpack.c.b16 %v834, %v864
        %v873 = vpack.c.b16 %v836, %v865
        %v874 = vpack.c.b16 %v838, %v866
        %v875 = vpack.c.b16 %v840, %v867
        %v876 = vpack.c.b16 %v842, %v868
        %v877 = vpack.c.b16 %v844, %v869
        %v878 = vpack.c.b16 %v846, %v870
        %v880 = vshrl.u32 %v871, 16
        %v882 = vrot.slane %v880, 7
        %v883 = vshll.u32 %v871, 16
        %v885 = vor.u32 %v882, %v883
        %v887 = vshrl.u32 %v872, 16
        %v889 = vrot.slane %v887, 7
        %v890 = vshll.u32 %v872, 16
        %v892 = vor.u32 %v889, %v890
        %v894 = vshrl.u32 %v873, 16
        %v896 = vrot.slane %v894, 7
        %v897 = vshll.u32 %v873, 16
        %v899 = vor.u32 %v896, %v897
        %v901 = vshrl.u32 %v874, 16
        %v903 = vrot.slane %v901, 7
        %v904 = vshll.u32 %v874, 16
        %v906 = vor.u32 %v903, %v904
        %v908 = vshrl.u32 %v875, 16
        %v910 = vrot.slane %v908, 7
        %v911 = vshll.u32 %v875, 16
        %v913 = vor.u32 %v910, %v911
        %v915 = vshrl.u32 %v876, 16
        %v917 = vrot.slane %v915, 7
        %v918 = vshll.u32 %v876, 16
        %v920 = vor.u32 %v917, %v918
        %v922 = vshrl.u32 %v877, 16
        %v924 = vrot.slane %v922, 7
        %v925 = vshll.u32 %v877, 16
        %v927 = vor.u32 %v924, %v925
        %v929 = vshrl.u32 %v878, 16
        %v931 = vrot.slane %v929, 7
        %v932 = vshll.u32 %v878, 16
        %v934 = vor.u32 %v931, %v932
        %935 = vrot.lane.b32.xlu0 %v885, 32
        %v936 = vpop.permute.xlu0 %935
        %937 = vrot.lane.b32.xlu0 %v892, 32
        %v938 = vpop.permute.xlu0 %937
        %939 = vrot.lane.b32.xlu0 %v899, 32
        %v940 = vpop.permute.xlu0 %939
        %941 = vrot.lane.b32.xlu0 %v906, 32
        %v942 = vpop.permute.xlu0 %941
        %943 = vrot.lane.b32.xlu0 %v913, 32
        %v944 = vpop.permute.xlu0 %943
        %945 = vrot.lane.b32.xlu0 %v920, 32
        %v946 = vpop.permute.xlu0 %945
        %947 = vrot.lane.b32.xlu0 %v927, 32
        %v948 = vpop.permute.xlu0 %947
        %949 = vrot.lane.b32.xlu0 %v934, 32
        %v950 = vpop.permute.xlu0 %949
        %v967 = vunpack.c.l.b16 %v791
        %v968 = vunpack.c.l.b16 %v792
        %v969 = vunpack.c.l.b16 %v793
        %v970 = vunpack.c.l.b16 %v794
        %v971 = vunpack.c.l.b16 %v795
        %v972 = vunpack.c.l.b16 %v796
        %v973 = vunpack.c.l.b16 %v797
        %v974 = vunpack.c.l.b16 %v798
        %v975 = vunpack.c.l.b16 %v799
        %v976 = vunpack.c.l.b16 %v800
        %v977 = vunpack.c.l.b16 %v801
        %v978 = vunpack.c.l.b16 %v802
        %v979 = vunpack.c.l.b16 %v803
        %v980 = vunpack.c.l.b16 %v804
        %v981 = vunpack.c.l.b16 %v805
        %v982 = vunpack.c.l.b16 %v806
        %v983 = vpack.c.b16 %v968, %v967
        %v984 = vpack.c.b16 %v970, %v969
        %v985 = vpack.c.b16 %v972, %v971
        %v986 = vpack.c.b16 %v974, %v973
        %v987 = vpack.c.b16 %v976, %v975
        %v988 = vpack.c.b16 %v978, %v977
        %v989 = vpack.c.b16 %v980, %v979
        %v990 = vpack.c.b16 %v982, %v981
        %991 = vrot.lane.b32.xlu0 %v983, 64
        %v992 = vpop.permute.xlu0 %991
        %993 = vrot.lane.b32.xlu0 %v984, 64
        %v994 = vpop.permute.xlu0 %993
        %995 = vrot.lane.b32.xlu0 %v985, 64
        %v996 = vpop.permute.xlu0 %995
        %997 = vrot.lane.b32.xlu0 %v986, 64
        %v998 = vpop.permute.xlu0 %997
        %999 = vrot.lane.b32.xlu0 %v987, 64
        %v1000 = vpop.permute.xlu0 %999
        %1001 = vrot.lane.b32.xlu0 %v988, 64
        %v1002 = vpop.permute.xlu0 %1001
        %1003 = vrot.lane.b32.xlu0 %v989, 64
        %v1004 = vpop.permute.xlu0 %1003
        %1005 = vrot.lane.b32.xlu0 %v990, 64
        %v1006 = vpop.permute.xlu0 %1005
        %v1015 = vunpack.c.l.b16 %v807
        %v1016 = vunpack.c.l.b16 %v808
        %v1017 = vunpack.c.l.b16 %v809
        %v1018 = vunpack.c.l.b16 %v810
        %v1019 = vunpack.c.l.b16 %v811
        %v1020 = vunpack.c.l.b16 %v812
        %v1021 = vunpack.c.l.b16 %v813
        %v1022 = vunpack.c.l.b16 %v814
        %v1023 = vpack.c.b16 %v968, %v1015
        %v1024 = vpack.c.b16 %v970, %v1016
        %v1025 = vpack.c.b16 %v972, %v1017
        %v1026 = vpack.c.b16 %v974, %v1018
        %v1027 = vpack.c.b16 %v976, %v1019
        %v1028 = vpack.c.b16 %v978, %v1020
        %v1029 = vpack.c.b16 %v980, %v1021
        %v1030 = vpack.c.b16 %v982, %v1022
        %v1032 = vshrl.u32 %v1023, 16
        %v1034 = vrot.slane %v1032, 7
        %v1035 = vshll.u32 %v1023, 16
        %v1037 = vor.u32 %v1034, %v1035
        %v1039 = vshrl.u32 %v1024, 16
        %v1041 = vrot.slane %v1039, 7
        %v1042 = vshll.u32 %v1024, 16
        %v1044 = vor.u32 %v1041, %v1042
        %v1046 = vshrl.u32 %v1025, 16
        %v1048 = vrot.slane %v1046, 7
        %v1049 = vshll.u32 %v1025, 16
        %v1051 = vor.u32 %v1048, %v1049
        %v1053 = vshrl.u32 %v1026, 16
        %v1055 = vrot.slane %v1053, 7
        %v1056 = vshll.u32 %v1026, 16
        %v1058 = vor.u32 %v1055, %v1056
        %v1060 = vshrl.u32 %v1027, 16
        %v1062 = vrot.slane %v1060, 7
        %v1063 = vshll.u32 %v1027, 16
        %v1065 = vor.u32 %v1062, %v1063
        %v1067 = vshrl.u32 %v1028, 16
        %v1069 = vrot.slane %v1067, 7
        %v1070 = vshll.u32 %v1028, 16
        %v1072 = vor.u32 %v1069, %v1070
        %v1074 = vshrl.u32 %v1029, 16
        %v1076 = vrot.slane %v1074, 7
        %v1077 = vshll.u32 %v1029, 16
        %v1079 = vor.u32 %v1076, %v1077
        %v1081 = vshrl.u32 %v1030, 16
        %v1083 = vrot.slane %v1081, 7
        %v1084 = vshll.u32 %v1030, 16
        %v1086 = vor.u32 %v1083, %v1084
        %1087 = vrot.lane.b32.xlu0 %v1037, 96
        %v1088 = vpop.permute.xlu0 %1087
        %1089 = vrot.lane.b32.xlu0 %v1044, 96
        %v1090 = vpop.permute.xlu0 %1089
        %1091 = vrot.lane.b32.xlu0 %v1051, 96
        %v1092 = vpop.permute.xlu0 %1091
        %1093 = vrot.lane.b32.xlu0 %v1058, 96
        %v1094 = vpop.permute.xlu0 %1093
        %1095 = vrot.lane.b32.xlu0 %v1065, 96
        %v1096 = vpop.permute.xlu0 %1095
        %1097 = vrot.lane.b32.xlu0 %v1072, 96
        %v1098 = vpop.permute.xlu0 %1097
        %1099 = vrot.lane.b32.xlu0 %v1079, 96
        %v1100 = vpop.permute.xlu0 %1099
        %1101 = vrot.lane.b32.xlu0 %v1086, 96
        %v1102 = vpop.permute.xlu0 %1101
        %v1105 = vsel %vm428, %v847, %v936
        %v1108 = vsel %vm428, %v848, %v938
        %v1111 = vsel %vm428, %v849, %v940
        %v1114 = vsel %vm428, %v850, %v942
        %v1117 = vsel %vm428, %v851, %v944
        %v1120 = vsel %vm428, %v852, %v946
        %v1123 = vsel %vm428, %v853, %v948
        %v1126 = vsel %vm428, %v854, %v950
        %v1128 = vsel %vm453, %v1105, %v992
        %v1130 = vsel %vm453, %v1108, %v994
        %v1132 = vsel %vm453, %v1111, %v996
        %v1134 = vsel %vm453, %v1114, %v998
        %v1136 = vsel %vm453, %v1117, %v1000
        %v1138 = vsel %vm453, %v1120, %v1002
        %v1140 = vsel %vm453, %v1123, %v1004
        %v1142 = vsel %vm453, %v1126, %v1006
        %v1144 = vsel %vm470, %v1128, %v1088
        %v1146 = vsel %vm470, %v1130, %v1090
        %v1148 = vsel %vm470, %v1132, %v1092
        %v1150 = vsel %vm470, %v1134, %v1094
        %v1152 = vsel %vm470, %v1136, %v1096
        %v1154 = vsel %vm470, %v1138, %v1098
        %v1156 = vsel %vm470, %v1140, %v1100
        %v1158 = vsel %vm470, %v1142, %v1102
        %v1167 = vunpack.c.l.b16 %v1144
        %v1168 = vunpack.c.h.b16 %v1144
        %v1169 = vunpack.c.l.b16 %v1146
        %v1170 = vunpack.c.h.b16 %v1146
        %v1171 = vunpack.c.l.b16 %v1148
        %v1172 = vunpack.c.h.b16 %v1148
        %v1173 = vunpack.c.l.b16 %v1150
        %v1174 = vunpack.c.h.b16 %v1150
        %v1175 = vunpack.c.l.b16 %v1152
        %v1176 = vunpack.c.h.b16 %v1152
        %v1177 = vunpack.c.l.b16 %v1154
        %v1178 = vunpack.c.h.b16 %v1154
        %v1179 = vunpack.c.l.b16 %v1156
        %v1180 = vunpack.c.h.b16 %v1156
        %v1181 = vunpack.c.l.b16 %v1158
        %v1182 = vunpack.c.h.b16 %v1158
        %v1183 = vpack.c.b16 %v1167, %v1167
        %v1184 = vpack.c.b16 %v1168, %v1168
        %v1185 = vpack.c.b16 %v1169, %v1169
        %v1186 = vpack.c.b16 %v1170, %v1170
        %v1187 = vpack.c.b16 %v1171, %v1171
        %v1188 = vpack.c.b16 %v1172, %v1172
        %v1189 = vpack.c.b16 %v1173, %v1173
        %v1190 = vpack.c.b16 %v1174, %v1174
        %v1191 = vpack.c.b16 %v1175, %v1175
        %v1192 = vpack.c.b16 %v1176, %v1176
        %v1193 = vpack.c.b16 %v1177, %v1177
        %v1194 = vpack.c.b16 %v1178, %v1178
        %v1195 = vpack.c.b16 %v1179, %v1179
        %v1196 = vpack.c.b16 %v1180, %v1180
        %v1197 = vpack.c.b16 %v1181, %v1181
        %v1198 = vpack.c.b16 %v1182, %v1182
        %vm1199 = vcmask 1042432
        %vm1200 = vcmask 1046532
        %vm1201 = vmor %vm1199, %vm1200
        %v1202 = vrot.slane %v1183, 5
        %v1203 = vrot.slane %v1202, 4
        %v1204 = vrot.slane %v1184, 5
        %v1205 = vsel %vm1201, %v1203, %v1204
        %v1206 = vrot.slane %v1185, 5
        %v1207 = vrot.slane %v1206, 4
        %v1208 = vrot.slane %v1186, 5
        %v1209 = vsel %vm1201, %v1207, %v1208
        %v1210 = vrot.slane %v1187, 5
        %v1211 = vrot.slane %v1210, 4
        %v1212 = vrot.slane %v1188, 5
        %v1213 = vsel %vm1201, %v1211, %v1212
        %v1214 = vrot.slane %v1189, 5
        %v1215 = vrot.slane %v1214, 4
        %v1216 = vrot.slane %v1190, 5
        %v1217 = vsel %vm1201, %v1215, %v1216
        %v1218 = vrot.slane %v1191, 5
        %v1219 = vrot.slane %v1218, 4
        %v1220 = vrot.slane %v1192, 5
        %v1221 = vsel %vm1201, %v1219, %v1220
        %v1222 = vrot.slane %v1193, 5
        %v1223 = vrot.slane %v1222, 4
        %v1224 = vrot.slane %v1194, 5
        %v1225 = vsel %vm1201, %v1223, %v1224
        %v1226 = vrot.slane %v1195, 5
        %v1227 = vrot.slane %v1226, 4
        %v1228 = vrot.slane %v1196, 5
        %v1229 = vsel %vm1201, %v1227, %v1228
        %v1230 = vrot.slane %v1197, 5
        %v1231 = vrot.slane %v1230, 4
        %v1232 = vrot.slane %v1198, 5
        %v1233 = vsel %vm1201, %v1231, %v1232
        %s1234 = scalar_lea.vmem %s1, 64
        %v1235 = vld [vmem:[%s1234] sm:$0xf]
        %v1236 = vld [vmem:[%s1234 + $0x4] sm:$0xf]
        %v1237 = vld [vmem:[%s1234 + $0x8] sm:$0xf]
        %v1238 = vld [vmem:[%s1234 + $0xc] sm:$0xf]
        %v1239 = vld [vmem:[%s1234 + $0x10] sm:$0xf]
        %v1240 = vld [vmem:[%s1234 + $0x14] sm:$0xf]
        %v1241 = vld [vmem:[%s1234 + $0x18] sm:$0xf]
        %v1242 = vld [vmem:[%s1234 + $0x1c] sm:$0xf]
        %v1243 = vld [vmem:[%s1234 + $0x20] sm:$0xf]
        %v1244 = vld [vmem:[%s1234 + $0x24] sm:$0xf]
        %v1245 = vld [vmem:[%s1234 + $0x28] sm:$0xf]
        %v1246 = vld [vmem:[%s1234 + $0x2c] sm:$0xf]
        %v1247 = vld [vmem:[%s1234 + $0x30] sm:$0xf]
        %v1248 = vld [vmem:[%s1234 + $0x34] sm:$0xf]
        %v1249 = vld [vmem:[%s1234 + $0x38] sm:$0xf]
        %v1250 = vld [vmem:[%s1234 + $0x3c] sm:$0xf]
        %v1251 = vunpack.c.l.b16 %v1205
        %v1252 = vunpack.c.l.b16 %v1209
        %v1253 = vunpack.c.l.b16 %v1213
        %v1254 = vunpack.c.l.b16 %v1217
        %v1255 = vunpack.c.l.b16 %v1221
        %v1256 = vunpack.c.l.b16 %v1225
        %v1257 = vunpack.c.l.b16 %v1229
        %v1258 = vunpack.c.l.b16 %v1233
        %v1259 = vpack.c.b16 %v1252, %v1251
        %v1260 = vpack.c.b16 %v1254, %v1253
        %v1261 = vpack.c.b16 %v1256, %v1255
        %v1262 = vpack.c.b16 %v1258, %v1257
        %v1283 = vunpack.c.l.b16 %v1235
        %v1284 = vunpack.c.l.b16 %v1236
        %v1285 = vunpack.c.l.b16 %v1237
        %v1286 = vunpack.c.l.b16 %v1238
        %v1287 = vunpack.c.l.b16 %v1239
        %v1288 = vunpack.c.l.b16 %v1240
        %v1289 = vunpack.c.l.b16 %v1241
        %v1290 = vunpack.c.l.b16 %v1242
        %v1291 = vunpack.c.l.b16 %v1243
        %v1292 = vunpack.c.l.b16 %v1244
        %v1293 = vunpack.c.l.b16 %v1245
        %v1294 = vunpack.c.l.b16 %v1246
        %v1295 = vunpack.c.l.b16 %v1247
        %v1296 = vunpack.c.l.b16 %v1248
        %v1297 = vunpack.c.l.b16 %v1249
        %v1298 = vunpack.c.l.b16 %v1250
        %v1299 = vpack.c.b16 %v1284, %v1283
        %v1300 = vpack.c.b16 %v1286, %v1285
        %v1301 = vpack.c.b16 %v1288, %v1287
        %v1302 = vpack.c.b16 %v1290, %v1289
        %v1303 = vpack.c.b16 %v1292, %v1291
        %v1304 = vpack.c.b16 %v1294, %v1293
        %v1305 = vpack.c.b16 %v1296, %v1295
        %v1306 = vpack.c.b16 %v1298, %v1297
        %1315 = vmatpush.bf16.msra.mxu0 %v1306
        %1316 = vmatpush.bf16.msra.mxu0 %v1305
        %1317 = vmatpush.bf16.msra.mxu0 %v1304
        %1318 = vmatpush.bf16.msra.mxu0 %v1303
        %1319 = vmatpush.bf16.msra.mxu0 %v1302
        %1320 = vmatpush.bf16.msra.mxu0 %v1301
        %1321 = vmatpush.bf16.msra.mxu0 %v1300
        %1322 = vmatpush.bf16.msra.mxu0 %v1299
        %1323 = vmatmul.bf16.gmra.mxu0 %v1259
        %v1324 = vpop.f32.mrf.mxu0
        %v1325 = vadd.f32 0.0, %v1324
        %v1326 = vpop.f32.mrf.mxu0
        %v1327 = vadd.f32 0.0, %v1326
        %1328 = vmatmul.bf16.gmra.mxu0 %v1260
        %v1329 = vpop.f32.mrf.mxu0
        %v1330 = vadd.f32 0.0, %v1329
        %v1331 = vpop.f32.mrf.mxu0
        %v1332 = vadd.f32 0.0, %v1331
        %1333 = vmatmul.bf16.gmra.mxu0 %v1261
        %v1334 = vpop.f32.mrf.mxu0
        %v1335 = vadd.f32 0.0, %v1334
        %v1336 = vpop.f32.mrf.mxu0
        %v1337 = vadd.f32 0.0, %v1336
        %1338 = vmatmul.bf16.gmra.mxu0 %v1262
        %v1339 = vpop.f32.mrf.mxu0
        %v1340 = vadd.f32 0.0, %v1339
        %v1341 = vpop.f32.mrf.mxu0
        %v1342 = vadd.f32 0.0, %v1341
        %1343 = vdwg.mxu0
        %v1344 = vtanh.pop %v1325
        %v1345 = vtanh.pop %v1327
        %v1346 = vtanh.pop %v1330
        %v1347 = vtanh.pop %v1332
        %v1348 = vtanh.pop %v1335
        %v1349 = vtanh.pop %v1337
        %v1350 = vtanh.pop %v1340
        %v1351 = vtanh.pop %v1342
        %s1352 = scalar_lea.vmem %s132, 64 [#allocation2]
        %1353 = vst [vmem:[%s1352] sm:$0xff] %v1344
        %1354 = vst [vmem:[%s1352 + $0x8] sm:$0xff] %v1345
        %1355 = vst [vmem:[%s1352 + $0x10] sm:$0xff] %v1346
        %1356 = vst [vmem:[%s1352 + $0x18] sm:$0xff] %v1347
        %1357 = vst [vmem:[%s1352 + $0x20] sm:$0xff] %v1348
        %1358 = vst [vmem:[%s1352 + $0x28] sm:$0xff] %v1349
        %1359 = vst [vmem:[%s1352 + $0x30] sm:$0xff] %v1350
        %1360 = vst [vmem:[%s1352 + $0x38] sm:$0xff] %v1351
        %s1361 = scalar_lea.vmem %s137, 16
        %v1362 = vld [vmem:[%s1361] sm:$0xf]
        %v1363 = vld [vmem:[%s1361 + $0x4] sm:$0x1]
        %v1364 = vld [vmem:[%s1361 + $0x8] sm:$0xf]
        %v1365 = vld [vmem:[%s1361 + $0xc] sm:$0x1]
        %v1366 = vld [vmem:[%s1361 + $0x10] sm:$0xf]
        %v1367 = vld [vmem:[%s1361 + $0x14] sm:$0x1]
        %v1368 = vld [vmem:[%s1361 + $0x18] sm:$0xf]
        %v1369 = vld [vmem:[%s1361 + $0x1c] sm:$0x1]
        %v1370 = vld [vmem:[%s1361 + $0x20] sm:$0xf]
        %v1371 = vld [vmem:[%s1361 + $0x24] sm:$0x1]
        %v1372 = vld [vmem:[%s1361 + $0x28] sm:$0xf]
        %v1373 = vld [vmem:[%s1361 + $0x2c] sm:$0x1]
        %v1374 = vld [vmem:[%s1361 + $0x30] sm:$0xf]
        %v1375 = vld [vmem:[%s1361 + $0x34] sm:$0x1]
        %v1376 = vld [vmem:[%s1361 + $0x38] sm:$0xf]
        %v1377 = vld [vmem:[%s1361 + $0x3c] sm:$0x1]
        %v1378 = vld [vmem:[%s139] sm:$0xf]
        %v1379 = vld [vmem:[%s139 + $0x4] sm:$0x1]
        %v1380 = vld [vmem:[%s139 + $0x8] sm:$0xf]
        %v1381 = vld [vmem:[%s139 + $0xc] sm:$0x1]
        %v1382 = vld [vmem:[%s139 + $0x10] sm:$0xf]
        %v1383 = vld [vmem:[%s139 + $0x14] sm:$0x1]
        %v1384 = vld [vmem:[%s139 + $0x18] sm:$0xf]
        %v1385 = vld [vmem:[%s139 + $0x1c] sm:$0x1]
        %v1386 = vld [vmem:[%s139 + $0x20] sm:$0xf]
        %v1387 = vld [vmem:[%s139 + $0x24] sm:$0x1]
        %v1388 = vld [vmem:[%s139 + $0x28] sm:$0xf]
        %v1389 = vld [vmem:[%s139 + $0x2c] sm:$0x1]
        %v1390 = vld [vmem:[%s139 + $0x30] sm:$0xf]
        %v1391 = vld [vmem:[%s139 + $0x34] sm:$0x1]
        %v1392 = vld [vmem:[%s139 + $0x38] sm:$0xf]
        %v1393 = vld [vmem:[%s139 + $0x3c] sm:$0x1]
        %v1410 = vunpack.c.l.b16 %v1362
        %v1411 = vunpack.c.l.b16 %v1363
        %v1412 = vunpack.c.l.b16 %v1364
        %v1413 = vunpack.c.l.b16 %v1365
        %v1414 = vunpack.c.l.b16 %v1366
        %v1415 = vunpack.c.l.b16 %v1367
        %v1416 = vunpack.c.l.b16 %v1368
        %v1417 = vunpack.c.l.b16 %v1369
        %v1418 = vunpack.c.l.b16 %v1370
        %v1419 = vunpack.c.l.b16 %v1371
        %v1420 = vunpack.c.l.b16 %v1372
        %v1421 = vunpack.c.l.b16 %v1373
        %v1422 = vunpack.c.l.b16 %v1374
        %v1423 = vunpack.c.l.b16 %v1375
        %v1424 = vunpack.c.l.b16 %v1376
        %v1425 = vunpack.c.l.b16 %v1377
        %v1426 = vpack.c.b16 %v1411, %v1410
        %v1427 = vpack.c.b16 %v1413, %v1412
        %v1428 = vpack.c.b16 %v1415, %v1414
        %v1429 = vpack.c.b16 %v1417, %v1416
        %v1430 = vpack.c.b16 %v1419, %v1418
        %v1431 = vpack.c.b16 %v1421, %v1420
        %v1432 = vpack.c.b16 %v1423, %v1422
        %v1433 = vpack.c.b16 %v1425, %v1424
        %v1434 = vpack.c.b16 %v1410, %v1410
        %v1435 = vpack.c.b16 %v1412, %v1412
        %v1436 = vpack.c.b16 %v1414, %v1414
        %v1437 = vpack.c.b16 %v1416, %v1416
        %v1438 = vpack.c.b16 %v1418, %v1418
        %v1439 = vpack.c.b16 %v1420, %v1420
        %v1440 = vpack.c.b16 %v1422, %v1422
        %v1441 = vpack.c.b16 %v1424, %v1424
        %v1443 = vshrl.u32 %v1434, 16
        %v1445 = vrot.slane %v1443, 7
        %v1446 = vshll.u32 %v1434, 16
        %v1448 = vor.u32 %v1445, %v1446
        %v1450 = vshrl.u32 %v1435, 16
        %v1452 = vrot.slane %v1450, 7
        %v1453 = vshll.u32 %v1435, 16
        %v1455 = vor.u32 %v1452, %v1453
        %v1457 = vshrl.u32 %v1436, 16
        %v1459 = vrot.slane %v1457, 7
        %v1460 = vshll.u32 %v1436, 16
        %v1462 = vor.u32 %v1459, %v1460
        %v1464 = vshrl.u32 %v1437, 16
        %v1466 = vrot.slane %v1464, 7
        %v1467 = vshll.u32 %v1437, 16
        %v1469 = vor.u32 %v1466, %v1467
        %v1471 = vshrl.u32 %v1438, 16
        %v1473 = vrot.slane %v1471, 7
        %v1474 = vshll.u32 %v1438, 16
        %v1476 = vor.u32 %v1473, %v1474
        %v1478 = vshrl.u32 %v1439, 16
        %v1480 = vrot.slane %v1478, 7
        %v1481 = vshll.u32 %v1439, 16
        %v1483 = vor.u32 %v1480, %v1481
        %v1485 = vshrl.u32 %v1440, 16
        %v1487 = vrot.slane %v1485, 7
        %v1488 = vshll.u32 %v1440, 16
        %v1490 = vor.u32 %v1487, %v1488
        %v1492 = vshrl.u32 %v1441, 16
        %v1494 = vrot.slane %v1492, 7
        %v1495 = vshll.u32 %v1441, 16
        %v1497 = vor.u32 %v1494, %v1495
        %1498 = vrot.lane.b32.xlu0 %v1448, 32
        %v1499 = vpop.permute.xlu0 %1498
        %1500 = vrot.lane.b32.xlu0 %v1455, 32
        %v1501 = vpop.permute.xlu0 %1500
        %1502 = vrot.lane.b32.xlu0 %v1462, 32
        %v1503 = vpop.permute.xlu0 %1502
        %1504 = vrot.lane.b32.xlu0 %v1469, 32
        %v1505 = vpop.permute.xlu0 %1504
        %1506 = vrot.lane.b32.xlu0 %v1476, 32
        %v1507 = vpop.permute.xlu0 %1506
        %1508 = vrot.lane.b32.xlu0 %v1483, 32
        %v1509 = vpop.permute.xlu0 %1508
        %1510 = vrot.lane.b32.xlu0 %v1490, 32
        %v1511 = vpop.permute.xlu0 %1510
        %1512 = vrot.lane.b32.xlu0 %v1497, 32
        %v1513 = vpop.permute.xlu0 %1512
        %v1530 = vunpack.c.l.b16 %v1378
        %v1531 = vunpack.c.l.b16 %v1379
        %v1532 = vunpack.c.l.b16 %v1380
        %v1533 = vunpack.c.l.b16 %v1381
        %v1534 = vunpack.c.l.b16 %v1382
        %v1535 = vunpack.c.l.b16 %v1383
        %v1536 = vunpack.c.l.b16 %v1384
        %v1537 = vunpack.c.l.b16 %v1385
        %v1538 = vunpack.c.l.b16 %v1386
        %v1539 = vunpack.c.l.b16 %v1387
        %v1540 = vunpack.c.l.b16 %v1388
        %v1541 = vunpack.c.l.b16 %v1389
        %v1542 = vunpack.c.l.b16 %v1390
        %v1543 = vunpack.c.l.b16 %v1391
        %v1544 = vunpack.c.l.b16 %v1392
        %v1545 = vunpack.c.l.b16 %v1393
        %v1546 = vpack.c.b16 %v1531, %v1530
        %v1547 = vpack.c.b16 %v1533, %v1532
        %v1548 = vpack.c.b16 %v1535, %v1534
        %v1549 = vpack.c.b16 %v1537, %v1536
        %v1550 = vpack.c.b16 %v1539, %v1538
        %v1551 = vpack.c.b16 %v1541, %v1540
        %v1552 = vpack.c.b16 %v1543, %v1542
        %v1553 = vpack.c.b16 %v1545, %v1544
        %1554 = vrot.lane.b32.xlu0 %v1546, 64
        %v1555 = vpop.permute.xlu0 %1554
        %1556 = vrot.lane.b32.xlu0 %v1547, 64
        %v1557 = vpop.permute.xlu0 %1556
        %1558 = vrot.lane.b32.xlu0 %v1548, 64
        %v1559 = vpop.permute.xlu0 %1558
        %1560 = vrot.lane.b32.xlu0 %v1549, 64
        %v1561 = vpop.permute.xlu0 %1560
        %1562 = vrot.lane.b32.xlu0 %v1550, 64
        %v1563 = vpop.permute.xlu0 %1562
        %1564 = vrot.lane.b32.xlu0 %v1551, 64
        %v1565 = vpop.permute.xlu0 %1564
        %1566 = vrot.lane.b32.xlu0 %v1552, 64
        %v1567 = vpop.permute.xlu0 %1566
        %1568 = vrot.lane.b32.xlu0 %v1553, 64
        %v1569 = vpop.permute.xlu0 %1568
        %v1570 = vpack.c.b16 %v1530, %v1530
        %v1571 = vpack.c.b16 %v1532, %v1532
        %v1572 = vpack.c.b16 %v1534, %v1534
        %v1573 = vpack.c.b16 %v1536, %v1536
        %v1574 = vpack.c.b16 %v1538, %v1538
        %v1575 = vpack.c.b16 %v1540, %v1540
        %v1576 = vpack.c.b16 %v1542, %v1542
        %v1577 = vpack.c.b16 %v1544, %v1544
        %v1579 = vshrl.u32 %v1570, 16
        %v1581 = vrot.slane %v1579, 7
        %v1582 = vshll.u32 %v1570, 16
        %v1584 = vor.u32 %v1581, %v1582
        %v1586 = vshrl.u32 %v1571, 16
        %v1588 = vrot.slane %v1586, 7
        %v1589 = vshll.u32 %v1571, 16
        %v1591 = vor.u32 %v1588, %v1589
        %v1593 = vshrl.u32 %v1572, 16
        %v1595 = vrot.slane %v1593, 7
        %v1596 = vshll.u32 %v1572, 16
        %v1598 = vor.u32 %v1595, %v1596
        %v1600 = vshrl.u32 %v1573, 16
        %v1602 = vrot.slane %v1600, 7
        %v1603 = vshll.u32 %v1573, 16
        %v1605 = vor.u32 %v1602, %v1603
        %v1607 = vshrl.u32 %v1574, 16
        %v1609 = vrot.slane %v1607, 7
        %v1610 = vshll.u32 %v1574, 16
        %v1612 = vor.u32 %v1609, %v1610
        %v1614 = vshrl.u32 %v1575, 16
        %v1616 = vrot.slane %v1614, 7
        %v1617 = vshll.u32 %v1575, 16
        %v1619 = vor.u32 %v1616, %v1617
        %v1621 = vshrl.u32 %v1576, 16
        %v1623 = vrot.slane %v1621, 7
        %v1624 = vshll.u32 %v1576, 16
        %v1626 = vor.u32 %v1623, %v1624
        %v1628 = vshrl.u32 %v1577, 16
        %v1630 = vrot.slane %v1628, 7
        %v1631 = vshll.u32 %v1577, 16
        %v1633 = vor.u32 %v1630, %v1631
        %1634 = vrot.lane.b32.xlu0 %v1584, 96
        %v1635 = vpop.permute.xlu0 %1634
        %1636 = vrot.lane.b32.xlu0 %v1591, 96
        %v1637 = vpop.permute.xlu0 %1636
        %1638 = vrot.lane.b32.xlu0 %v1598, 96
        %v1639 = vpop.permute.xlu0 %1638
        %1640 = vrot.lane.b32.xlu0 %v1605, 96
        %v1641 = vpop.permute.xlu0 %1640
        %1642 = vrot.lane.b32.xlu0 %v1612, 96
        %v1643 = vpop.permute.xlu0 %1642
        %1644 = vrot.lane.b32.xlu0 %v1619, 96
        %v1645 = vpop.permute.xlu0 %1644
        %1646 = vrot.lane.b32.xlu0 %v1626, 96
        %v1647 = vpop.permute.xlu0 %1646
        %1648 = vrot.lane.b32.xlu0 %v1633, 96
        %v1649 = vpop.permute.xlu0 %1648
        %v1652 = vsel %vm428, %v1426, %v1499
        %v1655 = vsel %vm428, %v1427, %v1501
        %v1658 = vsel %vm428, %v1428, %v1503
        %v1661 = vsel %vm428, %v1429, %v1505
        %v1664 = vsel %vm428, %v1430, %v1507
        %v1667 = vsel %vm428, %v1431, %v1509
        %v1670 = vsel %vm428, %v1432, %v1511
        %v1673 = vsel %vm428, %v1433, %v1513
        %v1675 = vsel %vm453, %v1652, %v1555
        %v1677 = vsel %vm453, %v1655, %v1557
        %v1679 = vsel %vm453, %v1658, %v1559
        %v1681 = vsel %vm453, %v1661, %v1561
        %v1683 = vsel %vm453, %v1664, %v1563
        %v1685 = vsel %vm453, %v1667, %v1565
        %v1687 = vsel %vm453, %v1670, %v1567
        %v1689 = vsel %vm453, %v1673, %v1569
        %v1691 = vsel %vm470, %v1675, %v1635
        %v1693 = vsel %vm470, %v1677, %v1637
        %v1695 = vsel %vm470, %v1679, %v1639
        %v1697 = vsel %vm470, %v1681, %v1641
        %v1699 = vsel %vm470, %v1683, %v1643
        %v1701 = vsel %vm470, %v1685, %v1645
        %v1703 = vsel %vm470, %v1687, %v1647
        %v1705 = vsel %vm470, %v1689, %v1649
        %v1714 = vunpack.c.l.b16 %v1691
        %v1715 = vunpack.c.h.b16 %v1691
        %v1716 = vunpack.c.l.b16 %v1693
        %v1717 = vunpack.c.h.b16 %v1693
        %v1718 = vunpack.c.l.b16 %v1695
        %v1719 = vunpack.c.h.b16 %v1695
        %v1720 = vunpack.c.l.b16 %v1697
        %v1721 = vunpack.c.h.b16 %v1697
        %v1722 = vunpack.c.l.b16 %v1699
        %v1723 = vunpack.c.h.b16 %v1699
        %v1724 = vunpack.c.l.b16 %v1701
        %v1725 = vunpack.c.h.b16 %v1701
        %v1726 = vunpack.c.l.b16 %v1703
        %v1727 = vunpack.c.h.b16 %v1703
        %v1728 = vunpack.c.l.b16 %v1705
        %v1729 = vunpack.c.h.b16 %v1705
        %v1730 = vpack.c.b16 %v1714, %v1714
        %v1731 = vpack.c.b16 %v1715, %v1715
        %v1732 = vpack.c.b16 %v1716, %v1716
        %v1733 = vpack.c.b16 %v1717, %v1717
        %v1734 = vpack.c.b16 %v1718, %v1718
        %v1735 = vpack.c.b16 %v1719, %v1719
        %v1736 = vpack.c.b16 %v1720, %v1720
        %v1737 = vpack.c.b16 %v1721, %v1721
        %v1738 = vpack.c.b16 %v1722, %v1722
        %v1739 = vpack.c.b16 %v1723, %v1723
        %v1740 = vpack.c.b16 %v1724, %v1724
        %v1741 = vpack.c.b16 %v1725, %v1725
        %v1742 = vpack.c.b16 %v1726, %v1726
        %v1743 = vpack.c.b16 %v1727, %v1727
        %v1744 = vpack.c.b16 %v1728, %v1728
        %v1745 = vpack.c.b16 %v1729, %v1729
        %v1747 = vshrl.u32 %v1730, 16
        %v1749 = vrot.slane %v1747, 4
        %v1750 = vshll.u32 %v1730, 16
        %v1752 = vrot.slane %v1750, 5
        %v1753 = vor.u32 %v1749, %v1752
        %v1754 = vrot.slane %v1753, 4
        %v1756 = vshll.u32 %v1731, 16
        %v1758 = vrot.slane %v1756, 5
        %v1759 = vsel %vm529, %v1754, %v1758
        %v1761 = vshrl.u32 %v1732, 16
        %v1763 = vrot.slane %v1761, 4
        %v1764 = vshll.u32 %v1732, 16
        %v1766 = vrot.slane %v1764, 5
        %v1767 = vor.u32 %v1763, %v1766
        %v1768 = vrot.slane %v1767, 4
        %v1770 = vshll.u32 %v1733, 16
        %v1772 = vrot.slane %v1770, 5
        %v1773 = vsel %vm529, %v1768, %v1772
        %v1775 = vshrl.u32 %v1734, 16
        %v1777 = vrot.slane %v1775, 4
        %v1778 = vshll.u32 %v1734, 16
        %v1780 = vrot.slane %v1778, 5
        %v1781 = vor.u32 %v1777, %v1780
        %v1782 = vrot.slane %v1781, 4
        %v1784 = vshll.u32 %v1735, 16
        %v1786 = vrot.slane %v1784, 5
        %v1787 = vsel %vm529, %v1782, %v1786
        %v1789 = vshrl.u32 %v1736, 16
        %v1791 = vrot.slane %v1789, 4
        %v1792 = vshll.u32 %v1736, 16
        %v1794 = vrot.slane %v1792, 5
        %v1795 = vor.u32 %v1791, %v1794
        %v1796 = vrot.slane %v1795, 4
        %v1798 = vshll.u32 %v1737, 16
        %v1800 = vrot.slane %v1798, 5
        %v1801 = vsel %vm529, %v1796, %v1800
        %v1803 = vshrl.u32 %v1738, 16
        %v1805 = vrot.slane %v1803, 4
        %v1806 = vshll.u32 %v1738, 16
        %v1808 = vrot.slane %v1806, 5
        %v1809 = vor.u32 %v1805, %v1808
        %v1810 = vrot.slane %v1809, 4
        %v1812 = vshll.u32 %v1739, 16
        %v1814 = vrot.slane %v1812, 5
        %v1815 = vsel %vm529, %v1810, %v1814
        %v1817 = vshrl.u32 %v1740, 16
        %v1819 = vrot.slane %v1817, 4
        %v1820 = vshll.u32 %v1740, 16
        %v1822 = vrot.slane %v1820, 5
        %v1823 = vor.u32 %v1819, %v1822
        %v1824 = vrot.slane %v1823, 4
        %v1826 = vshll.u32 %v1741, 16
        %v1828 = vrot.slane %v1826, 5
        %v1829 = vsel %vm529, %v1824, %v1828
        %v1831 = vshrl.u32 %v1742, 16
        %v1833 = vrot.slane %v1831, 4
        %v1834 = vshll.u32 %v1742, 16
        %v1836 = vrot.slane %v1834, 5
        %v1837 = vor.u32 %v1833, %v1836
        %v1838 = vrot.slane %v1837, 4
        %v1840 = vshll.u32 %v1743, 16
        %v1842 = vrot.slane %v1840, 5
        %v1843 = vsel %vm529, %v1838, %v1842
        %v1845 = vshrl.u32 %v1744, 16
        %v1847 = vrot.slane %v1845, 4
        %v1848 = vshll.u32 %v1744, 16
        %v1850 = vrot.slane %v1848, 5
        %v1851 = vor.u32 %v1847, %v1850
        %v1852 = vrot.slane %v1851, 4
        %v1854 = vshll.u32 %v1745, 16
        %v1856 = vrot.slane %v1854, 5
        %v1857 = vsel %vm529, %v1852, %v1856
        %s1858 = scalar_lea.vmem %s1, 128
        %v1859 = vld [vmem:[%s1858] sm:$0xf]
        %v1860 = vld [vmem:[%s1858 + $0x4] sm:$0xf]
        %v1861 = vld [vmem:[%s1858 + $0x8] sm:$0xf]
        %v1862 = vld [vmem:[%s1858 + $0xc] sm:$0xf]
        %v1863 = vld [vmem:[%s1858 + $0x10] sm:$0xf]
        %v1864 = vld [vmem:[%s1858 + $0x14] sm:$0xf]
        %v1865 = vld [vmem:[%s1858 + $0x18] sm:$0xf]
        %v1866 = vld [vmem:[%s1858 + $0x1c] sm:$0xf]
        %v1867 = vld [vmem:[%s1858 + $0x20] sm:$0xf]
        %v1868 = vld [vmem:[%s1858 + $0x24] sm:$0xf]
        %v1869 = vld [vmem:[%s1858 + $0x28] sm:$0xf]
        %v1870 = vld [vmem:[%s1858 + $0x2c] sm:$0xf]
        %v1871 = vld [vmem:[%s1858 + $0x30] sm:$0xf]
        %v1872 = vld [vmem:[%s1858 + $0x34] sm:$0xf]
        %v1873 = vld [vmem:[%s1858 + $0x38] sm:$0xf]
        %v1874 = vld [vmem:[%s1858 + $0x3c] sm:$0xf]
        %v1875 = vunpack.c.l.b16 %v1759
        %v1876 = vunpack.c.l.b16 %v1773
        %v1877 = vunpack.c.l.b16 %v1787
        %v1878 = vunpack.c.l.b16 %v1801
        %v1879 = vunpack.c.l.b16 %v1815
        %v1880 = vunpack.c.l.b16 %v1829
        %v1881 = vunpack.c.l.b16 %v1843
        %v1882 = vunpack.c.l.b16 %v1857
        %v1883 = vpack.c.b16 %v1876, %v1875
        %v1884 = vpack.c.b16 %v1878, %v1877
        %v1885 = vpack.c.b16 %v1880, %v1879
        %v1886 = vpack.c.b16 %v1882, %v1881
        %v1907 = vunpack.c.l.b16 %v1859
        %v1908 = vunpack.c.l.b16 %v1860
        %v1909 = vunpack.c.l.b16 %v1861
        %v1910 = vunpack.c.l.b16 %v1862
        %v1911 = vunpack.c.l.b16 %v1863
        %v1912 = vunpack.c.l.b16 %v1864
        %v1913 = vunpack.c.l.b16 %v1865
        %v1914 = vunpack.c.l.b16 %v1866
        %v1915 = vunpack.c.l.b16 %v1867
        %v1916 = vunpack.c.l.b16 %v1868
        %v1917 = vunpack.c.l.b16 %v1869
        %v1918 = vunpack.c.l.b16 %v1870
        %v1919 = vunpack.c.l.b16 %v1871
        %v1920 = vunpack.c.l.b16 %v1872
        %v1921 = vunpack.c.l.b16 %v1873
        %v1922 = vunpack.c.l.b16 %v1874
        %v1923 = vpack.c.b16 %v1908, %v1907
        %v1924 = vpack.c.b16 %v1910, %v1909
        %v1925 = vpack.c.b16 %v1912, %v1911
        %v1926 = vpack.c.b16 %v1914, %v1913
        %v1927 = vpack.c.b16 %v1916, %v1915
        %v1928 = vpack.c.b16 %v1918, %v1917
        %v1929 = vpack.c.b16 %v1920, %v1919
        %v1930 = vpack.c.b16 %v1922, %v1921
        %1939 = vmatpush.bf16.msra.mxu0 %v1930
        %1940 = vmatpush.bf16.msra.mxu0 %v1929
        %1941 = vmatpush.bf16.msra.mxu0 %v1928
        %1942 = vmatpush.bf16.msra.mxu0 %v1927
        %1943 = vmatpush.bf16.msra.mxu0 %v1926
        %1944 = vmatpush.bf16.msra.mxu0 %v1925
        %1945 = vmatpush.bf16.msra.mxu0 %v1924
        %1946 = vmatpush.bf16.msra.mxu0 %v1923
        %1947 = vmatmul.bf16.gmra.mxu0 %v1883
        %v1948 = vpop.f32.mrf.mxu0
        %v1949 = vadd.f32 0.0, %v1948
        %v1950 = vpop.f32.mrf.mxu0
        %v1951 = vadd.f32 0.0, %v1950
        %1952 = vmatmul.bf16.gmra.mxu0 %v1884
        %v1953 = vpop.f32.mrf.mxu0
        %v1954 = vadd.f32 0.0, %v1953
        %v1955 = vpop.f32.mrf.mxu0
        %v1956 = vadd.f32 0.0, %v1955
        %1957 = vmatmul.bf16.gmra.mxu0 %v1885
        %v1958 = vpop.f32.mrf.mxu0
        %v1959 = vadd.f32 0.0, %v1958
        %v1960 = vpop.f32.mrf.mxu0
        %v1961 = vadd.f32 0.0, %v1960
        %1962 = vmatmul.bf16.gmra.mxu0 %v1886
        %v1963 = vpop.f32.mrf.mxu0
        %v1964 = vadd.f32 0.0, %v1963
        %v1965 = vpop.f32.mrf.mxu0
        %v1966 = vadd.f32 0.0, %v1965
        %1967 = vdwg.mxu0
        %v1968 = vtanh.pop %v1949
        %v1969 = vtanh.pop %v1951
        %v1970 = vtanh.pop %v1954
        %v1971 = vtanh.pop %v1956
        %v1972 = vtanh.pop %v1959
        %v1973 = vtanh.pop %v1961
        %v1974 = vtanh.pop %v1964
        %v1975 = vtanh.pop %v1966
        %s1976 = scalar_lea.vmem %s132, 128 [#allocation2]
        %1977 = vst [vmem:[%s1976] sm:$0xff] %v1968
        %1978 = vst [vmem:[%s1976 + $0x8] sm:$0xff] %v1969
        %1979 = vst [vmem:[%s1976 + $0x10] sm:$0xff] %v1970
        %1980 = vst [vmem:[%s1976 + $0x18] sm:$0xff] %v1971
        %1981 = vst [vmem:[%s1976 + $0x20] sm:$0xff] %v1972
        %1982 = vst [vmem:[%s1976 + $0x28] sm:$0xff] %v1973
        %1983 = vst [vmem:[%s1976 + $0x30] sm:$0xff] %v1974
        %1984 = vst [vmem:[%s1976 + $0x38] sm:$0xff] %v1975
        %v1985 = vld [vmem:[%s1361] sm:$0xe]
        %v1986 = vld [vmem:[%s1361 + $0x4] sm:$0x1]
        %v1987 = vld [vmem:[%s1361 + $0x8] sm:$0xe]
        %v1988 = vld [vmem:[%s1361 + $0xc] sm:$0x1]
        %v1989 = vld [vmem:[%s1361 + $0x10] sm:$0xe]
        %v1990 = vld [vmem:[%s1361 + $0x14] sm:$0x1]
        %v1991 = vld [vmem:[%s1361 + $0x18] sm:$0xe]
        %v1992 = vld [vmem:[%s1361 + $0x1c] sm:$0x1]
        %v1993 = vld [vmem:[%s1361 + $0x20] sm:$0xe]
        %v1994 = vld [vmem:[%s1361 + $0x24] sm:$0x1]
        %v1995 = vld [vmem:[%s1361 + $0x28] sm:$0xe]
        %v1996 = vld [vmem:[%s1361 + $0x2c] sm:$0x1]
        %v1997 = vld [vmem:[%s1361 + $0x30] sm:$0xe]
        %v1998 = vld [vmem:[%s1361 + $0x34] sm:$0x1]
        %v1999 = vld [vmem:[%s1361 + $0x38] sm:$0xe]
        %v2000 = vld [vmem:[%s1361 + $0x3c] sm:$0x1]
        %v2001 = vld [vmem:[%s1361] sm:$0xf]
        %v2002 = vld [vmem:[%s1361 + $0x8] sm:$0xf]
        %v2003 = vld [vmem:[%s1361 + $0x10] sm:$0xf]
        %v2004 = vld [vmem:[%s1361 + $0x18] sm:$0xf]
        %v2005 = vld [vmem:[%s1361 + $0x20] sm:$0xf]
        %v2006 = vld [vmem:[%s1361 + $0x28] sm:$0xf]
        %v2007 = vld [vmem:[%s1361 + $0x30] sm:$0xf]
        %v2008 = vld [vmem:[%s1361 + $0x38] sm:$0xf]
        %v2009 = vld [vmem:[%s139] sm:$0xe]
        %v2010 = vld [vmem:[%s139 + $0x4] sm:$0x1]
        %v2011 = vld [vmem:[%s139 + $0x8] sm:$0xe]
        %v2012 = vld [vmem:[%s139 + $0xc] sm:$0x1]
        %v2013 = vld [vmem:[%s139 + $0x10] sm:$0xe]
        %v2014 = vld [vmem:[%s139 + $0x14] sm:$0x1]
        %v2015 = vld [vmem:[%s139 + $0x18] sm:$0xe]
        %v2016 = vld [vmem:[%s139 + $0x1c] sm:$0x1]
        %v2017 = vld [vmem:[%s139 + $0x20] sm:$0xe]
        %v2018 = vld [vmem:[%s139 + $0x24] sm:$0x1]
        %v2019 = vld [vmem:[%s139 + $0x28] sm:$0xe]
        %v2020 = vld [vmem:[%s139 + $0x2c] sm:$0x1]
        %v2021 = vld [vmem:[%s139 + $0x30] sm:$0xe]
        %v2022 = vld [vmem:[%s139 + $0x34] sm:$0x1]
        %v2023 = vld [vmem:[%s139 + $0x38] sm:$0xe]
        %v2024 = vld [vmem:[%s139 + $0x3c] sm:$0x1]
        %v2025 = vld [vmem:[%s139] sm:$0xf]
        %v2026 = vld [vmem:[%s139 + $0x8] sm:$0xf]
        %v2027 = vld [vmem:[%s139 + $0x10] sm:$0xf]
        %v2028 = vld [vmem:[%s139 + $0x18] sm:$0xf]
        %v2029 = vld [vmem:[%s139 + $0x20] sm:$0xf]
        %v2030 = vld [vmem:[%s139 + $0x28] sm:$0xf]
        %v2031 = vld [vmem:[%s139 + $0x30] sm:$0xf]
        %v2032 = vld [vmem:[%s139 + $0x38] sm:$0xf]
        %v2049 = vunpack.c.l.b16 %v1985
        %v2050 = vunpack.c.l.b16 %v1986
        %v2051 = vunpack.c.l.b16 %v1987
        %v2052 = vunpack.c.l.b16 %v1988
        %v2053 = vunpack.c.l.b16 %v1989
        %v2054 = vunpack.c.l.b16 %v1990
        %v2055 = vunpack.c.l.b16 %v1991
        %v2056 = vunpack.c.l.b16 %v1992
        %v2057 = vunpack.c.l.b16 %v1993
        %v2058 = vunpack.c.l.b16 %v1994
        %v2059 = vunpack.c.l.b16 %v1995
        %v2060 = vunpack.c.l.b16 %v1996
        %v2061 = vunpack.c.l.b16 %v1997
        %v2062 = vunpack.c.l.b16 %v1998
        %v2063 = vunpack.c.l.b16 %v1999
        %v2064 = vunpack.c.l.b16 %v2000
        %v2065 = vpack.c.b16 %v2050, %v2049
        %v2066 = vpack.c.b16 %v2052, %v2051
        %v2067 = vpack.c.b16 %v2054, %v2053
        %v2068 = vpack.c.b16 %v2056, %v2055
        %v2069 = vpack.c.b16 %v2058, %v2057
        %v2070 = vpack.c.b16 %v2060, %v2059
        %v2071 = vpack.c.b16 %v2062, %v2061
        %v2072 = vpack.c.b16 %v2064, %v2063
        %v2081 = vunpack.c.l.b16 %v2001
        %v2082 = vunpack.c.l.b16 %v2002
        %v2083 = vunpack.c.l.b16 %v2003
        %v2084 = vunpack.c.l.b16 %v2004
        %v2085 = vunpack.c.l.b16 %v2005
        %v2086 = vunpack.c.l.b16 %v2006
        %v2087 = vunpack.c.l.b16 %v2007
        %v2088 = vunpack.c.l.b16 %v2008
        %v2089 = vpack.c.b16 %v2050, %v2081
        %v2090 = vpack.c.b16 %v2052, %v2082
        %v2091 = vpack.c.b16 %v2054, %v2083
        %v2092 = vpack.c.b16 %v2056, %v2084
        %v2093 = vpack.c.b16 %v2058, %v2085
        %v2094 = vpack.c.b16 %v2060, %v2086
        %v2095 = vpack.c.b16 %v2062, %v2087
        %v2096 = vpack.c.b16 %v2064, %v2088
        %v2098 = vshrl.u32 %v2089, 16
        %v2100 = vrot.slane %v2098, 7
        %v2101 = vshll.u32 %v2089, 16
        %v2103 = vor.u32 %v2100, %v2101
        %v2105 = vshrl.u32 %v2090, 16
        %v2107 = vrot.slane %v2105, 7
        %v2108 = vshll.u32 %v2090, 16
        %v2110 = vor.u32 %v2107, %v2108
        %v2112 = vshrl.u32 %v2091, 16
        %v2114 = vrot.slane %v2112, 7
        %v2115 = vshll.u32 %v2091, 16
        %v2117 = vor.u32 %v2114, %v2115
        %v2119 = vshrl.u32 %v2092, 16
        %v2121 = vrot.slane %v2119, 7
        %v2122 = vshll.u32 %v2092, 16
        %v2124 = vor.u32 %v2121, %v2122
        %v2126 = vshrl.u32 %v2093, 16
        %v2128 = vrot.slane %v2126, 7
        %v2129 = vshll.u32 %v2093, 16
        %v2131 = vor.u32 %v2128, %v2129
        %v2133 = vshrl.u32 %v2094, 16
        %v2135 = vrot.slane %v2133, 7
        %v2136 = vshll.u32 %v2094, 16
        %v2138 = vor.u32 %v2135, %v2136
        %v2140 = vshrl.u32 %v2095, 16
        %v2142 = vrot.slane %v2140, 7
        %v2143 = vshll.u32 %v2095, 16
        %v2145 = vor.u32 %v2142, %v2143
        %v2147 = vshrl.u32 %v2096, 16
        %v2149 = vrot.slane %v2147, 7
        %v2150 = vshll.u32 %v2096, 16
        %v2152 = vor.u32 %v2149, %v2150
        %2153 = vrot.lane.b32.xlu0 %v2103, 32
        %v2154 = vpop.permute.xlu0 %2153
        %2155 = vrot.lane.b32.xlu0 %v2110, 32
        %v2156 = vpop.permute.xlu0 %2155
        %2157 = vrot.lane.b32.xlu0 %v2117, 32
        %v2158 = vpop.permute.xlu0 %2157
        %2159 = vrot.lane.b32.xlu0 %v2124, 32
        %v2160 = vpop.permute.xlu0 %2159
        %2161 = vrot.lane.b32.xlu0 %v2131, 32
        %v2162 = vpop.permute.xlu0 %2161
        %2163 = vrot.lane.b32.xlu0 %v2138, 32
        %v2164 = vpop.permute.xlu0 %2163
        %2165 = vrot.lane.b32.xlu0 %v2145, 32
        %v2166 = vpop.permute.xlu0 %2165
        %2167 = vrot.lane.b32.xlu0 %v2152, 32
        %v2168 = vpop.permute.xlu0 %2167
        %v2185 = vunpack.c.l.b16 %v2009
        %v2186 = vunpack.c.l.b16 %v2010
        %v2187 = vunpack.c.l.b16 %v2011
        %v2188 = vunpack.c.l.b16 %v2012
        %v2189 = vunpack.c.l.b16 %v2013
        %v2190 = vunpack.c.l.b16 %v2014
        %v2191 = vunpack.c.l.b16 %v2015
        %v2192 = vunpack.c.l.b16 %v2016
        %v2193 = vunpack.c.l.b16 %v2017
        %v2194 = vunpack.c.l.b16 %v2018
        %v2195 = vunpack.c.l.b16 %v2019
        %v2196 = vunpack.c.l.b16 %v2020
        %v2197 = vunpack.c.l.b16 %v2021
        %v2198 = vunpack.c.l.b16 %v2022
        %v2199 = vunpack.c.l.b16 %v2023
        %v2200 = vunpack.c.l.b16 %v2024
        %v2201 = vpack.c.b16 %v2186, %v2185
        %v2202 = vpack.c.b16 %v2188, %v2187
        %v2203 = vpack.c.b16 %v2190, %v2189
        %v2204 = vpack.c.b16 %v2192, %v2191
        %v2205 = vpack.c.b16 %v2194, %v2193
        %v2206 = vpack.c.b16 %v2196, %v2195
        %v2207 = vpack.c.b16 %v2198, %v2197
        %v2208 = vpack.c.b16 %v2200, %v2199
        %2209 = vrot.lane.b32.xlu0 %v2201, 64
        %v2210 = vpop.permute.xlu0 %2209
        %2211 = vrot.lane.b32.xlu0 %v2202, 64
        %v2212 = vpop.permute.xlu0 %2211
        %2213 = vrot.lane.b32.xlu0 %v2203, 64
        %v2214 = vpop.permute.xlu0 %2213
        %2215 = vrot.lane.b32.xlu0 %v2204, 64
        %v2216 = vpop.permute.xlu0 %2215
        %2217 = vrot.lane.b32.xlu0 %v2205, 64
        %v2218 = vpop.permute.xlu0 %2217
        %2219 = vrot.lane.b32.xlu0 %v2206, 64
        %v2220 = vpop.permute.xlu0 %2219
        %2221 = vrot.lane.b32.xlu0 %v2207, 64
        %v2222 = vpop.permute.xlu0 %2221
        %2223 = vrot.lane.b32.xlu0 %v2208, 64
        %v2224 = vpop.permute.xlu0 %2223
        %v2233 = vunpack.c.l.b16 %v2025
        %v2234 = vunpack.c.l.b16 %v2026
        %v2235 = vunpack.c.l.b16 %v2027
        %v2236 = vunpack.c.l.b16 %v2028
        %v2237 = vunpack.c.l.b16 %v2029
        %v2238 = vunpack.c.l.b16 %v2030
        %v2239 = vunpack.c.l.b16 %v2031
        %v2240 = vunpack.c.l.b16 %v2032
        %v2241 = vpack.c.b16 %v2186, %v2233
        %v2242 = vpack.c.b16 %v2188, %v2234
        %v2243 = vpack.c.b16 %v2190, %v2235
        %v2244 = vpack.c.b16 %v2192, %v2236
        %v2245 = vpack.c.b16 %v2194, %v2237
        %v2246 = vpack.c.b16 %v2196, %v2238
        %v2247 = vpack.c.b16 %v2198, %v2239
        %v2248 = vpack.c.b16 %v2200, %v2240
        %v2250 = vshrl.u32 %v2241, 16
        %v2252 = vrot.slane %v2250, 7
        %v2253 = vshll.u32 %v2241, 16
        %v2255 = vor.u32 %v2252, %v2253
        %v2257 = vshrl.u32 %v2242, 16
        %v2259 = vrot.slane %v2257, 7
        %v2260 = vshll.u32 %v2242, 16
        %v2262 = vor.u32 %v2259, %v2260
        %v2264 = vshrl.u32 %v2243, 16
        %v2266 = vrot.slane %v2264, 7
        %v2267 = vshll.u32 %v2243, 16
        %v2269 = vor.u32 %v2266, %v2267
        %v2271 = vshrl.u32 %v2244, 16
        %v2273 = vrot.slane %v2271, 7
        %v2274 = vshll.u32 %v2244, 16
        %v2276 = vor.u32 %v2273, %v2274
        %v2278 = vshrl.u32 %v2245, 16
        %v2280 = vrot.slane %v2278, 7
        %v2281 = vshll.u32 %v2245, 16
        %v2283 = vor.u32 %v2280, %v2281
        %v2285 = vshrl.u32 %v2246, 16
        %v2287 = vrot.slane %v2285, 7
        %v2288 = vshll.u32 %v2246, 16
        %v2290 = vor.u32 %v2287, %v2288
        %v2292 = vshrl.u32 %v2247, 16
        %v2294 = vrot.slane %v2292, 7
        %v2295 = vshll.u32 %v2247, 16
        %v2297 = vor.u32 %v2294, %v2295
        %v2299 = vshrl.u32 %v2248, 16
        %v2301 = vrot.slane %v2299, 7
        %v2302 = vshll.u32 %v2248, 16
        %v2304 = vor.u32 %v2301, %v2302
        %2305 = vrot.lane.b32.xlu0 %v2255, 96
        %v2306 = vpop.permute.xlu0 %2305
        %2307 = vrot.lane.b32.xlu0 %v2262, 96
        %v2308 = vpop.permute.xlu0 %2307
        %2309 = vrot.lane.b32.xlu0 %v2269, 96
        %v2310 = vpop.permute.xlu0 %2309
        %2311 = vrot.lane.b32.xlu0 %v2276, 96
        %v2312 = vpop.permute.xlu0 %2311
        %2313 = vrot.lane.b32.xlu0 %v2283, 96
        %v2314 = vpop.permute.xlu0 %2313
        %2315 = vrot.lane.b32.xlu0 %v2290, 96
        %v2316 = vpop.permute.xlu0 %2315
        %2317 = vrot.lane.b32.xlu0 %v2297, 96
        %v2318 = vpop.permute.xlu0 %2317
        %2319 = vrot.lane.b32.xlu0 %v2304, 96
        %v2320 = vpop.permute.xlu0 %2319
        %v2323 = vsel %vm428, %v2065, %v2154
        %v2326 = vsel %vm428, %v2066, %v2156
        %v2329 = vsel %vm428, %v2067, %v2158
        %v2332 = vsel %vm428, %v2068, %v2160
        %v2335 = vsel %vm428, %v2069, %v2162
        %v2338 = vsel %vm428, %v2070, %v2164
        %v2341 = vsel %vm428, %v2071, %v2166
        %v2344 = vsel %vm428, %v2072, %v2168
        %v2346 = vsel %vm453, %v2323, %v2210
        %v2348 = vsel %vm453, %v2326, %v2212
        %v2350 = vsel %vm453, %v2329, %v2214
        %v2352 = vsel %vm453, %v2332, %v2216
        %v2354 = vsel %vm453, %v2335, %v2218
        %v2356 = vsel %vm453, %v2338, %v2220
        %v2358 = vsel %vm453, %v2341, %v2222
        %v2360 = vsel %vm453, %v2344, %v2224
        %v2362 = vsel %vm470, %v2346, %v2306
        %v2364 = vsel %vm470, %v2348, %v2308
        %v2366 = vsel %vm470, %v2350, %v2310
        %v2368 = vsel %vm470, %v2352, %v2312
        %v2370 = vsel %vm470, %v2354, %v2314
        %v2372 = vsel %vm470, %v2356, %v2316
        %v2374 = vsel %vm470, %v2358, %v2318
        %v2376 = vsel %vm470, %v2360, %v2320
        %v2385 = vunpack.c.l.b16 %v2362
        %v2386 = vunpack.c.h.b16 %v2362
        %v2387 = vunpack.c.l.b16 %v2364
        %v2388 = vunpack.c.h.b16 %v2364
        %v2389 = vunpack.c.l.b16 %v2366
        %v2390 = vunpack.c.h.b16 %v2366
        %v2391 = vunpack.c.l.b16 %v2368
        %v2392 = vunpack.c.h.b16 %v2368
        %v2393 = vunpack.c.l.b16 %v2370
        %v2394 = vunpack.c.h.b16 %v2370
        %v2395 = vunpack.c.l.b16 %v2372
        %v2396 = vunpack.c.h.b16 %v2372
        %v2397 = vunpack.c.l.b16 %v2374
        %v2398 = vunpack.c.h.b16 %v2374
        %v2399 = vunpack.c.l.b16 %v2376
        %v2400 = vunpack.c.h.b16 %v2376
        %v2401 = vpack.c.b16 %v2385, %v2385
        %v2402 = vpack.c.b16 %v2386, %v2386
        %v2403 = vpack.c.b16 %v2387, %v2387
        %v2404 = vpack.c.b16 %v2388, %v2388
        %v2405 = vpack.c.b16 %v2389, %v2389
        %v2406 = vpack.c.b16 %v2390, %v2390
        %v2407 = vpack.c.b16 %v2391, %v2391
        %v2408 = vpack.c.b16 %v2392, %v2392
        %v2409 = vpack.c.b16 %v2393, %v2393
        %v2410 = vpack.c.b16 %v2394, %v2394
        %v2411 = vpack.c.b16 %v2395, %v2395
        %v2412 = vpack.c.b16 %v2396, %v2396
        %v2413 = vpack.c.b16 %v2397, %v2397
        %v2414 = vpack.c.b16 %v2398, %v2398
        %v2415 = vpack.c.b16 %v2399, %v2399
        %v2416 = vpack.c.b16 %v2400, %v2400
        %v2417 = vrot.slane %v2401, 5
        %v2418 = vrot.slane %v2417, 4
        %v2419 = vrot.slane %v2402, 5
        %v2420 = vsel %vm1201, %v2418, %v2419
        %v2421 = vrot.slane %v2403, 5
        %v2422 = vrot.slane %v2421, 4
        %v2423 = vrot.slane %v2404, 5
        %v2424 = vsel %vm1201, %v2422, %v2423
        %v2425 = vrot.slane %v2405, 5
        %v2426 = vrot.slane %v2425, 4
        %v2427 = vrot.slane %v2406, 5
        %v2428 = vsel %vm1201, %v2426, %v2427
        %v2429 = vrot.slane %v2407, 5
        %v2430 = vrot.slane %v2429, 4
        %v2431 = vrot.slane %v2408, 5
        %v2432 = vsel %vm1201, %v2430, %v2431
        %v2433 = vrot.slane %v2409, 5
        %v2434 = vrot.slane %v2433, 4
        %v2435 = vrot.slane %v2410, 5
        %v2436 = vsel %vm1201, %v2434, %v2435
        %v2437 = vrot.slane %v2411, 5
        %v2438 = vrot.slane %v2437, 4
        %v2439 = vrot.slane %v2412, 5
        %v2440 = vsel %vm1201, %v2438, %v2439
        %v2441 = vrot.slane %v2413, 5
        %v2442 = vrot.slane %v2441, 4
        %v2443 = vrot.slane %v2414, 5
        %v2444 = vsel %vm1201, %v2442, %v2443
        %v2445 = vrot.slane %v2415, 5
        %v2446 = vrot.slane %v2445, 4
        %v2447 = vrot.slane %v2416, 5
        %v2448 = vsel %vm1201, %v2446, %v2447
        %s2449 = scalar_lea.vmem %s1, 192
        %v2450 = vld [vmem:[%s2449] sm:$0xf]
        %v2451 = vld [vmem:[%s2449 + $0x4] sm:$0xf]
        %v2452 = vld [vmem:[%s2449 + $0x8] sm:$0xf]
        %v2453 = vld [vmem:[%s2449 + $0xc] sm:$0xf]
        %v2454 = vld [vmem:[%s2449 + $0x10] sm:$0xf]
        %v2455 = vld [vmem:[%s2449 + $0x14] sm:$0xf]
        %v2456 = vld [vmem:[%s2449 + $0x18] sm:$0xf]
        %v2457 = vld [vmem:[%s2449 + $0x1c] sm:$0xf]
        %v2458 = vld [vmem:[%s2449 + $0x20] sm:$0xf]
        %v2459 = vld [vmem:[%s2449 + $0x24] sm:$0xf]
        %v2460 = vld [vmem:[%s2449 + $0x28] sm:$0xf]
        %v2461 = vld [vmem:[%s2449 + $0x2c] sm:$0xf]
        %v2462 = vld [vmem:[%s2449 + $0x30] sm:$0xf]
        %v2463 = vld [vmem:[%s2449 + $0x34] sm:$0xf]
        %v2464 = vld [vmem:[%s2449 + $0x38] sm:$0xf]
        %v2465 = vld [vmem:[%s2449 + $0x3c] sm:$0xf]
        %v2466 = vunpack.c.l.b16 %v2420
        %v2467 = vunpack.c.l.b16 %v2424
        %v2468 = vunpack.c.l.b16 %v2428
        %v2469 = vunpack.c.l.b16 %v2432
        %v2470 = vunpack.c.l.b16 %v2436
        %v2471 = vunpack.c.l.b16 %v2440
        %v2472 = vunpack.c.l.b16 %v2444
        %v2473 = vunpack.c.l.b16 %v2448
        %v2474 = vpack.c.b16 %v2467, %v2466
        %v2475 = vpack.c.b16 %v2469, %v2468
        %v2476 = vpack.c.b16 %v2471, %v2470
        %v2477 = vpack.c.b16 %v2473, %v2472
        %v2498 = vunpack.c.l.b16 %v2450
        %v2499 = vunpack.c.l.b16 %v2451
        %v2500 = vunpack.c.l.b16 %v2452
        %v2501 = vunpack.c.l.b16 %v2453
        %v2502 = vunpack.c.l.b16 %v2454
        %v2503 = vunpack.c.l.b16 %v2455
        %v2504 = vunpack.c.l.b16 %v2456
        %v2505 = vunpack.c.l.b16 %v2457
        %v2506 = vunpack.c.l.b16 %v2458
        %v2507 = vunpack.c.l.b16 %v2459
        %v2508 = vunpack.c.l.b16 %v2460
        %v2509 = vunpack.c.l.b16 %v2461
        %v2510 = vunpack.c.l.b16 %v2462
        %v2511 = vunpack.c.l.b16 %v2463
        %v2512 = vunpack.c.l.b16 %v2464
        %v2513 = vunpack.c.l.b16 %v2465
        %v2514 = vpack.c.b16 %v2499, %v2498
        %v2515 = vpack.c.b16 %v2501, %v2500
        %v2516 = vpack.c.b16 %v2503, %v2502
        %v2517 = vpack.c.b16 %v2505, %v2504
        %v2518 = vpack.c.b16 %v2507, %v2506
        %v2519 = vpack.c.b16 %v2509, %v2508
        %v2520 = vpack.c.b16 %v2511, %v2510
        %v2521 = vpack.c.b16 %v2513, %v2512
        %2530 = vmatpush.bf16.msra.mxu0 %v2521
        %2531 = vmatpush.bf16.msra.mxu0 %v2520
        %2532 = vmatpush.bf16.msra.mxu0 %v2519
        %2533 = vmatpush.bf16.msra.mxu0 %v2518
        %2534 = vmatpush.bf16.msra.mxu0 %v2517
        %2535 = vmatpush.bf16.msra.mxu0 %v2516
        %2536 = vmatpush.bf16.msra.mxu0 %v2515
        %2537 = vmatpush.bf16.msra.mxu0 %v2514
        %2538 = vmatmul.bf16.gmra.mxu0 %v2474
        %v2539 = vpop.f32.mrf.mxu0
        %v2540 = vadd.f32 0.0, %v2539
        %v2541 = vpop.f32.mrf.mxu0
        %v2542 = vadd.f32 0.0, %v2541
        %2543 = vmatmul.bf16.gmra.mxu0 %v2475
        %v2544 = vpop.f32.mrf.mxu0
        %v2545 = vadd.f32 0.0, %v2544
        %v2546 = vpop.f32.mrf.mxu0
        %v2547 = vadd.f32 0.0, %v2546
        %2548 = vmatmul.bf16.gmra.mxu0 %v2476
        %v2549 = vpop.f32.mrf.mxu0
        %v2550 = vadd.f32 0.0, %v2549
        %v2551 = vpop.f32.mrf.mxu0
        %v2552 = vadd.f32 0.0, %v2551
        %2553 = vmatmul.bf16.gmra.mxu0 %v2477
        %v2554 = vpop.f32.mrf.mxu0
        %v2555 = vadd.f32 0.0, %v2554
        %v2556 = vpop.f32.mrf.mxu0
        %v2557 = vadd.f32 0.0, %v2556
        %2558 = vdwg.mxu0
        %v2559 = vtanh.pop %v2540
        %v2560 = vtanh.pop %v2542
        %v2561 = vtanh.pop %v2545
        %v2562 = vtanh.pop %v2547
        %v2563 = vtanh.pop %v2550
        %v2564 = vtanh.pop %v2552
        %v2565 = vtanh.pop %v2555
        %v2566 = vtanh.pop %v2557
        %s2567 = scalar_lea.vmem %s132, 192 [#allocation2]
        %2568 = vst [vmem:[%s2567] sm:$0xff] %v2559
        %2569 = vst [vmem:[%s2567 + $0x8] sm:$0xff] %v2560
        %2570 = vst [vmem:[%s2567 + $0x10] sm:$0xff] %v2561
        %2571 = vst [vmem:[%s2567 + $0x18] sm:$0xff] %v2562
        %2572 = vst [vmem:[%s2567 + $0x20] sm:$0xff] %v2563
        %2573 = vst [vmem:[%s2567 + $0x28] sm:$0xff] %v2564
        %2574 = vst [vmem:[%s2567 + $0x30] sm:$0xff] %v2565
        %2575 = vst [vmem:[%s2567 + $0x38] sm:$0xff] %v2566
        %s2576 = sand.u32 %s68, 1
        %s2577 = sand.u32 %s68, 1
        %s2578 = smul.addr %s2577, 256
        %s2579 = scalar_lea.vmem [#allocation2], %s2578
        // Predicated region
        $region29: #{generator_forward.9} parent=27 // pred_check
          %p2580 = pneg %p78
        $region30: #{generator_forward.9} parent=27 // pred_check_branch
          %2582 = sbr.rel (%p2580) target = $region32
        $region31: #{generator_forward.9} parent=27 // pred_region
          %s2583 = smul.u32 8, %s13
          %s2584 = smul.addr %s2583, 8
          %s2585 = scalar_lea.vmem %s2, %s2584
          // Predicated region
          $region33: #{generator_forward.9} parent=31 // pred_check
            _
          $region34: #{generator_forward.9} parent=31 // pred_check_branch
            %2587 = sbr.rel (0) target = $region36
          $region35: #{generator_forward.9} parent=31 // pred_region
            // Predicated region
            $region37: #{generator_forward.9} parent=35 // pred_check
              _
            $region38: #{generator_forward.9} parent=35 // pred_check_branch
              %2589 = sbr.rel (0) target = $region40
            $region39: #{generator_forward.9} parent=35 // pred_region
              // Predicated region
              $region52: #{generator_forward.9} parent=39 // pred_check
                _
              $region53: #{generator_forward.9} parent=39 // pred_check_branch
                %2667 = sbr.rel (0) target = $region55
              $region54: #{generator_forward.9} parent=39 // pred_region
                loop: start=0, step=1, limit=1
                $region56: #{generator_forward.9} parent=54 // loop_pre_header
                  _
                $region57: #{generator_forward.9} parent=54 // loop_header
                  %s2669 = sphi 0, %s2673
                  %p2670 = scmp.ge.s32.totalorder %s2669, 1
                  %s2674 = sphi %s2579, %s2579
                  %s2675 = sphi %s2585, %s2585
                $region58: #{generator_forward.9} parent=54 // loop_header_branch
                  %2672 = sbr.rel (%p2670) target = $region62
                $region59: #{generator_forward.9} parent=54 // loop_body
                  %v2676 = vld [vmem:[%s2674] sm:$0xff]
                  %2677 = vst [vmem:[%s2675] sm:$0xff] %v2676
                  %v2678 = vld [vmem:[%s2674 + $0x8] sm:$0xff]
                  %2679 = vst [vmem:[%s2675 + $0x8] sm:$0xff] %v2678
                  %v2680 = vld [vmem:[%s2674 + $0x10] sm:$0xff]
                  %2681 = vst [vmem:[%s2675 + $0x10] sm:$0xff] %v2680
                  %v2682 = vld [vmem:[%s2674 + $0x18] sm:$0xff]
                  %2683 = vst [vmem:[%s2675 + $0x18] sm:$0xff] %v2682
                  %v2684 = vld [vmem:[%s2674 + $0x20] sm:$0xff]
                  %2685 = vst [vmem:[%s2675 + $0x20] sm:$0xff] %v2684
                  %v2686 = vld [vmem:[%s2674 + $0x28] sm:$0xff]
                  %2687 = vst [vmem:[%s2675 + $0x28] sm:$0xff] %v2686
                  %v2688 = vld [vmem:[%s2674 + $0x30] sm:$0xff]
                  %2689 = vst [vmem:[%s2675 + $0x30] sm:$0xff] %v2688
                  %v2690 = vld [vmem:[%s2674 + $0x38] sm:$0xff]
                  %2691 = vst [vmem:[%s2675 + $0x38] sm:$0xff] %v2690
                  %v2692 = vld [vmem:[%s2674 + $0x40] sm:$0xff]
                  %2693 = vst [vmem:[%s2675 + $0x80] sm:$0xff] %v2692
                  %v2694 = vld [vmem:[%s2674 + $0x48] sm:$0xff]
                  %2695 = vst [vmem:[%s2675 + $0x88] sm:$0xff] %v2694
                  %v2696 = vld [vmem:[%s2674 + $0x50] sm:$0xff]
                  %2697 = vst [vmem:[%s2675 + $0x90] sm:$0xff] %v2696
                  %v2698 = vld [vmem:[%s2674 + $0x58] sm:$0xff]
                  %2699 = vst [vmem:[%s2675 + $0x98] sm:$0xff] %v2698
                  %v2700 = vld [vmem:[%s2674 + $0x60] sm:$0xff]
                  %2701 = vst [vmem:[%s2675 + $0xa0] sm:$0xff] %v2700
                  %v2702 = vld [vmem:[%s2674 + $0x68] sm:$0xff]
                  %2703 = vst [vmem:[%s2675 + $0xa8] sm:$0xff] %v2702
                  %v2704 = vld [vmem:[%s2674 + $0x70] sm:$0xff]
                  %2705 = vst [vmem:[%s2675 + $0xb0] sm:$0xff] %v2704
                  %v2706 = vld [vmem:[%s2674 + $0x78] sm:$0xff]
                  %2707 = vst [vmem:[%s2675 + $0xb8] sm:$0xff] %v2706
                  %v2708 = vld [vmem:[%s2674 + $0x80] sm:$0xff]
                  %2709 = vst [vmem:[%s2675 + $0x100] sm:$0xff] %v2708
                  %v2710 = vld [vmem:[%s2674 + $0x88] sm:$0xff]
                  %2711 = vst [vmem:[%s2675 + $0x108] sm:$0xff] %v2710
                  %v2712 = vld [vmem:[%s2674 + $0x90] sm:$0xff]
                  %2713 = vst [vmem:[%s2675 + $0x110] sm:$0xff] %v2712
                  %v2714 = vld [vmem:[%s2674 + $0x98] sm:$0xff]
                  %2715 = vst [vmem:[%s2675 + $0x118] sm:$0xff] %v2714
                  %v2716 = vld [vmem:[%s2674 + $0xa0] sm:$0xff]
                  %2717 = vst [vmem:[%s2675 + $0x120] sm:$0xff] %v2716
                  %v2718 = vld [vmem:[%s2674 + $0xa8] sm:$0xff]
                  %2719 = vst [vmem:[%s2675 + $0x128] sm:$0xff] %v2718
                  %v2720 = vld [vmem:[%s2674 + $0xb0] sm:$0xff]
                  %2721 = vst [vmem:[%s2675 + $0x130] sm:$0xff] %v2720
                  %v2722 = vld [vmem:[%s2674 + $0xb8] sm:$0xff]
                  %2723 = vst [vmem:[%s2675 + $0x138] sm:$0xff] %v2722
                  %v2724 = vld [vmem:[%s2674 + $0xc0] sm:$0xff]
                  %2725 = vst [vmem:[%s2675 + $0x180] sm:$0xff] %v2724
                  %v2726 = vld [vmem:[%s2674 + $0xc8] sm:$0xff]
                  %2727 = vst [vmem:[%s2675 + $0x188] sm:$0xff] %v2726
                  %v2728 = vld [vmem:[%s2674 + $0xd0] sm:$0xff]
                  %2729 = vst [vmem:[%s2675 + $0x190] sm:$0xff] %v2728
                  %v2730 = vld [vmem:[%s2674 + $0xd8] sm:$0xff]
                  %2731 = vst [vmem:[%s2675 + $0x198] sm:$0xff] %v2730
                  %v2732 = vld [vmem:[%s2674 + $0xe0] sm:$0xff]
                  %2733 = vst [vmem:[%s2675 + $0x1a0] sm:$0xff] %v2732
                  %v2734 = vld [vmem:[%s2674 + $0xe8] sm:$0xff]
                  %2735 = vst [vmem:[%s2675 + $0x1a8] sm:$0xff] %v2734
                  %v2736 = vld [vmem:[%s2674 + $0xf0] sm:$0xff]
                  %2737 = vst [vmem:[%s2675 + $0x1b0] sm:$0xff] %v2736
                  %v2738 = vld [vmem:[%s2674 + $0xf8] sm:$0xff]
                  %2739 = vst [vmem:[%s2675 + $0x1b8] sm:$0xff] %v2738
                $region60: #{generator_forward.9} parent=54 // loop_footer
                  %s2673 = sadd.s32 1, %s2669
                $region61: #{generator_forward.9} parent=54 // loop_footer_branch
                  %2668 = sbr.rel target = $region57
                $region62: #{generator_forward.9} parent=54 // loop_exit
                  _
              $region55: #{generator_forward.9} parent=39 // pred_fallthru
                _
              // Predicated region
              $region63: #{generator_forward.9} parent=39 // pred_check
                _
              $region64: #{generator_forward.9} parent=39 // pred_check_branch
                %2741 = sbr.rel target = $region66
              $region65: #{generator_forward.9} parent=39 // pred_region
                _
              $region66: #{generator_forward.9} parent=39 // pred_fallthru
                _
            $region40: #{generator_forward.9} parent=35 // pred_fallthru
              _
            // Predicated region
            $region41: #{generator_forward.9} parent=35 // pred_check
              _
            $region42: #{generator_forward.9} parent=35 // pred_check_branch
              %2591 = sbr.rel target = $region44
            $region43: #{generator_forward.9} parent=35 // pred_region
              %s2593 = ssub.s32 256, 1
              loop: start=0, step=1, limit=1
              $region45: #{generator_forward.9} parent=43 // loop_pre_header
                _
              $region46: #{generator_forward.9} parent=43 // loop_header
                %s2595 = sphi 0, %s2599
                %p2596 = scmp.ge.s32.totalorder %s2595, 1
                %s2600 = sphi %s2579, %s2579
                %s2601 = sphi %s2585, %s2585
              $region47: #{generator_forward.9} parent=43 // loop_header_branch
                %2598 = sbr.rel (%p2596) target = $region51
              $region48: #{generator_forward.9} parent=43 // loop_body
                %v2602 = vld [vmem:[%s2600] sm:%s2593]
                %2603 = vst [vmem:[%s2601] sm:%s2593] %v2602
                %v2604 = vld [vmem:[%s2600 + $0x8] sm:%s2593]
                %2605 = vst [vmem:[%s2601 + $0x8] sm:%s2593] %v2604
                %v2606 = vld [vmem:[%s2600 + $0x10] sm:%s2593]
                %2607 = vst [vmem:[%s2601 + $0x10] sm:%s2593] %v2606
                %v2608 = vld [vmem:[%s2600 + $0x18] sm:%s2593]
                %2609 = vst [vmem:[%s2601 + $0x18] sm:%s2593] %v2608
                %v2610 = vld [vmem:[%s2600 + $0x20] sm:%s2593]
                %2611 = vst [vmem:[%s2601 + $0x20] sm:%s2593] %v2610
                %v2612 = vld [vmem:[%s2600 + $0x28] sm:%s2593]
                %2613 = vst [vmem:[%s2601 + $0x28] sm:%s2593] %v2612
                %v2614 = vld [vmem:[%s2600 + $0x30] sm:%s2593]
                %2615 = vst [vmem:[%s2601 + $0x30] sm:%s2593] %v2614
                %v2616 = vld [vmem:[%s2600 + $0x38] sm:%s2593]
                %2617 = vst [vmem:[%s2601 + $0x38] sm:%s2593] %v2616
                %v2618 = vld [vmem:[%s2600 + $0x40] sm:%s2593]
                %2619 = vst [vmem:[%s2601 + $0x80] sm:%s2593] %v2618
                %v2620 = vld [vmem:[%s2600 + $0x48] sm:%s2593]
                %2621 = vst [vmem:[%s2601 + $0x88] sm:%s2593] %v2620
                %v2622 = vld [vmem:[%s2600 + $0x50] sm:%s2593]
                %2623 = vst [vmem:[%s2601 + $0x90] sm:%s2593] %v2622
                %v2624 = vld [vmem:[%s2600 + $0x58] sm:%s2593]
                %2625 = vst [vmem:[%s2601 + $0x98] sm:%s2593] %v2624
                %v2626 = vld [vmem:[%s2600 + $0x60] sm:%s2593]
                %2627 = vst [vmem:[%s2601 + $0xa0] sm:%s2593] %v2626
                %v2628 = vld [vmem:[%s2600 + $0x68] sm:%s2593]
                %2629 = vst [vmem:[%s2601 + $0xa8] sm:%s2593] %v2628
                %v2630 = vld [vmem:[%s2600 + $0x70] sm:%s2593]
                %2631 = vst [vmem:[%s2601 + $0xb0] sm:%s2593] %v2630
                %v2632 = vld [vmem:[%s2600 + $0x78] sm:%s2593]
                %2633 = vst [vmem:[%s2601 + $0xb8] sm:%s2593] %v2632
                %v2634 = vld [vmem:[%s2600 + $0x80] sm:%s2593]
                %2635 = vst [vmem:[%s2601 + $0x100] sm:%s2593] %v2634
                %v2636 = vld [vmem:[%s2600 + $0x88] sm:%s2593]
                %2637 = vst [vmem:[%s2601 + $0x108] sm:%s2593] %v2636
                %v2638 = vld [vmem:[%s2600 + $0x90] sm:%s2593]
                %2639 = vst [vmem:[%s2601 + $0x110] sm:%s2593] %v2638
                %v2640 = vld [vmem:[%s2600 + $0x98] sm:%s2593]
                %2641 = vst [vmem:[%s2601 + $0x118] sm:%s2593] %v2640
                %v2642 = vld [vmem:[%s2600 + $0xa0] sm:%s2593]
                %2643 = vst [vmem:[%s2601 + $0x120] sm:%s2593] %v2642
                %v2644 = vld [vmem:[%s2600 + $0xa8] sm:%s2593]
                %2645 = vst [vmem:[%s2601 + $0x128] sm:%s2593] %v2644
                %v2646 = vld [vmem:[%s2600 + $0xb0] sm:%s2593]
                %2647 = vst [vmem:[%s2601 + $0x130] sm:%s2593] %v2646
                %v2648 = vld [vmem:[%s2600 + $0xb8] sm:%s2593]
                %2649 = vst [vmem:[%s2601 + $0x138] sm:%s2593] %v2648
                %v2650 = vld [vmem:[%s2600 + $0xc0] sm:%s2593]
                %2651 = vst [vmem:[%s2601 + $0x180] sm:%s2593] %v2650
                %v2652 = vld [vmem:[%s2600 + $0xc8] sm:%s2593]
                %2653 = vst [vmem:[%s2601 + $0x188] sm:%s2593] %v2652
                %v2654 = vld [vmem:[%s2600 + $0xd0] sm:%s2593]
                %2655 = vst [vmem:[%s2601 + $0x190] sm:%s2593] %v2654
                %v2656 = vld [vmem:[%s2600 + $0xd8] sm:%s2593]
                %2657 = vst [vmem:[%s2601 + $0x198] sm:%s2593] %v2656
                %v2658 = vld [vmem:[%s2600 + $0xe0] sm:%s2593]
                %2659 = vst [vmem:[%s2601 + $0x1a0] sm:%s2593] %v2658
                %v2660 = vld [vmem:[%s2600 + $0xe8] sm:%s2593]
                %2661 = vst [vmem:[%s2601 + $0x1a8] sm:%s2593] %v2660
                %v2662 = vld [vmem:[%s2600 + $0xf0] sm:%s2593]
                %2663 = vst [vmem:[%s2601 + $0x1b0] sm:%s2593] %v2662
                %v2664 = vld [vmem:[%s2600 + $0xf8] sm:%s2593]
                %2665 = vst [vmem:[%s2601 + $0x1b8] sm:%s2593] %v2664
              $region49: #{generator_forward.9} parent=43 // loop_footer
                %s2599 = sadd.s32 1, %s2595
              $region50: #{generator_forward.9} parent=43 // loop_footer_branch
                %2594 = sbr.rel target = $region46
              $region51: #{generator_forward.9} parent=43 // loop_exit
                _
            $region44: #{generator_forward.9} parent=35 // pred_fallthru
              _
          $region36: #{generator_forward.9} parent=31 // pred_fallthru
            _
          %2742 = vnop
        $region32: #{generator_forward.9} parent=27 // pred_fallthru
          _
      $region28: #{generator_forward.9} parent=5 // pred_fallthru
        _
      %p2743 = scmp.le.s32.totalorder 2, %s8
      // Predicated region
      $region67: #{generator_forward.9} parent=5 // pred_check
        %p2744 = pneg %p2743
      $region68: #{generator_forward.9} parent=5 // pred_check_branch
        %2746 = sbr.rel (%p2744) target = $region70
      $region69: #{generator_forward.9} parent=5 // pred_region
        %s2747 = ssub.s32 %s8, 2
        // Predicated region
        $region71: #{generator_forward.9} parent=69 // pred_check
          %p2748 = pneg %p84
        $region72: #{generator_forward.9} parent=69 // pred_check_branch
          %2750 = sbr.rel (%p2748) target = $region74
        $region73: #{generator_forward.9} parent=69 // pred_region
          %s2751 = sand.u32 %s69, 1
          %s2752 = sand.u32 %s69, 1
          %s2753 = smul.addr %s2752, 256
          %s2754 = scalar_lea.vmem [#allocation2], %s2753
        $region74: #{generator_forward.9} parent=69 // pred_fallthru
          _
      $region70: #{generator_forward.9} parent=5 // pred_fallthru
        _
    $region6: #{generator_forward.9} parent=1 // loop_footer
      %s12 = sadd.s32 1, %s8
    $region7: #{generator_forward.9} parent=1 // loop_footer_branch
      %7 = sbr.rel target = $region3
    $region8: #{generator_forward.9} parent=1 // loop_exit
      _

</llo_original>
